<compile_context>
chip_gen: v7x
topology: tpu7x:2x2x1
jax: 0.10.0
libtpu: 0.0.40
codegen_flags: <defaults>
</compile_context>

<pallas_src>
import functools
import numpy as np
import jax
import jax.numpy as jnp
from jax import lax
from jax.experimental import pallas as pl
from jax.experimental.pallas import tpu as pltpu

_F32 = jnp.float32


def _round_up(v, m):
    return (v + m - 1) // m * m


@functools.lru_cache(maxsize=None)
def _vmem_budget_bytes():
    """~80% of per-core VMEM (review: 64 MiB hard-coded is unsafe on v7x and
    undersized on v5e/v6e)."""
    cap = None
    try:
        info = pltpu.get_tpu_info()
        for attr in ("vmem_capacity_bytes", "vmem_size_bytes", "vmem_bytes"):
            cap = getattr(info, attr, None)
            if cap:
                break
    except Exception:
        cap = None
    if not cap:
        cap = 64 * 1024 * 1024          # conservative fallback (v7x physical)
    return int(int(cap) * 0.8)


def _pick_tiles(np_, adj_bytes, hp, budget):
    """Largest (tm, tn) row/column tile whose double-buffered working set fits
    the VMEM budget.  Column tiling keeps VMEM independent of graph size."""
    tms = [t for t in (512, 256, 128, 64, 32, 16, 8) if t <= np_ and np_ % t == 0]
    tns = [t for t in (4096, 2048, 1024, 512, 256, 128) if t <= np_ and np_ % t == 0]
    tms = tms or [np_]
    tns = tns or [np_]
    best = None
    for tm in tms:
        for tn in tns:
            blk = tm * tn
            # build kernel: 2-buffered adj + out blocks + ~2 f32 temporaries
            k3 = 2 * blk * (adj_bytes + 4) + 2 * blk * 4
            # score kernel: 2-buffered adj + xw blocks, f32 cast temp, accumulator
            k1 = 2 * blk * adj_bytes + 2 * tn * hp * 4 + blk * 4 + tm * hp * 4
            if max(k3, k1) + (2 << 20) > budget:
                continue
            key = (blk, tn)
            if best is None or key > best[0]:
                best = (key, tm, tn)
    if best is None:
        return tms[-1], tns[-1]
    return best[1], best[2]


def _stats_fused_fits(np_, adj_bytes, hp, budget):
    # whole adj resident (+ f32 cast + f32 mask temporaries) in one call
    need = np_ * np_ * (2 * adj_bytes + 12) + 4 * np_ * hp * 4 + (8 << 20)
    return need <= budget


# --------------------------------- kernels ---------------------------------

def _node_stats_kernel(adj_ref, xw_ref, b_ref, w2_ref, u_ref, v_ref, rinv_ref,
                       *, lam):
    """Fused per-node statistics with the whole adj resident (one adj pass):
    s2/deg -> softmax pieces e2/den/q/t -> rinv and the build vectors u, v."""
    n = adj_ref.shape[0]
    adj = adj_ref[...].astype(_F32)                                   # (Np, Np)
    # GCN_one; only emb . w2 survives the row-wise sparse softmax.
    emb = jnp.maximum(
        jnp.dot(adj, xw_ref[...], preferred_element_type=_F32) + b_ref[...],
        0.0)                                                          # (Np, Hp)
    s2 = jnp.sum(emb * w2_ref[...], axis=1, keepdims=True)            # (Np, 1)
    deg = jnp.sum(adj, axis=1, keepdims=True)                         # (Np, 1)
    # Global shift (exact by shift invariance); rows with no edges (incl. pad)
    # are excluded from the max and exp() is clamped <= 1.
    c = jnp.max(jnp.where(deg > 0.0, s2, -jnp.inf))
    e2 = jnp.exp(jnp.minimum(s2 - c, 0.0))                            # (Np, 1)
    mask = (adj != 0.0).astype(_F32)
    # den_i = sum_j mask_ij e2_j ; t_i = sum_j mask_ij q_j.  Lane-broadcast the
    # per-node vector so the contraction is a standard (Np,Np)x(Np,128) matmul.
    den = jnp.dot(mask, jnp.broadcast_to(e2, (n, 128)),
                  preferred_element_type=_F32)[:, :1]                 # (Np, 1)
    has_edge = den > 0.0
    q = jnp.where(has_edge, 1.0, 0.0) / jnp.where(has_edge, den, 1.0)
    t = jnp.dot(mask, jnp.broadcast_to(q, (n, 128)),
                preferred_element_type=_F32)[:, :1]                   # (Np, 1)
    # rowsum of 2*adj + lam*(pi + pi^T):
    #   sum_j pi_ij = [den_i > 0],  sum_j pi^T_ij = e2_i * t_i
    rowsum = 2.0 * deg + lam * (has_edge.astype(_F32) + e2 * t)
    rinv = jnp.where(rowsum > 0.0, lax.rsqrt(rowsum), 0.0)
    u_ref[...] = q * rinv
    v_ref[...] = lam * (e2 * rinv)
    rinv_ref[...] = rinv


def _score_kernel(adj_ref, xw_ref, b_ref, w2_ref, s2_ref, deg_ref, acc_ref):
    """adj pass 1 (streaming): accumulate adj @ xw over column tiles; on the
    last tile finish GCN_one (bias + ReLU) and reduce to s2 = emb . w2."""
    k = pl.program_id(1)

    @pl.when(k == 0)
    def _init():
        acc_ref[...] = jnp.zeros_like(acc_ref)
        deg_ref[...] = jnp.zeros_like(deg_ref)

    adj = adj_ref[...].astype(_F32)                                   # (tm, tn)
    acc_ref[...] += jnp.dot(adj, xw_ref[...], preferred_element_type=_F32)
    deg_ref[...] += jnp.sum(adj, axis=1, keepdims=True)

    @pl.when(k == pl.num_programs(1) - 1)
    def _fin():
        emb = jnp.maximum(acc_ref[...] + b_ref[...], 0.0)             # (tm, Hp)
        s2_ref[...] = jnp.sum(emb * w2_ref[...], axis=1, keepdims=True)


def _masked_rowsum_kernel(adj_ref, vrow_ref, out_ref):
    """out_i = sum_j [adj_ij != 0] * v_j, accumulated over column tiles."""
    @pl.when(pl.program_id(1) == 0)
    def _init():
        out_ref[...] = jnp.zeros_like(out_ref)

    mask = adj_ref[...] != 0
    out_ref[...] += jnp.sum(jnp.where(mask, vrow_ref[...], 0.0),
                            axis=1, keepdims=True)


def _build_kernel(adj_ref, urow_ref, vrow_ref, rrow_ref,
                  ucol_ref, vcol_ref, r2col_ref, out_ref):
    """out = D^-1/2 (2*adj + lam*(pi + pi^T)) D^-1/2 for one (tm, tn) tile,
    with u = q*rinv, v = lam*e2*rinv, r2 = 2*rinv precomputed per node."""
    adj = adj_ref[...].astype(_F32)                                   # (tm, tn)
    mask = adj != 0.0
    cross = jnp.where(
        mask, vcol_ref[...] * urow_ref[...] + ucol_ref[...] * vrow_ref[...], 0.0)
    out_ref[...] = adj * (r2col_ref[...] * rrow_ref[...]) + cross     # lane-dense


# --------------------------------- wrapper ---------------------------------

@functools.partial(jax.jit, static_argnames=("com_lambda", "adj_bf16",
                                              "force_streaming", "tm", "tn"))
def gen_view_normalized(adj, x, indices, params, *, com_lambda,
                        adj_bf16=True, force_streaming=False, tm=None, tn=None):
    """One GenView + data.normalize.  `indices` mirrors the PyTorch interface;
    the edge mask is derived in-kernel as (adj != 0) since CoGSL passes
    v_indices == nonzero(view)."""
    del indices
    N = adj.shape[0]
    F = x.shape[1]
    H = params["w_gcn"].shape[1]
    Hp = _round_up(H, 128)
    lam = float(com_lambda)

    Np = _round_up(N, 128)
    budget = _vmem_budget_bytes()
    adj_dtype = jnp.bfloat16 if adj_bf16 else _F32
    adj_bytes = 2 if adj_bf16 else 4

    # Pad only to a multiple of 128 (decoupled from tile size); pad + narrow
    # cast fold into one XLA op.  bf16 is exact for 0/1 CoGSL views.
    if Np != N:
        adj_s = jnp.zeros((Np, Np), adj_dtype).at[:N, :N].set(adj.astype(adj_dtype))
        x_p = jnp.zeros((Np, F), _F32).at[:N, :].set(x.astype(_F32))
    else:
        adj_s = adj.astype(adj_dtype)
        x_p = x.astype(_F32)

    # Weights, hidden width padded to a lane-friendly size (zero pads are exact
    # no-ops).  params["w1"] / params["b_mlp"] cancel in the row softmax.
    w_gcn = jnp.zeros((F, Hp), _F32).at[:, :H].set(params["w_gcn"].astype(_F32))
    b_gcn = jnp.zeros((1, Hp), _F32).at[:, :H].set(
        params["b_gcn"].astype(_F32).reshape(1, H))
    w2 = jnp.zeros((1, Hp), _F32).at[:, :H].set(
        params["w2"].astype(_F32).reshape(1, H))

    # K0 dropped (review): one small (N,F)x(F,Hp) matmul is cheaper as XLA.
    xw = jnp.dot(x_p, w_gcn, precision=lax.Precision.HIGHEST)         # (Np, Hp)

    if tm is None or tn is None:
        tm_a, tn_a = _pick_tiles(Np, adj_bytes, Hp, budget)
        tm = tm_a if tm is None else tm
        tn = tn_a if tn is None else tn
    assert Np % tm == 0 and Np % tn == 0, (N, Np, tm, tn)
    nbi, nbj = Np // tm, Np // tn

    cp_whole = pltpu.CompilerParams(vmem_limit_bytes=budget)
    cp_red = pltpu.CompilerParams(dimension_semantics=("parallel", "arbitrary"),
                                  vmem_limit_bytes=budget)
    cp_par = pltpu.CompilerParams(dimension_semantics=("parallel", "parallel"),
                                  vmem_limit_bytes=budget)

    if (not force_streaming) and _stats_fused_fits(Np, adj_bytes, Hp, budget):
        # Fused node-stats path: every per-node quantity in one adj pass.
        u, v, rinv = pl.pallas_call(
            functools.partial(_node_stats_kernel, lam=lam),
            out_shape=(jax.ShapeDtypeStruct((Np, 1), _F32),
                       jax.ShapeDtypeStruct((Np, 1), _F32),
                       jax.ShapeDtypeStruct((Np, 1), _F32)),
            compiler_params=cp_whole,
        )(adj_s, xw, b_gcn, w2)
    else:
        # Streaming path: column-tiled accumulating passes over adj.
        s2, deg = pl.pallas_call(
            _score_kernel,
            grid=(nbi, nbj),
            in_specs=[pl.BlockSpec((tm, tn), lambda i, k: (i, k)),
                      pl.BlockSpec((tn, Hp), lambda i, k: (k, 0)),
                      pl.BlockSpec((1, Hp), lambda i, k: (0, 0)),
                      pl.BlockSpec((1, Hp), lambda i, k: (0, 0))],
            out_specs=(pl.BlockSpec((tm, 1), lambda i, k: (i, 0)),
                       pl.BlockSpec((tm, 1), lambda i, k: (i, 0))),
            out_shape=(jax.ShapeDtypeStruct((Np, 1), _F32),
                       jax.ShapeDtypeStruct((Np, 1), _F32)),
            scratch_shapes=[pltpu.VMEM((tm, Hp), _F32)],
            compiler_params=cp_red,
        )(adj_s, xw, b_gcn, w2)

        def masked_rowsum(vrow):
            return pl.pallas_call(
                _masked_rowsum_kernel,
                grid=(nbi, nbj),
                in_specs=[pl.BlockSpec((tm, tn), lambda i, k: (i, k)),
                          pl.BlockSpec((1, tn), lambda i, k: (0, k))],
                out_specs=pl.BlockSpec((tm, 1), lambda i, k: (i, 0)),
                out_shape=jax.ShapeDtypeStruct((Np, 1), _F32),
                compiler_params=cp_red,
            )(adj_s, vrow)

        # O(N) vector glue (exact shift-invariant softmax pieces).
        c = jnp.max(jnp.where(deg > 0.0, s2, -jnp.inf))
        e2 = jnp.exp(jnp.minimum(s2 - c, 0.0))                        # (Np, 1)
        den = masked_rowsum(e2.reshape(1, Np))                        # adj pass 2
        has_edge = den > 0.0
        q = jnp.where(has_edge, 1.0, 0.0) / jnp.where(has_edge, den, 1.0)
        t = masked_rowsum(q.reshape(1, Np))                           # adj pass 3
        rowsum = 2.0 * deg + lam * (has_edge.astype(_F32) + e2 * t)
        rinv = jnp.where(rowsum > 0.0, lax.rsqrt(rowsum), 0.0)
        u = q * rinv
        v = lam * (e2 * rinv)

    # Final adj pass: the only N^2 output write, lane-dense (tm, tn) tiles.
    r2 = 2.0 * rinv
    out = pl.pallas_call(
        _build_kernel,
        grid=(nbi, nbj),
        in_specs=[pl.BlockSpec((tm, tn), lambda i, j: (i, j)),
                  pl.BlockSpec((1, tn), lambda i, j: (0, j)),
                  pl.BlockSpec((1, tn), lambda i, j: (0, j)),
                  pl.BlockSpec((1, tn), lambda i, j: (0, j)),
                  pl.BlockSpec((tm, 1), lambda i, j: (i, 0)),
                  pl.BlockSpec((tm, 1), lambda i, j: (i, 0)),
                  pl.BlockSpec((tm, 1), lambda i, j: (i, 0))],
        out_specs=pl.BlockSpec((tm, tn), lambda i, j: (i, j)),
        out_shape=jax.ShapeDtypeStruct((Np, Np), _F32),
        compiler_params=cp_par,
    )(adj_s, u.reshape(1, Np), v.reshape(1, Np), rinv.reshape(1, Np), u, v, r2)

    return out[:N, :N] if Np != N else out


def view_estimator_forward(data, params_v1, params_v2, lam1, lam2, **kw):
    new_v1 = gen_view_normalized(data["view1"], data["x"], data["v1_indices"],
                                 params_v1, com_lambda=float(lam1), **kw)
    new_v2 = gen_view_normalized(data["view2"], data["x"], data["v2_indices"],
                                 params_v2, com_lambda=float(lam2), **kw)
    return new_v1, new_v2


# ---------------- pure numpy reference for correctness check ----------------
def _reference(adj, x, indices, params, com_lambda):
    adj = np.asarray(adj, np.float32)
    x = np.asarray(x, np.float32)
    W = np.asarray(params["w_gcn"], np.float32)
    b = np.asarray(params["b_gcn"], np.float32)
    emb = np.maximum(adj @ (x @ W) + b, 0.0)
    w1 = np.asarray(params["w1"], np.float32)[:, 0]
    w2 = np.asarray(params["w2"], np.float32)[:, 0]
    src = np.asarray(indices[0])
    dst = np.asarray(indices[1])
    temp = emb[src] @ w1 + emb[dst] @ w2 + float(params["b_mlp"])
    N = adj.shape[0]
    pi = np.zeros((N, N), np.float32)
    for i in range(N):
        sel = src == i
        if not sel.any():
            continue
        vals = temp[sel]
        ex = np.exp(vals - vals.max())
        pi[i, dst[sel]] = ex / ex.sum()
    gen_v = adj + float(com_lambda) * pi
    M = gen_v + gen_v.T
    rowsum = M.sum(1)
    rinv = np.where(rowsum > 0, rowsum ** -0.5, 0.0)
    return rinv[:, None] * M * rinv[None, :]


if __name__ == "__main__":
    key = jax.random.PRNGKey(0)
    N, F, H = 256, 64, 32                    # num_node, num_feature, gen_hid
    ks = jax.random.split(key, 6)
    x = jax.random.normal(ks[0], (N, F), jnp.float32)

    def make_view(k):
        a = (jax.random.uniform(k, (N, N)) < 0.08).astype(jnp.float32)
        a = jnp.maximum(a, a.T)                                  # symmetric (CoGSL)
        a = a.at[jnp.arange(N), jnp.arange(N)].set(1.0)          # self loops
        idx = np.nonzero(np.asarray(a))
        return a, (jnp.asarray(idx[0], jnp.int32), jnp.asarray(idx[1], jnp.int32))

    view1, v1_idx = make_view(ks[1])
    view2, v2_idx = make_view(ks[2])

    def init_genview(k):
        k1, k2 = jax.random.split(k)
        w_gcn = jax.random.normal(k1, (F, H), jnp.float32) * (0.5 * np.sqrt(2.0 / (F + H)))
        b_gcn = jnp.zeros((1, H), jnp.float32)
        # gen_mlp: Linear(2H, 1), xavier_normal gain=1.414
        w_mlp = jax.random.normal(k2, (2 * H,), jnp.float32) * (1.414 * np.sqrt(2.0 / (2 * H + 1)))
        return {"w_gcn": w_gcn, "b_gcn": b_gcn,
                "w1": w_mlp[:H].reshape(H, 1), "w2": w_mlp[H:].reshape(H, 1),
                "b_mlp": 0.0}

    p1 = init_genview(ks[3])
    p2 = init_genview(ks[4])
    lam1, lam2 = 1.0, 0.7

    data = {"x": x, "view1": view1, "view2": view2,
            "v1_indices": v1_idx, "v2_indices": v2_idx}

    # Default dispatch: fused resident-adj node-stats path at this size.
    v1a, v2a = view_estimator_forward(data, p1, p2, lam1, lam2)
    # Forced streaming path with small tiles so the column-tiled 2-D grids
    # (accumulating score / rowsum kernels, 2x2 build grid) are exercised too.
    v1b, v2b = view_estimator_forward(data, p1, p2, lam1, lam2,
                                      force_streaming=True, tm=128, tn=128)
    jax.block_until_ready((v1a, v2a, v1b, v2b))

    ref1 = _reference(view1, x, v1_idx, p1, lam1)
    ref2 = _reference(view2, x, v2_idx, p2, lam2)
    for got, ref in ((v1a, ref1), (v2a, ref2), (v1b, ref1), (v2b, ref2)):
        got = np.asarray(got)
        err = float(np.max(np.abs(got - ref)))
        assert np.allclose(got, ref, rtol=1e-2, atol=1e-3), err
    print("KERNEL_OK")
</pallas_src>

<mosaic_0001>
module attributes {stable_mosaic.version = 11 : i64} {
  func.func @_node_stats_kernel(%arg0: memref<256x256xbf16, #tpu.memory_space<vmem>>, %arg1: memref<256x128xf32, #tpu.memory_space<vmem>>, %arg2: memref<1x128xf32, #tpu.memory_space<vmem>>, %arg3: memref<1x128xf32, #tpu.memory_space<vmem>>, %arg4: memref<256x1xf32, #tpu.memory_space<vmem>>, %arg5: memref<256x1xf32, #tpu.memory_space<vmem>>, %arg6: memref<256x1xf32, #tpu.memory_space<vmem>>) attributes {dimension_semantics = [], scalar_prefetch = 0 : i64, scratch_operands = 0 : i64, tpu.core_type = #tpu.core_type<tc>} {
    %c0 = arith.constant 0 : index
    %c0_0 = arith.constant 0 : index
    %0 = vector.load %arg0[%c0, %c0_0] : memref<256x256xbf16, #tpu.memory_space<vmem>>, vector<256x256xbf16>
    %1 = arith.extf %0 : vector<256x256xbf16> to vector<256x256xf32>
    %c0_1 = arith.constant 0 : index
    %c0_2 = arith.constant 0 : index
    %2 = vector.load %arg1[%c0_1, %c0_2] : memref<256x128xf32, #tpu.memory_space<vmem>>, vector<256x128xf32>
    %cst = arith.constant dense<0.000000e+00> : vector<256x128xf32>
    %3 = tpu.matmul %1, %2, %cst {dimension_numbers = #tpu.dot_dimension_numbers<[1], [0], [0], [1], [0, 0, 1, 1], [], []>} : vector<256x256xf32>, vector<256x128xf32>, vector<256x128xf32> -> vector<256x128xf32>
    %c0_3 = arith.constant 0 : index
    %c0_4 = arith.constant 0 : index
    %4 = vector.load %arg2[%c0_3, %c0_4] : memref<1x128xf32, #tpu.memory_space<vmem>>, vector<1x128xf32>
    %5 = vector.broadcast %4 : vector<1x128xf32> to vector<256x128xf32>
    %6 = arith.addf %3, %5 : vector<256x128xf32>
    %cst_5 = arith.constant 0.000000e+00 : f32
    %7 = vector.broadcast %cst_5 : f32 to vector<256x128xf32>
    %8 = arith.maximumf %6, %7 : vector<256x128xf32>
    %c0_6 = arith.constant 0 : index
    %c0_7 = arith.constant 0 : index
    %9 = vector.load %arg3[%c0_6, %c0_7] : memref<1x128xf32, #tpu.memory_space<vmem>>, vector<1x128xf32>
    %10 = vector.broadcast %9 : vector<1x128xf32> to vector<256x128xf32>
    %11 = arith.mulf %8, %10 : vector<256x128xf32>
    %cst_8 = arith.constant dense<0.000000e+00> : vector<256xf32>
    %12 = vector.multi_reduction <add>, %11, %cst_8 [1] : vector<256x128xf32> to vector<256xf32>
    %13 = vector.shape_cast %12 : vector<256xf32> to vector<256x1xf32>
    %cst_9 = arith.constant dense<0.000000e+00> : vector<256xf32>
    %14 = vector.multi_reduction <add>, %1, %cst_9 [1] : vector<256x256xf32> to vector<256xf32>
    %15 = vector.shape_cast %14 : vector<256xf32> to vector<256x1xf32>
    %cst_10 = arith.constant 0.000000e+00 : f32
    %16 = vector.broadcast %cst_10 : f32 to vector<256x1xf32>
    %17 = arith.cmpf ogt, %15, %16 : vector<256x1xf32>
    %cst_11 = arith.constant 0xFF800000 : f32
    %18 = vector.broadcast %cst_11 : f32 to vector<256x1xf32>
    %19 = arith.select %17, %13, %18 : vector<256x1xi1>, vector<256x1xf32>
    %20 = vector.shape_cast %19 : vector<256x1xf32> to vector<1x256x1xf32>
    %cst_12 = arith.constant dense<0xFF800000> : vector<1xf32>
    %21 = vector.multi_reduction <maximumf>, %20, %cst_12 [1, 2] : vector<1x256x1xf32> to vector<1xf32>
    %22 = vector.shape_cast %21 : vector<1xf32> to vector<1x1x1xf32>
    %23 = vector.extract %22[0, 0, 0] : f32 from vector<1x1x1xf32>
    %24 = vector.broadcast %23 : f32 to vector<256x1xf32>
    %25 = arith.subf %13, %24 : vector<256x1xf32>
    %cst_13 = arith.constant 0.000000e+00 : f32
    %26 = vector.broadcast %cst_13 : f32 to vector<256x1xf32>
    %27 = arith.minimumf %25, %26 : vector<256x1xf32>
    %28 = math.exp %27 : vector<256x1xf32>
    %cst_14 = arith.constant 0.000000e+00 : f32
    %29 = vector.broadcast %cst_14 : f32 to vector<256x256xf32>
    %30 = arith.cmpf one, %1, %29 : vector<256x256xf32>
    %31 = arith.extui %30 : vector<256x256xi1> to vector<256x256xi32>
    %32 = arith.sitofp %31 : vector<256x256xi32> to vector<256x256xf32>
    %33 = vector.shape_cast %28 : vector<256x1xf32> to vector<256x1xf32>
    %34 = vector.broadcast %33 : vector<256x1xf32> to vector<256x128xf32>
    %cst_15 = arith.constant dense<0.000000e+00> : vector<256x128xf32>
    %35 = tpu.matmul %32, %34, %cst_15 {dimension_numbers = #tpu.dot_dimension_numbers<[1], [0], [0], [1], [0, 0, 1, 1], [], []>} : vector<256x256xf32>, vector<256x128xf32>, vector<256x128xf32> -> vector<256x128xf32>
    %36 = vector.extract_strided_slice %35 {offsets = [0, 0], sizes = [256, 1], strides = [1, 1]} : vector<256x128xf32> to vector<256x1xf32>
    %cst_16 = arith.constant 0.000000e+00 : f32
    %37 = vector.broadcast %cst_16 : f32 to vector<256x1xf32>
    %38 = arith.cmpf ogt, %36, %37 : vector<256x1xf32>
    %cst_17 = arith.constant 1.000000e+00 : f32
    %cst_18 = arith.constant 0.000000e+00 : f32
    %39 = vector.broadcast %cst_17 : f32 to vector<256x1xf32>
    %40 = vector.broadcast %cst_18 : f32 to vector<256x1xf32>
    %41 = arith.select %38, %39, %40 : vector<256x1xi1>, vector<256x1xf32>
    %cst_19 = arith.constant 1.000000e+00 : f32
    %42 = vector.broadcast %cst_19 : f32 to vector<256x1xf32>
    %43 = arith.select %38, %36, %42 : vector<256x1xi1>, vector<256x1xf32>
    %44 = arith.divf %41, %43 : vector<256x1xf32>
    %45 = vector.shape_cast %44 : vector<256x1xf32> to vector<256x1xf32>
    %46 = vector.broadcast %45 : vector<256x1xf32> to vector<256x128xf32>
    %cst_20 = arith.constant dense<0.000000e+00> : vector<256x128xf32>
    %47 = tpu.matmul %32, %46, %cst_20 {dimension_numbers = #tpu.dot_dimension_numbers<[1], [0], [0], [1], [0, 0, 1, 1], [], []>} : vector<256x256xf32>, vector<256x128xf32>, vector<256x128xf32> -> vector<256x128xf32>
    %48 = vector.extract_strided_slice %47 {offsets = [0, 0], sizes = [256, 1], strides = [1, 1]} : vector<256x128xf32> to vector<256x1xf32>
    %cst_21 = arith.constant 2.000000e+00 : f32
    %49 = vector.broadcast %cst_21 : f32 to vector<256x1xf32>
    %50 = arith.mulf %49, %15 : vector<256x1xf32>
    %51 = arith.extui %38 : vector<256x1xi1> to vector<256x1xi32>
    %52 = arith.sitofp %51 : vector<256x1xi32> to vector<256x1xf32>
    %53 = arith.mulf %28, %48 : vector<256x1xf32>
    %54 = arith.addf %52, %53 : vector<256x1xf32>
    %cst_22 = arith.constant 1.000000e+00 : f32
    %55 = vector.broadcast %cst_22 : f32 to vector<256x1xf32>
    %56 = arith.mulf %55, %54 : vector<256x1xf32>
    %57 = arith.addf %50, %56 : vector<256x1xf32>
    %cst_23 = arith.constant 0.000000e+00 : f32
    %58 = vector.broadcast %cst_23 : f32 to vector<256x1xf32>
    %59 = arith.cmpf ogt, %57, %58 : vector<256x1xf32>
    %60 = math.rsqrt %57 : vector<256x1xf32>
    %cst_24 = arith.constant 0.000000e+00 : f32
    %61 = vector.broadcast %cst_24 : f32 to vector<256x1xf32>
    %62 = arith.select %59, %60, %61 : vector<256x1xi1>, vector<256x1xf32>
    %63 = arith.mulf %44, %62 : vector<256x1xf32>
    %c0_25 = arith.constant 0 : index
    %c0_26 = arith.constant 0 : index
    %64 = vector.load %arg4[%c0_25, %c0_26] : memref<256x1xf32, #tpu.memory_space<vmem>>, vector<256x1xf32>
    tpu.vector_store %arg4[%c0_25, %c0_26], %63 {strides = array<i32>} : memref<256x1xf32, #tpu.memory_space<vmem>>, vector<256x1xf32>,
    %65 = arith.mulf %28, %62 : vector<256x1xf32>
    %cst_27 = arith.constant 1.000000e+00 : f32
    %66 = vector.broadcast %cst_27 : f32 to vector<256x1xf32>
    %67 = arith.mulf %66, %65 : vector<256x1xf32>
    %c0_28 = arith.constant 0 : index
    %c0_29 = arith.constant 0 : index
    %68 = vector.load %arg5[%c0_28, %c0_29] : memref<256x1xf32, #tpu.memory_space<vmem>>, vector<256x1xf32>
    tpu.vector_store %arg5[%c0_28, %c0_29], %67 {strides = array<i32>} : memref<256x1xf32, #tpu.memory_space<vmem>>, vector<256x1xf32>,
    %c0_30 = arith.constant 0 : index
    %c0_31 = arith.constant 0 : index
    %69 = vector.load %arg6[%c0_30, %c0_31] : memref<256x1xf32, #tpu.memory_space<vmem>>, vector<256x1xf32>
    tpu.vector_store %arg6[%c0_30, %c0_31], %62 {strides = array<i32>} : memref<256x1xf32, #tpu.memory_space<vmem>>, vector<256x1xf32>,
    return
  }
}

module attributes {stable_mosaic.version = 11 : i64} {
  func.func @_build_kernel(%arg0: i32, %arg1: i32, %arg2: memref<256x256xbf16, #tpu.memory_space<vmem>>, %arg3: memref<1x256xf32, #tpu.memory_space<vmem>>, %arg4: memref<1x256xf32, #tpu.memory_space<vmem>>, %arg5: memref<1x256xf32, #tpu.memory_space<vmem>>, %arg6: memref<256x1xf32, #tpu.memory_space<vmem>>, %arg7: memref<256x1xf32, #tpu.memory_space<vmem>>, %arg8: memref<256x1xf32, #tpu.memory_space<vmem>>, %arg9: memref<256x256xf32, #tpu.memory_space<vmem>>) attributes {dimension_semantics = [#tpu.dimension_semantics<parallel>, #tpu.dimension_semantics<parallel>], iteration_bounds = array<i64: 1, 1>, scalar_prefetch = 0 : i64, scratch_operands = 0 : i64, tpu.core_type = #tpu.core_type<tc>, window_params = [{transform_indices = @transform_0, window_bounds = array<i64: 256, 256>}, {transform_indices = @transform_1, window_bounds = array<i64: 1, 256>}, {transform_indices = @transform_2, window_bounds = array<i64: 1, 256>}, {transform_indices = @transform_3, window_bounds = array<i64: 1, 256>}, {transform_indices = @transform_4, window_bounds = array<i64: 256, 1>}, {transform_indices = @transform_5, window_bounds = array<i64: 256, 1>}, {transform_indices = @transform_6, window_bounds = array<i64: 256, 1>}, {transform_indices = @transform_7, window_bounds = array<i64: 256, 256>}]} {
    %c0 = arith.constant 0 : index
    %c0_0 = arith.constant 0 : index
    %0 = vector.load %arg2[%c0, %c0_0] : memref<256x256xbf16, #tpu.memory_space<vmem>>, vector<256x256xbf16>
    %1 = arith.extf %0 : vector<256x256xbf16> to vector<256x256xf32>
    %cst = arith.constant 0.000000e+00 : f32
    %2 = vector.broadcast %cst : f32 to vector<256x256xf32>
    %3 = arith.cmpf one, %1, %2 : vector<256x256xf32>
    %c0_1 = arith.constant 0 : index
    %c0_2 = arith.constant 0 : index
    %4 = vector.load %arg7[%c0_1, %c0_2] : memref<256x1xf32, #tpu.memory_space<vmem>>, vector<256x1xf32>
    %c0_3 = arith.constant 0 : index
    %c0_4 = arith.constant 0 : index
    %5 = vector.load %arg3[%c0_3, %c0_4] : memref<1x256xf32, #tpu.memory_space<vmem>>, vector<1x256xf32>
    %6 = vector.broadcast %4 : vector<256x1xf32> to vector<256x256xf32>
    %7 = vector.broadcast %5 : vector<1x256xf32> to vector<256x256xf32>
    %8 = arith.mulf %6, %7 : vector<256x256xf32>
    %c0_5 = arith.constant 0 : index
    %c0_6 = arith.constant 0 : index
    %9 = vector.load %arg6[%c0_5, %c0_6] : memref<256x1xf32, #tpu.memory_space<vmem>>, vector<256x1xf32>
    %c0_7 = arith.constant 0 : index
    %c0_8 = arith.constant 0 : index
    %10 = vector.load %arg4[%c0_7, %c0_8] : memref<1x256xf32, #tpu.memory_space<vmem>>, vector<1x256xf32>
    %11 = vector.broadcast %9 : vector<256x1xf32> to vector<256x256xf32>
    %12 = vector.broadcast %10 : vector<1x256xf32> to vector<256x256xf32>
    %13 = arith.mulf %11, %12 : vector<256x256xf32>
    %14 = arith.addf %8, %13 : vector<256x256xf32>
    %cst_9 = arith.constant 0.000000e+00 : f32
    %15 = vector.broadcast %cst_9 : f32 to vector<256x256xf32>
    %16 = arith.select %3, %14, %15 : vector<256x256xi1>, vector<256x256xf32>
    %c0_10 = arith.constant 0 : index
    %c0_11 = arith.constant 0 : index
    %17 = vector.load %arg8[%c0_10, %c0_11] : memref<256x1xf32, #tpu.memory_space<vmem>>, vector<256x1xf32>
    %c0_12 = arith.constant 0 : index
    %c0_13 = arith.constant 0 : index
    %18 = vector.load %arg5[%c0_12, %c0_13] : memref<1x256xf32, #tpu.memory_space<vmem>>, vector<1x256xf32>
    %19 = vector.broadcast %17 : vector<256x1xf32> to vector<256x256xf32>
    %20 = vector.broadcast %18 : vector<1x256xf32> to vector<256x256xf32>
    %21 = arith.mulf %19, %20 : vector<256x256xf32>
    %22 = arith.mulf %1, %21 : vector<256x256xf32>
    %23 = arith.addf %22, %16 : vector<256x256xf32>
    %c0_14 = arith.constant 0 : index
    %c0_15 = arith.constant 0 : index
    %24 = vector.load %arg9[%c0_14, %c0_15] : memref<256x256xf32, #tpu.memory_space<vmem>>, vector<256x256xf32>
    tpu.vector_store %arg9[%c0_14, %c0_15], %23 {strides = array<i32>} : memref<256x256xf32, #tpu.memory_space<vmem>>, vector<256x256xf32>,
    return
  }
  func.func @transform_0(%arg0: i32, %arg1: i32) -> (i32, i32) {
    %c0_i32 = arith.constant 0 : i32
    return %arg0, %arg1 : i32, i32
  }
  func.func @transform_1(%arg0: i32, %arg1: i32) -> (i32, i32) {
    %c0_i32 = arith.constant 0 : i32
    %c0_i32_0 = arith.constant 0 : i32
    return %c0_i32, %arg1 : i32, i32
  }
  func.func @transform_2(%arg0: i32, %arg1: i32) -> (i32, i32) {
    %c0_i32 = arith.constant 0 : i32
    %c0_i32_0 = arith.constant 0 : i32
    return %c0_i32, %arg1 : i32, i32
  }
  func.func @transform_3(%arg0: i32, %arg1: i32) -> (i32, i32) {
    %c0_i32 = arith.constant 0 : i32
    %c0_i32_0 = arith.constant 0 : i32
    return %c0_i32, %arg1 : i32, i32
  }
  func.func @transform_4(%arg0: i32, %arg1: i32) -> (i32, i32) {
    %c0_i32 = arith.constant 0 : i32
    %c0_i32_0 = arith.constant 0 : i32
    return %arg0, %c0_i32 : i32, i32
  }
  func.func @transform_5(%arg0: i32, %arg1: i32) -> (i32, i32) {
    %c0_i32 = arith.constant 0 : i32
    %c0_i32_0 = arith.constant 0 : i32
    return %arg0, %c0_i32 : i32, i32
  }
  func.func @transform_6(%arg0: i32, %arg1: i32) -> (i32, i32) {
    %c0_i32 = arith.constant 0 : i32
    %c0_i32_0 = arith.constant 0 : i32
    return %arg0, %c0_i32 : i32, i32
  }
  func.func @transform_7(%arg0: i32, %arg1: i32) -> (i32, i32) {
    %c0_i32 = arith.constant 0 : i32
    return %arg0, %arg1 : i32, i32
  }
}

</mosaic_0001>

<llo_original>
// kernel: gen_view_normalized.3
$region0: #{gen_view_normalized.3}
  #allocation0 [shape = 'u32[]', space=smem, size = 0x4, offset = 0x4, fixed_abs, tag = 'smem constant byte address 0x4 - core index']
  #allocation1 [shape = 'u32[144,128]{1,0:T(1,128)}', space=vmem, size = 0x12000, scoped, tag = 'internal scratch']
  %s0 = inlined_call_operand.vmem [shape: bf16[256,256], index: 0, kind: input, shape index: {}]
  %s1 = inlined_call_operand.vmem [shape: f32[1,256], index: 1, kind: input, shape index: {}]
  %s2 = inlined_call_operand.vmem [shape: f32[1,256], index: 2, kind: input, shape index: {}]
  %s3 = inlined_call_operand.vmem [shape: f32[1,256], index: 3, kind: input, shape index: {}]
  %s4 = inlined_call_operand.vmem [shape: f32[256,1], index: 4, kind: input, shape index: {}]
  %s5 = inlined_call_operand.vmem [shape: f32[256,1], index: 5, kind: input, shape index: {}]
  %s6 = inlined_call_operand.vmem [shape: f32[256,1], index: 6, kind: input, shape index: {}]
  %s7 = inlined_call_operand.hbm [shape: f32[256,256], index: 7, kind: output, shape index: {}]
  %s8 = sld [smem:[#allocation0]]
  $region38: #{gen_view_normalized.3} parent=0
    _
  %s10 = ssub.s32 1, %s8
  %s11 = scalar_select 0, %s10, %s8
  $region1: #{gen_view_normalized.3} parent=0
    #allocation2 [shape = 'u8[262144]{0}', space=vmem, size = 0x40000, scoped, tag = 'output window, operand 0, single buffered']
    #allocation3 [shape = 's32[1]{0}', space=sflag, size = 0x4, scoped, tag = 'scoped memory for gen_view_normalized.3']
    %12 = vsyncpa [#allocation3], 0
    // Predicated region
    $region2: #{gen_view_normalized.3} parent=1 // pred_check
      _
    $region3: #{gen_view_normalized.3} parent=1 // pred_check_branch
      %14 = sbr.rel (0) target = $region5
    $region4: #{gen_view_normalized.3} parent=1 // pred_region
      _
    $region5: #{gen_view_normalized.3} parent=1 // pred_fallthru
      _
    // Predicated region
    $region6: #{gen_view_normalized.3} parent=1 // pred_check
      _
    $region7: #{gen_view_normalized.3} parent=1 // pred_check_branch
      %16 = sbr.rel (0) target = $region9
    $region8: #{gen_view_normalized.3} parent=1 // pred_region
      _
    $region9: #{gen_view_normalized.3} parent=1 // pred_fallthru
      _
    // Predicated region
    $region10: #{gen_view_normalized.3} parent=1 // pred_check
      _
    $region11: #{gen_view_normalized.3} parent=1 // pred_check_branch
      %18 = sbr.rel (0) target = $region13
    $region12: #{gen_view_normalized.3} parent=1 // pred_region
      _
    $region13: #{gen_view_normalized.3} parent=1 // pred_fallthru
      _
    // Predicated region
    $region14: #{gen_view_normalized.3} parent=1 // pred_check
      _
    $region15: #{gen_view_normalized.3} parent=1 // pred_check_branch
      %20 = sbr.rel (0) target = $region17
    $region16: #{gen_view_normalized.3} parent=1 // pred_region
      _
    $region17: #{gen_view_normalized.3} parent=1 // pred_fallthru
      _
    // Predicated region
    $region18: #{gen_view_normalized.3} parent=1 // pred_check
      _
    $region19: #{gen_view_normalized.3} parent=1 // pred_check_branch
      %22 = sbr.rel (0) target = $region21
    $region20: #{gen_view_normalized.3} parent=1 // pred_region
      _
    $region21: #{gen_view_normalized.3} parent=1 // pred_fallthru
      _
    // Predicated region
    $region22: #{gen_view_normalized.3} parent=1 // pred_check
      _
    $region23: #{gen_view_normalized.3} parent=1 // pred_check_branch
      %24 = sbr.rel (0) target = $region25
    $region24: #{gen_view_normalized.3} parent=1 // pred_region
      _
    $region25: #{gen_view_normalized.3} parent=1 // pred_fallthru
      _
    // Predicated region
    $region26: #{gen_view_normalized.3} parent=1 // pred_check
      _
    $region27: #{gen_view_normalized.3} parent=1 // pred_check_branch
      %26 = sbr.rel (0) target = $region29
    $region28: #{gen_view_normalized.3} parent=1 // pred_region
      _
    $region29: #{gen_view_normalized.3} parent=1 // pred_fallthru
      _
    %v27 = vld [vmem:[%s0] sm:$0xff]
    %v28 = vld [vmem:[%s0 + $0x8] sm:$0xff]
    %v29 = vld [vmem:[%s0 + $0x10] sm:$0xff]
    %v30 = vld [vmem:[%s0 + $0x18] sm:$0xff]
    %v31 = vld [vmem:[%s0 + $0x20] sm:$0xff]
    %v32 = vld [vmem:[%s0 + $0x28] sm:$0xff]
    %v33 = vld [vmem:[%s0 + $0x30] sm:$0xff]
    %v34 = vld [vmem:[%s0 + $0x38] sm:$0xff]
    %v35 = vld [vmem:[%s0 + $0x40] sm:$0xff]
    %v36 = vld [vmem:[%s0 + $0x48] sm:$0xff]
    %v37 = vld [vmem:[%s0 + $0x50] sm:$0xff]
    %v38 = vld [vmem:[%s0 + $0x58] sm:$0xff]
    %v39 = vld [vmem:[%s0 + $0x60] sm:$0xff]
    %v40 = vld [vmem:[%s0 + $0x68] sm:$0xff]
    %v41 = vld [vmem:[%s0 + $0x70] sm:$0xff]
    %v42 = vld [vmem:[%s0 + $0x78] sm:$0xff]
    %v43 = vld [vmem:[%s0 + $0x80] sm:$0xff]
    %v44 = vld [vmem:[%s0 + $0x88] sm:$0xff]
    %v45 = vld [vmem:[%s0 + $0x90] sm:$0xff]
    %v46 = vld [vmem:[%s0 + $0x98] sm:$0xff]
    %v47 = vld [vmem:[%s0 + $0xa0] sm:$0xff]
    %v48 = vld [vmem:[%s0 + $0xa8] sm:$0xff]
    %v49 = vld [vmem:[%s0 + $0xb0] sm:$0xff]
    %v50 = vld [vmem:[%s0 + $0xb8] sm:$0xff]
    %v51 = vld [vmem:[%s0 + $0xc0] sm:$0xff]
    %v52 = vld [vmem:[%s0 + $0xc8] sm:$0xff]
    %v53 = vld [vmem:[%s0 + $0xd0] sm:$0xff]
    %v54 = vld [vmem:[%s0 + $0xd8] sm:$0xff]
    %v55 = vld [vmem:[%s0 + $0xe0] sm:$0xff]
    %v56 = vld [vmem:[%s0 + $0xe8] sm:$0xff]
    %v57 = vld [vmem:[%s0 + $0xf0] sm:$0xff]
    %v58 = vld [vmem:[%s0 + $0xf8] sm:$0xff]
    %v59 = vunpack.c.l.bf16 %v27
    %v60 = vunpack.c.h.bf16 %v27
    %v61 = vunpack.c.l.bf16 %v28
    %v62 = vunpack.c.h.bf16 %v28
    %v63 = vunpack.c.l.bf16 %v29
    %v64 = vunpack.c.h.bf16 %v29
    %v65 = vunpack.c.l.bf16 %v30
    %v66 = vunpack.c.h.bf16 %v30
    %v67 = vunpack.c.l.bf16 %v31
    %v68 = vunpack.c.h.bf16 %v31
    %v69 = vunpack.c.l.bf16 %v32
    %v70 = vunpack.c.h.bf16 %v32
    %v71 = vunpack.c.l.bf16 %v33
    %v72 = vunpack.c.h.bf16 %v33
    %v73 = vunpack.c.l.bf16 %v34
    %v74 = vunpack.c.h.bf16 %v34
    %v75 = vunpack.c.l.bf16 %v35
    %v76 = vunpack.c.h.bf16 %v35
    %v77 = vunpack.c.l.bf16 %v36
    %v78 = vunpack.c.h.bf16 %v36
    %v79 = vunpack.c.l.bf16 %v37
    %v80 = vunpack.c.h.bf16 %v37
    %v81 = vunpack.c.l.bf16 %v38
    %v82 = vunpack.c.h.bf16 %v38
    %v83 = vunpack.c.l.bf16 %v39
    %v84 = vunpack.c.h.bf16 %v39
    %v85 = vunpack.c.l.bf16 %v40
    %v86 = vunpack.c.h.bf16 %v40
    %v87 = vunpack.c.l.bf16 %v41
    %v88 = vunpack.c.h.bf16 %v41
    %v89 = vunpack.c.l.bf16 %v42
    %v90 = vunpack.c.h.bf16 %v42
    %v91 = vunpack.c.l.bf16 %v43
    %v92 = vunpack.c.h.bf16 %v43
    %v93 = vunpack.c.l.bf16 %v44
    %v94 = vunpack.c.h.bf16 %v44
    %v95 = vunpack.c.l.bf16 %v45
    %v96 = vunpack.c.h.bf16 %v45
    %v97 = vunpack.c.l.bf16 %v46
    %v98 = vunpack.c.h.bf16 %v46
    %v99 = vunpack.c.l.bf16 %v47
    %v100 = vunpack.c.h.bf16 %v47
    %v101 = vunpack.c.l.bf16 %v48
    %v102 = vunpack.c.h.bf16 %v48
    %v103 = vunpack.c.l.bf16 %v49
    %v104 = vunpack.c.h.bf16 %v49
    %v105 = vunpack.c.l.bf16 %v50
    %v106 = vunpack.c.h.bf16 %v50
    %v107 = vunpack.c.l.bf16 %v51
    %v108 = vunpack.c.h.bf16 %v51
    %v109 = vunpack.c.l.bf16 %v52
    %v110 = vunpack.c.h.bf16 %v52
    %v111 = vunpack.c.l.bf16 %v53
    %v112 = vunpack.c.h.bf16 %v53
    %v113 = vunpack.c.l.bf16 %v54
    %v114 = vunpack.c.h.bf16 %v54
    %v115 = vunpack.c.l.bf16 %v55
    %v116 = vunpack.c.h.bf16 %v55
    %v117 = vunpack.c.l.bf16 %v56
    %v118 = vunpack.c.h.bf16 %v56
    %v119 = vunpack.c.l.bf16 %v57
    %v120 = vunpack.c.h.bf16 %v57
    %v121 = vunpack.c.l.bf16 %v58
    %v122 = vunpack.c.h.bf16 %v58
    %vm123 = vcmp.ne.f32.partialorder %v59, 0.0
    %vm124 = vcmp.ne.f32.partialorder %v60, 0.0
    %vm125 = vcmp.ne.f32.partialorder %v61, 0.0
    %vm126 = vcmp.ne.f32.partialorder %v62, 0.0
    %vm127 = vcmp.ne.f32.partialorder %v63, 0.0
    %vm128 = vcmp.ne.f32.partialorder %v64, 0.0
    %vm129 = vcmp.ne.f32.partialorder %v65, 0.0
    %vm130 = vcmp.ne.f32.partialorder %v66, 0.0
    %vm131 = vcmp.ne.f32.partialorder %v67, 0.0
    %vm132 = vcmp.ne.f32.partialorder %v68, 0.0
    %vm133 = vcmp.ne.f32.partialorder %v69, 0.0
    %vm134 = vcmp.ne.f32.partialorder %v70, 0.0
    %vm135 = vcmp.ne.f32.partialorder %v71, 0.0
    %vm136 = vcmp.ne.f32.partialorder %v72, 0.0
    %vm137 = vcmp.ne.f32.partialorder %v73, 0.0
    %vm138 = vcmp.ne.f32.partialorder %v74, 0.0
    %vm139 = vcmp.ne.f32.partialorder %v75, 0.0
    %vm140 = vcmp.ne.f32.partialorder %v76, 0.0
    %vm141 = vcmp.ne.f32.partialorder %v77, 0.0
    %vm142 = vcmp.ne.f32.partialorder %v78, 0.0
    %vm143 = vcmp.ne.f32.partialorder %v79, 0.0
    %vm144 = vcmp.ne.f32.partialorder %v80, 0.0
    %vm145 = vcmp.ne.f32.partialorder %v81, 0.0
    %vm146 = vcmp.ne.f32.partialorder %v82, 0.0
    %vm147 = vcmp.ne.f32.partialorder %v83, 0.0
    %vm148 = vcmp.ne.f32.partialorder %v84, 0.0
    %vm149 = vcmp.ne.f32.partialorder %v85, 0.0
    %vm150 = vcmp.ne.f32.partialorder %v86, 0.0
    %vm151 = vcmp.ne.f32.partialorder %v87, 0.0
    %vm152 = vcmp.ne.f32.partialorder %v88, 0.0
    %vm153 = vcmp.ne.f32.partialorder %v89, 0.0
    %vm154 = vcmp.ne.f32.partialorder %v90, 0.0
    %vm155 = vcmp.ne.f32.partialorder %v91, 0.0
    %vm156 = vcmp.ne.f32.partialorder %v92, 0.0
    %vm157 = vcmp.ne.f32.partialorder %v93, 0.0
    %vm158 = vcmp.ne.f32.partialorder %v94, 0.0
    %vm159 = vcmp.ne.f32.partialorder %v95, 0.0
    %vm160 = vcmp.ne.f32.partialorder %v96, 0.0
    %vm161 = vcmp.ne.f32.partialorder %v97, 0.0
    %vm162 = vcmp.ne.f32.partialorder %v98, 0.0
    %vm163 = vcmp.ne.f32.partialorder %v99, 0.0
    %vm164 = vcmp.ne.f32.partialorder %v100, 0.0
    %vm165 = vcmp.ne.f32.partialorder %v101, 0.0
    %vm166 = vcmp.ne.f32.partialorder %v102, 0.0
    %vm167 = vcmp.ne.f32.partialorder %v103, 0.0
    %vm168 = vcmp.ne.f32.partialorder %v104, 0.0
    %vm169 = vcmp.ne.f32.partialorder %v105, 0.0
    %vm170 = vcmp.ne.f32.partialorder %v106, 0.0
    %vm171 = vcmp.ne.f32.partialorder %v107, 0.0
    %vm172 = vcmp.ne.f32.partialorder %v108, 0.0
    %vm173 = vcmp.ne.f32.partialorder %v109, 0.0
    %vm174 = vcmp.ne.f32.partialorder %v110, 0.0
    %vm175 = vcmp.ne.f32.partialorder %v111, 0.0
    %vm176 = vcmp.ne.f32.partialorder %v112, 0.0
    %vm177 = vcmp.ne.f32.partialorder %v113, 0.0
    %vm178 = vcmp.ne.f32.partialorder %v114, 0.0
    %vm179 = vcmp.ne.f32.partialorder %v115, 0.0
    %vm180 = vcmp.ne.f32.partialorder %v116, 0.0
    %vm181 = vcmp.ne.f32.partialorder %v117, 0.0
    %vm182 = vcmp.ne.f32.partialorder %v118, 0.0
    %vm183 = vcmp.ne.f32.partialorder %v119, 0.0
    %vm184 = vcmp.ne.f32.partialorder %v120, 0.0
    %vm185 = vcmp.ne.f32.partialorder %v121, 0.0
    %vm186 = vcmp.ne.f32.partialorder %v122, 0.0
    %v187 = vld [vmem:[%s5] sm:$0xff]
    %v188 = vld [vmem:[%s5 + $0x8] sm:$0xff]
    %v189 = vld [vmem:[%s5 + $0x10] sm:$0xff]
    %v190 = vld [vmem:[%s5 + $0x18] sm:$0xff]
    %v191 = vld [vmem:[%s5 + $0x20] sm:$0xff]
    %v192 = vld [vmem:[%s5 + $0x28] sm:$0xff]
    %v193 = vld [vmem:[%s5 + $0x30] sm:$0xff]
    %v194 = vld [vmem:[%s5 + $0x38] sm:$0xff]
    %v195 = vld [vmem:[%s5 + $0x40] sm:$0xff]
    %v196 = vld [vmem:[%s5 + $0x48] sm:$0xff]
    %v197 = vld [vmem:[%s5 + $0x50] sm:$0xff]
    %v198 = vld [vmem:[%s5 + $0x58] sm:$0xff]
    %v199 = vld [vmem:[%s5 + $0x60] sm:$0xff]
    %v200 = vld [vmem:[%s5 + $0x68] sm:$0xff]
    %v201 = vld [vmem:[%s5 + $0x70] sm:$0xff]
    %v202 = vld [vmem:[%s5 + $0x78] sm:$0xff]
    %v203 = vld [vmem:[%s5 + $0x80] sm:$0xff]
    %v204 = vld [vmem:[%s5 + $0x88] sm:$0xff]
    %v205 = vld [vmem:[%s5 + $0x90] sm:$0xff]
    %v206 = vld [vmem:[%s5 + $0x98] sm:$0xff]
    %v207 = vld [vmem:[%s5 + $0xa0] sm:$0xff]
    %v208 = vld [vmem:[%s5 + $0xa8] sm:$0xff]
    %v209 = vld [vmem:[%s5 + $0xb0] sm:$0xff]
    %v210 = vld [vmem:[%s5 + $0xb8] sm:$0xff]
    %v211 = vld [vmem:[%s5 + $0xc0] sm:$0xff]
    %v212 = vld [vmem:[%s5 + $0xc8] sm:$0xff]
    %v213 = vld [vmem:[%s5 + $0xd0] sm:$0xff]
    %v214 = vld [vmem:[%s5 + $0xd8] sm:$0xff]
    %v215 = vld [vmem:[%s5 + $0xe0] sm:$0xff]
    %v216 = vld [vmem:[%s5 + $0xe8] sm:$0xff]
    %v217 = vld [vmem:[%s5 + $0xf0] sm:$0xff]
    %v218 = vld [vmem:[%s5 + $0xf8] sm:$0xff]
    %v219 = vld [vmem:[%s1] sm:$0x3]
    %221 = vset.pattern.permute.xlu0 0
    %222 = vperm.xlu0 %221, %v187
    %v223 = vpop.permute.xlu0 %222
    %226 = vset.pattern.permute.xlu0 0
    %227 = vperm.xlu0 %226, %v188
    %v228 = vpop.permute.xlu0 %227
    %231 = vset.pattern.permute.xlu0 0
    %232 = vperm.xlu0 %231, %v189
    %v233 = vpop.permute.xlu0 %232
    %236 = vset.pattern.permute.xlu0 0
    %237 = vperm.xlu0 %236, %v190
    %v238 = vpop.permute.xlu0 %237
    %241 = vset.pattern.permute.xlu0 0
    %242 = vperm.xlu0 %241, %v191
    %v243 = vpop.permute.xlu0 %242
    %246 = vset.pattern.permute.xlu0 0
    %247 = vperm.xlu0 %246, %v192
    %v248 = vpop.permute.xlu0 %247
    %251 = vset.pattern.permute.xlu0 0
    %252 = vperm.xlu0 %251, %v193
    %v253 = vpop.permute.xlu0 %252
    %256 = vset.pattern.permute.xlu0 0
    %257 = vperm.xlu0 %256, %v194
    %v258 = vpop.permute.xlu0 %257
    %261 = vset.pattern.permute.xlu0 0
    %262 = vperm.xlu0 %261, %v195
    %v263 = vpop.permute.xlu0 %262
    %266 = vset.pattern.permute.xlu0 0
    %267 = vperm.xlu0 %266, %v196
    %v268 = vpop.permute.xlu0 %267
    %271 = vset.pattern.permute.xlu0 0
    %272 = vperm.xlu0 %271, %v197
    %v273 = vpop.permute.xlu0 %272
    %276 = vset.pattern.permute.xlu0 0
    %277 = vperm.xlu0 %276, %v198
    %v278 = vpop.permute.xlu0 %277
    %281 = vset.pattern.permute.xlu0 0
    %282 = vperm.xlu0 %281, %v199
    %v283 = vpop.permute.xlu0 %282
    %286 = vset.pattern.permute.xlu0 0
    %287 = vperm.xlu0 %286, %v200
    %v288 = vpop.permute.xlu0 %287
    %291 = vset.pattern.permute.xlu0 0
    %292 = vperm.xlu0 %291, %v201
    %v293 = vpop.permute.xlu0 %292
    %296 = vset.pattern.permute.xlu0 0
    %297 = vperm.xlu0 %296, %v202
    %v298 = vpop.permute.xlu0 %297
    %301 = vset.pattern.permute.xlu0 0
    %302 = vperm.xlu0 %301, %v203
    %v303 = vpop.permute.xlu0 %302
    %306 = vset.pattern.permute.xlu0 0
    %307 = vperm.xlu0 %306, %v204
    %v308 = vpop.permute.xlu0 %307
    %311 = vset.pattern.permute.xlu0 0
    %312 = vperm.xlu0 %311, %v205
    %v313 = vpop.permute.xlu0 %312
    %316 = vset.pattern.permute.xlu0 0
    %317 = vperm.xlu0 %316, %v206
    %v318 = vpop.permute.xlu0 %317
    %321 = vset.pattern.permute.xlu0 0
    %322 = vperm.xlu0 %321, %v207
    %v323 = vpop.permute.xlu0 %322
    %326 = vset.pattern.permute.xlu0 0
    %327 = vperm.xlu0 %326, %v208
    %v328 = vpop.permute.xlu0 %327
    %331 = vset.pattern.permute.xlu0 0
    %332 = vperm.xlu0 %331, %v209
    %v333 = vpop.permute.xlu0 %332
    %336 = vset.pattern.permute.xlu0 0
    %337 = vperm.xlu0 %336, %v210
    %v338 = vpop.permute.xlu0 %337
    %341 = vset.pattern.permute.xlu0 0
    %342 = vperm.xlu0 %341, %v211
    %v343 = vpop.permute.xlu0 %342
    %346 = vset.pattern.permute.xlu0 0
    %347 = vperm.xlu0 %346, %v212
    %v348 = vpop.permute.xlu0 %347
    %351 = vset.pattern.permute.xlu0 0
    %352 = vperm.xlu0 %351, %v213
    %v353 = vpop.permute.xlu0 %352
    %356 = vset.pattern.permute.xlu0 0
    %357 = vperm.xlu0 %356, %v214
    %v358 = vpop.permute.xlu0 %357
    %361 = vset.pattern.permute.xlu0 0
    %362 = vperm.xlu0 %361, %v215
    %v363 = vpop.permute.xlu0 %362
    %366 = vset.pattern.permute.xlu0 0
    %367 = vperm.xlu0 %366, %v216
    %v368 = vpop.permute.xlu0 %367
    %371 = vset.pattern.permute.xlu0 0
    %372 = vperm.xlu0 %371, %v217
    %v373 = vpop.permute.xlu0 %372
    %376 = vset.pattern.permute.xlu0 0
    %377 = vperm.xlu0 %376, %v218
    %v378 = vpop.permute.xlu0 %377
    %v381 = vlaneseq
    %v382 = vshrl.u32 %v381, 7
    %v383 = vsub.s32 0, %v382
    %v384 = vrot.slane %v219, %v383
    %v385 = vlaneseq
    %v386 = vshrl.u32 %v385, 7
    %v387 = vsub.s32 1, %v386
    %v388 = vrot.slane %v219, %v387
    %v391 = vmul.f32 %v223, %v384
    %v392 = vmul.f32 %v223, %v388
    %v393 = vmul.f32 %v228, %v384
    %v394 = vmul.f32 %v228, %v388
    %v395 = vmul.f32 %v233, %v384
    %v396 = vmul.f32 %v233, %v388
    %v397 = vmul.f32 %v238, %v384
    %v398 = vmul.f32 %v238, %v388
    %v399 = vmul.f32 %v243, %v384
    %v400 = vmul.f32 %v243, %v388
    %v401 = vmul.f32 %v248, %v384
    %v402 = vmul.f32 %v248, %v388
    %v403 = vmul.f32 %v253, %v384
    %v404 = vmul.f32 %v253, %v388
    %v405 = vmul.f32 %v258, %v384
    %v406 = vmul.f32 %v258, %v388
    %v407 = vmul.f32 %v263, %v384
    %v408 = vmul.f32 %v263, %v388
    %v409 = vmul.f32 %v268, %v384
    %v410 = vmul.f32 %v268, %v388
    %v411 = vmul.f32 %v273, %v384
    %v412 = vmul.f32 %v273, %v388
    %v413 = vmul.f32 %v278, %v384
    %v414 = vmul.f32 %v278, %v388
    %v415 = vmul.f32 %v283, %v384
    %v416 = vmul.f32 %v283, %v388
    %v417 = vmul.f32 %v288, %v384
    %v418 = vmul.f32 %v288, %v388
    %v419 = vmul.f32 %v293, %v384
    %v420 = vmul.f32 %v293, %v388
    %v421 = vmul.f32 %v298, %v384
    %v422 = vmul.f32 %v298, %v388
    %v423 = vmul.f32 %v303, %v384
    %v424 = vmul.f32 %v303, %v388
    %v425 = vmul.f32 %v308, %v384
    %v426 = vmul.f32 %v308, %v388
    %v427 = vmul.f32 %v313, %v384
    %v428 = vmul.f32 %v313, %v388
    %v429 = vmul.f32 %v318, %v384
    %v430 = vmul.f32 %v318, %v388
    %v431 = vmul.f32 %v323, %v384
    %v432 = vmul.f32 %v323, %v388
    %v433 = vmul.f32 %v328, %v384
    %v434 = vmul.f32 %v328, %v388
    %v435 = vmul.f32 %v333, %v384
    %v436 = vmul.f32 %v333, %v388
    %v437 = vmul.f32 %v338, %v384
    %v438 = vmul.f32 %v338, %v388
    %v439 = vmul.f32 %v343, %v384
    %v440 = vmul.f32 %v343, %v388
    %v441 = vmul.f32 %v348, %v384
    %v442 = vmul.f32 %v348, %v388
    %v443 = vmul.f32 %v353, %v384
    %v444 = vmul.f32 %v353, %v388
    %v445 = vmul.f32 %v358, %v384
    %v446 = vmul.f32 %v358, %v388
    %v447 = vmul.f32 %v363, %v384
    %v448 = vmul.f32 %v363, %v388
    %v449 = vmul.f32 %v368, %v384
    %v450 = vmul.f32 %v368, %v388
    %v451 = vmul.f32 %v373, %v384
    %v452 = vmul.f32 %v373, %v388
    %v453 = vmul.f32 %v378, %v384
    %v454 = vmul.f32 %v378, %v388
    %v455 = vld [vmem:[%s4] sm:$0xff]
    %v456 = vld [vmem:[%s4 + $0x8] sm:$0xff]
    %v457 = vld [vmem:[%s4 + $0x10] sm:$0xff]
    %v458 = vld [vmem:[%s4 + $0x18] sm:$0xff]
    %v459 = vld [vmem:[%s4 + $0x20] sm:$0xff]
    %v460 = vld [vmem:[%s4 + $0x28] sm:$0xff]
    %v461 = vld [vmem:[%s4 + $0x30] sm:$0xff]
    %v462 = vld [vmem:[%s4 + $0x38] sm:$0xff]
    %v463 = vld [vmem:[%s4 + $0x40] sm:$0xff]
    %v464 = vld [vmem:[%s4 + $0x48] sm:$0xff]
    %v465 = vld [vmem:[%s4 + $0x50] sm:$0xff]
    %v466 = vld [vmem:[%s4 + $0x58] sm:$0xff]
    %v467 = vld [vmem:[%s4 + $0x60] sm:$0xff]
    %v468 = vld [vmem:[%s4 + $0x68] sm:$0xff]
    %v469 = vld [vmem:[%s4 + $0x70] sm:$0xff]
    %v470 = vld [vmem:[%s4 + $0x78] sm:$0xff]
    %v471 = vld [vmem:[%s4 + $0x80] sm:$0xff]
    %v472 = vld [vmem:[%s4 + $0x88] sm:$0xff]
    %v473 = vld [vmem:[%s4 + $0x90] sm:$0xff]
    %v474 = vld [vmem:[%s4 + $0x98] sm:$0xff]
    %v475 = vld [vmem:[%s4 + $0xa0] sm:$0xff]
    %v476 = vld [vmem:[%s4 + $0xa8] sm:$0xff]
    %v477 = vld [vmem:[%s4 + $0xb0] sm:$0xff]
    %v478 = vld [vmem:[%s4 + $0xb8] sm:$0xff]
    %v479 = vld [vmem:[%s4 + $0xc0] sm:$0xff]
    %v480 = vld [vmem:[%s4 + $0xc8] sm:$0xff]
    %v481 = vld [vmem:[%s4 + $0xd0] sm:$0xff]
    %v482 = vld [vmem:[%s4 + $0xd8] sm:$0xff]
    %v483 = vld [vmem:[%s4 + $0xe0] sm:$0xff]
    %v484 = vld [vmem:[%s4 + $0xe8] sm:$0xff]
    %v485 = vld [vmem:[%s4 + $0xf0] sm:$0xff]
    %v486 = vld [vmem:[%s4 + $0xf8] sm:$0xff]
    %v487 = vld [vmem:[%s2] sm:$0x3]
    %489 = vset.pattern.permute.xlu0 0
    %490 = vperm.xlu0 %489, %v455
    %v491 = vpop.permute.xlu0 %490
    %494 = vset.pattern.permute.xlu0 0
    %495 = vperm.xlu0 %494, %v456
    %v496 = vpop.permute.xlu0 %495
    %499 = vset.pattern.permute.xlu0 0
    %500 = vperm.xlu0 %499, %v457
    %v501 = vpop.permute.xlu0 %500
    %504 = vset.pattern.permute.xlu0 0
    %505 = vperm.xlu0 %504, %v458
    %v506 = vpop.permute.xlu0 %505
    %509 = vset.pattern.permute.xlu0 0
    %510 = vperm.xlu0 %509, %v459
    %v511 = vpop.permute.xlu0 %510
    %514 = vset.pattern.permute.xlu0 0
    %515 = vperm.xlu0 %514, %v460
    %v516 = vpop.permute.xlu0 %515
    %519 = vset.pattern.permute.xlu0 0
    %520 = vperm.xlu0 %519, %v461
    %v521 = vpop.permute.xlu0 %520
    %524 = vset.pattern.permute.xlu0 0
    %525 = vperm.xlu0 %524, %v462
    %v526 = vpop.permute.xlu0 %525
    %529 = vset.pattern.permute.xlu0 0
    %530 = vperm.xlu0 %529, %v463
    %v531 = vpop.permute.xlu0 %530
    %534 = vset.pattern.permute.xlu0 0
    %535 = vperm.xlu0 %534, %v464
    %v536 = vpop.permute.xlu0 %535
    %539 = vset.pattern.permute.xlu0 0
    %540 = vperm.xlu0 %539, %v465
    %v541 = vpop.permute.xlu0 %540
    %544 = vset.pattern.permute.xlu0 0
    %545 = vperm.xlu0 %544, %v466
    %v546 = vpop.permute.xlu0 %545
    %549 = vset.pattern.permute.xlu0 0
    %550 = vperm.xlu0 %549, %v467
    %v551 = vpop.permute.xlu0 %550
    %554 = vset.pattern.permute.xlu0 0
    %555 = vperm.xlu0 %554, %v468
    %v556 = vpop.permute.xlu0 %555
    %559 = vset.pattern.permute.xlu0 0
    %560 = vperm.xlu0 %559, %v469
    %v561 = vpop.permute.xlu0 %560
    %564 = vset.pattern.permute.xlu0 0
    %565 = vperm.xlu0 %564, %v470
    %v566 = vpop.permute.xlu0 %565
    %569 = vset.pattern.permute.xlu0 0
    %570 = vperm.xlu0 %569, %v471
    %v571 = vpop.permute.xlu0 %570
    %574 = vset.pattern.permute.xlu0 0
    %575 = vperm.xlu0 %574, %v472
    %v576 = vpop.permute.xlu0 %575
    %579 = vset.pattern.permute.xlu0 0
    %580 = vperm.xlu0 %579, %v473
    %v581 = vpop.permute.xlu0 %580
    %584 = vset.pattern.permute.xlu0 0
    %585 = vperm.xlu0 %584, %v474
    %v586 = vpop.permute.xlu0 %585
    %589 = vset.pattern.permute.xlu0 0
    %590 = vperm.xlu0 %589, %v475
    %v591 = vpop.permute.xlu0 %590
    %594 = vset.pattern.permute.xlu0 0
    %595 = vperm.xlu0 %594, %v476
    %v596 = vpop.permute.xlu0 %595
    %599 = vset.pattern.permute.xlu0 0
    %600 = vperm.xlu0 %599, %v477
    %v601 = vpop.permute.xlu0 %600
    %604 = vset.pattern.permute.xlu0 0
    %605 = vperm.xlu0 %604, %v478
    %v606 = vpop.permute.xlu0 %605
    %609 = vset.pattern.permute.xlu0 0
    %610 = vperm.xlu0 %609, %v479
    %v611 = vpop.permute.xlu0 %610
    %614 = vset.pattern.permute.xlu0 0
    %615 = vperm.xlu0 %614, %v480
    %v616 = vpop.permute.xlu0 %615
    %619 = vset.pattern.permute.xlu0 0
    %620 = vperm.xlu0 %619, %v481
    %v621 = vpop.permute.xlu0 %620
    %624 = vset.pattern.permute.xlu0 0
    %625 = vperm.xlu0 %624, %v482
    %v626 = vpop.permute.xlu0 %625
    %629 = vset.pattern.permute.xlu0 0
    %630 = vperm.xlu0 %629, %v483
    %v631 = vpop.permute.xlu0 %630
    %634 = vset.pattern.permute.xlu0 0
    %635 = vperm.xlu0 %634, %v484
    %v636 = vpop.permute.xlu0 %635
    %639 = vset.pattern.permute.xlu0 0
    %640 = vperm.xlu0 %639, %v485
    %v641 = vpop.permute.xlu0 %640
    %644 = vset.pattern.permute.xlu0 0
    %645 = vperm.xlu0 %644, %v486
    %v646 = vpop.permute.xlu0 %645
    %v649 = vlaneseq
    %v650 = vshrl.u32 %v649, 7
    %v651 = vsub.s32 0, %v650
    %v652 = vrot.slane %v487, %v651
    %v653 = vlaneseq
    %v654 = vshrl.u32 %v653, 7
    %v655 = vsub.s32 1, %v654
    %v656 = vrot.slane %v487, %v655
    %v659 = vmul.f32 %v491, %v652
    %v660 = vmul.f32 %v491, %v656
    %v661 = vmul.f32 %v496, %v652
    %v662 = vmul.f32 %v496, %v656
    %v663 = vmul.f32 %v501, %v652
    %v664 = vmul.f32 %v501, %v656
    %v665 = vmul.f32 %v506, %v652
    %v666 = vmul.f32 %v506, %v656
    %v667 = vmul.f32 %v511, %v652
    %v668 = vmul.f32 %v511, %v656
    %v669 = vmul.f32 %v516, %v652
    %v670 = vmul.f32 %v516, %v656
    %v671 = vmul.f32 %v521, %v652
    %v672 = vmul.f32 %v521, %v656
    %v673 = vmul.f32 %v526, %v652
    %v674 = vmul.f32 %v526, %v656
    %v675 = vmul.f32 %v531, %v652
    %v676 = vmul.f32 %v531, %v656
    %v677 = vmul.f32 %v536, %v652
    %v678 = vmul.f32 %v536, %v656
    %v679 = vmul.f32 %v541, %v652
    %v680 = vmul.f32 %v541, %v656
    %v681 = vmul.f32 %v546, %v652
    %v682 = vmul.f32 %v546, %v656
    %v683 = vmul.f32 %v551, %v652
    %v684 = vmul.f32 %v551, %v656
    %v685 = vmul.f32 %v556, %v652
    %v686 = vmul.f32 %v556, %v656
    %v687 = vmul.f32 %v561, %v652
    %v688 = vmul.f32 %v561, %v656
    %v689 = vmul.f32 %v566, %v652
    %v690 = vmul.f32 %v566, %v656
    %v691 = vmul.f32 %v571, %v652
    %v692 = vmul.f32 %v571, %v656
    %v693 = vmul.f32 %v576, %v652
    %v694 = vmul.f32 %v576, %v656
    %v695 = vmul.f32 %v581, %v652
    %v696 = vmul.f32 %v581, %v656
    %v697 = vmul.f32 %v586, %v652
    %v698 = vmul.f32 %v586, %v656
    %v699 = vmul.f32 %v591, %v652
    %v700 = vmul.f32 %v591, %v656
    %v701 = vmul.f32 %v596, %v652
    %v702 = vmul.f32 %v596, %v656
    %v703 = vmul.f32 %v601, %v652
    %v704 = vmul.f32 %v601, %v656
    %v705 = vmul.f32 %v606, %v652
    %v706 = vmul.f32 %v606, %v656
    %v707 = vmul.f32 %v611, %v652
    %v708 = vmul.f32 %v611, %v656
    %v709 = vmul.f32 %v616, %v652
    %v710 = vmul.f32 %v616, %v656
    %v711 = vmul.f32 %v621, %v652
    %v712 = vmul.f32 %v621, %v656
    %v713 = vmul.f32 %v626, %v652
    %v714 = vmul.f32 %v626, %v656
    %v715 = vmul.f32 %v631, %v652
    %v716 = vmul.f32 %v631, %v656
    %v717 = vmul.f32 %v636, %v652
    %v718 = vmul.f32 %v636, %v656
    %v719 = vmul.f32 %v641, %v652
    %v720 = vmul.f32 %v641, %v656
    %v721 = vmul.f32 %v646, %v652
    %v722 = vmul.f32 %v646, %v656
    %v723 = vadd.f32 %v391, %v659
    %v724 = vadd.f32 %v392, %v660
    %v725 = vadd.f32 %v393, %v661
    %v726 = vadd.f32 %v394, %v662
    %v727 = vadd.f32 %v395, %v663
    %v728 = vadd.f32 %v396, %v664
    %v729 = vadd.f32 %v397, %v665
    %v730 = vadd.f32 %v398, %v666
    %v731 = vadd.f32 %v399, %v667
    %v732 = vadd.f32 %v400, %v668
    %v733 = vadd.f32 %v401, %v669
    %v734 = vadd.f32 %v402, %v670
    %v735 = vadd.f32 %v403, %v671
    %v736 = vadd.f32 %v404, %v672
    %v737 = vadd.f32 %v405, %v673
    %v738 = vadd.f32 %v406, %v674
    %v739 = vadd.f32 %v407, %v675
    %v740 = vadd.f32 %v408, %v676
    %v741 = vadd.f32 %v409, %v677
    %v742 = vadd.f32 %v410, %v678
    %v743 = vadd.f32 %v411, %v679
    %v744 = vadd.f32 %v412, %v680
    %v745 = vadd.f32 %v413, %v681
    %v746 = vadd.f32 %v414, %v682
    %v747 = vadd.f32 %v415, %v683
    %v748 = vadd.f32 %v416, %v684
    %v749 = vadd.f32 %v417, %v685
    %v750 = vadd.f32 %v418, %v686
    %v751 = vadd.f32 %v419, %v687
    %v752 = vadd.f32 %v420, %v688
    %v753 = vadd.f32 %v421, %v689
    %v754 = vadd.f32 %v422, %v690
    %v755 = vadd.f32 %v423, %v691
    %v756 = vadd.f32 %v424, %v692
    %v757 = vadd.f32 %v425, %v693
    %v758 = vadd.f32 %v426, %v694
    %v759 = vadd.f32 %v427, %v695
    %v760 = vadd.f32 %v428, %v696
    %v761 = vadd.f32 %v429, %v697
    %v762 = vadd.f32 %v430, %v698
    %v763 = vadd.f32 %v431, %v699
    %v764 = vadd.f32 %v432, %v700
    %v765 = vadd.f32 %v433, %v701
    %v766 = vadd.f32 %v434, %v702
    %v767 = vadd.f32 %v435, %v703
    %v768 = vadd.f32 %v436, %v704
    %v769 = vadd.f32 %v437, %v705
    %v770 = vadd.f32 %v438, %v706
    %v771 = vadd.f32 %v439, %v707
    %v772 = vadd.f32 %v440, %v708
    %v773 = vadd.f32 %v441, %v709
    %v774 = vadd.f32 %v442, %v710
    %v775 = vadd.f32 %v443, %v711
    %v776 = vadd.f32 %v444, %v712
    %v777 = vadd.f32 %v445, %v713
    %v778 = vadd.f32 %v446, %v714
    %v779 = vadd.f32 %v447, %v715
    %v780 = vadd.f32 %v448, %v716
    %v781 = vadd.f32 %v449, %v717
    %v782 = vadd.f32 %v450, %v718
    %v783 = vadd.f32 %v451, %v719
    %v784 = vadd.f32 %v452, %v720
    %v785 = vadd.f32 %v453, %v721
    %v786 = vadd.f32 %v454, %v722
    %v787 = vsel %vm123, %v723, 0.0
    %v788 = vsel %vm124, %v724, 0.0
    %v789 = vsel %vm125, %v725, 0.0
    %v790 = vsel %vm126, %v726, 0.0
    %v791 = vsel %vm127, %v727, 0.0
    %v792 = vsel %vm128, %v728, 0.0
    %v793 = vsel %vm129, %v729, 0.0
    %v794 = vsel %vm130, %v730, 0.0
    %v795 = vsel %vm131, %v731, 0.0
    %v796 = vsel %vm132, %v732, 0.0
    %v797 = vsel %vm133, %v733, 0.0
    %v798 = vsel %vm134, %v734, 0.0
    %v799 = vsel %vm135, %v735, 0.0
    %v800 = vsel %vm136, %v736, 0.0
    %v801 = vsel %vm137, %v737, 0.0
    %v802 = vsel %vm138, %v738, 0.0
    %v803 = vsel %vm139, %v739, 0.0
    %v804 = vsel %vm140, %v740, 0.0
    %v805 = vsel %vm141, %v741, 0.0
    %v806 = vsel %vm142, %v742, 0.0
    %v807 = vsel %vm143, %v743, 0.0
    %v808 = vsel %vm144, %v744, 0.0
    %v809 = vsel %vm145, %v745, 0.0
    %v810 = vsel %vm146, %v746, 0.0
    %v811 = vsel %vm147, %v747, 0.0
    %v812 = vsel %vm148, %v748, 0.0
    %v813 = vsel %vm149, %v749, 0.0
    %v814 = vsel %vm150, %v750, 0.0
    %v815 = vsel %vm151, %v751, 0.0
    %v816 = vsel %vm152, %v752, 0.0
    %v817 = vsel %vm153, %v753, 0.0
    %v818 = vsel %vm154, %v754, 0.0
    %v819 = vsel %vm155, %v755, 0.0
    %v820 = vsel %vm156, %v756, 0.0
    %v821 = vsel %vm157, %v757, 0.0
    %v822 = vsel %vm158, %v758, 0.0
    %v823 = vsel %vm159, %v759, 0.0
    %v824 = vsel %vm160, %v760, 0.0
    %v825 = vsel %vm161, %v761, 0.0
    %v826 = vsel %vm162, %v762, 0.0
    %v827 = vsel %vm163, %v763, 0.0
    %v828 = vsel %vm164, %v764, 0.0
    %v829 = vsel %vm165, %v765, 0.0
    %v830 = vsel %vm166, %v766, 0.0
    %v831 = vsel %vm167, %v767, 0.0
    %v832 = vsel %vm168, %v768, 0.0
    %v833 = vsel %vm169, %v769, 0.0
    %v834 = vsel %vm170, %v770, 0.0
    %v835 = vsel %vm171, %v771, 0.0
    %v836 = vsel %vm172, %v772, 0.0
    %v837 = vsel %vm173, %v773, 0.0
    %v838 = vsel %vm174, %v774, 0.0
    %v839 = vsel %vm175, %v775, 0.0
    %v840 = vsel %vm176, %v776, 0.0
    %v841 = vsel %vm177, %v777, 0.0
    %v842 = vsel %vm178, %v778, 0.0
    %v843 = vsel %vm179, %v779, 0.0
    %v844 = vsel %vm180, %v780, 0.0
    %v845 = vsel %vm181, %v781, 0.0
    %v846 = vsel %vm182, %v782, 0.0
    %v847 = vsel %vm183, %v783, 0.0
    %v848 = vsel %vm184, %v784, 0.0
    %v849 = vsel %vm185, %v785, 0.0
    %v850 = vsel %vm186, %v786, 0.0
    %v851 = vld [vmem:[%s6] sm:$0xff]
    %v852 = vld [vmem:[%s6 + $0x8] sm:$0xff]
    %v853 = vld [vmem:[%s6 + $0x10] sm:$0xff]
    %v854 = vld [vmem:[%s6 + $0x18] sm:$0xff]
    %v855 = vld [vmem:[%s6 + $0x20] sm:$0xff]
    %v856 = vld [vmem:[%s6 + $0x28] sm:$0xff]
    %v857 = vld [vmem:[%s6 + $0x30] sm:$0xff]
    %v858 = vld [vmem:[%s6 + $0x38] sm:$0xff]
    %v859 = vld [vmem:[%s6 + $0x40] sm:$0xff]
    %v860 = vld [vmem:[%s6 + $0x48] sm:$0xff]
    %v861 = vld [vmem:[%s6 + $0x50] sm:$0xff]
    %v862 = vld [vmem:[%s6 + $0x58] sm:$0xff]
    %v863 = vld [vmem:[%s6 + $0x60] sm:$0xff]
    %v864 = vld [vmem:[%s6 + $0x68] sm:$0xff]
    %v865 = vld [vmem:[%s6 + $0x70] sm:$0xff]
    %v866 = vld [vmem:[%s6 + $0x78] sm:$0xff]
    %v867 = vld [vmem:[%s6 + $0x80] sm:$0xff]
    %v868 = vld [vmem:[%s6 + $0x88] sm:$0xff]
    %v869 = vld [vmem:[%s6 + $0x90] sm:$0xff]
    %v870 = vld [vmem:[%s6 + $0x98] sm:$0xff]
    %v871 = vld [vmem:[%s6 + $0xa0] sm:$0xff]
    %v872 = vld [vmem:[%s6 + $0xa8] sm:$0xff]
    %v873 = vld [vmem:[%s6 + $0xb0] sm:$0xff]
    %v874 = vld [vmem:[%s6 + $0xb8] sm:$0xff]
    %v875 = vld [vmem:[%s6 + $0xc0] sm:$0xff]
    %v876 = vld [vmem:[%s6 + $0xc8] sm:$0xff]
    %v877 = vld [vmem:[%s6 + $0xd0] sm:$0xff]
    %v878 = vld [vmem:[%s6 + $0xd8] sm:$0xff]
    %v879 = vld [vmem:[%s6 + $0xe0] sm:$0xff]
    %v880 = vld [vmem:[%s6 + $0xe8] sm:$0xff]
    %v881 = vld [vmem:[%s6 + $0xf0] sm:$0xff]
    %v882 = vld [vmem:[%s6 + $0xf8] sm:$0xff]
    %v883 = vld [vmem:[%s3] sm:$0x3]
    %885 = vset.pattern.permute.xlu0 0
    %886 = vperm.xlu0 %885, %v851
    %v887 = vpop.permute.xlu0 %886
    %890 = vset.pattern.permute.xlu0 0
    %891 = vperm.xlu0 %890, %v852
    %v892 = vpop.permute.xlu0 %891
    %895 = vset.pattern.permute.xlu0 0
    %896 = vperm.xlu0 %895, %v853
    %v897 = vpop.permute.xlu0 %896
    %900 = vset.pattern.permute.xlu0 0
    %901 = vperm.xlu0 %900, %v854
    %v902 = vpop.permute.xlu0 %901
    %905 = vset.pattern.permute.xlu0 0
    %906 = vperm.xlu0 %905, %v855
    %v907 = vpop.permute.xlu0 %906
    %910 = vset.pattern.permute.xlu0 0
    %911 = vperm.xlu0 %910, %v856
    %v912 = vpop.permute.xlu0 %911
    %915 = vset.pattern.permute.xlu0 0
    %916 = vperm.xlu0 %915, %v857
    %v917 = vpop.permute.xlu0 %916
    %920 = vset.pattern.permute.xlu0 0
    %921 = vperm.xlu0 %920, %v858
    %v922 = vpop.permute.xlu0 %921
    %925 = vset.pattern.permute.xlu0 0
    %926 = vperm.xlu0 %925, %v859
    %v927 = vpop.permute.xlu0 %926
    %930 = vset.pattern.permute.xlu0 0
    %931 = vperm.xlu0 %930, %v860
    %v932 = vpop.permute.xlu0 %931
    %935 = vset.pattern.permute.xlu0 0
    %936 = vperm.xlu0 %935, %v861
    %v937 = vpop.permute.xlu0 %936
    %940 = vset.pattern.permute.xlu0 0
    %941 = vperm.xlu0 %940, %v862
    %v942 = vpop.permute.xlu0 %941
    %945 = vset.pattern.permute.xlu0 0
    %946 = vperm.xlu0 %945, %v863
    %v947 = vpop.permute.xlu0 %946
    %950 = vset.pattern.permute.xlu0 0
    %951 = vperm.xlu0 %950, %v864
    %v952 = vpop.permute.xlu0 %951
    %955 = vset.pattern.permute.xlu0 0
    %956 = vperm.xlu0 %955, %v865
    %v957 = vpop.permute.xlu0 %956
    %960 = vset.pattern.permute.xlu0 0
    %961 = vperm.xlu0 %960, %v866
    %v962 = vpop.permute.xlu0 %961
    %965 = vset.pattern.permute.xlu0 0
    %966 = vperm.xlu0 %965, %v867
    %v967 = vpop.permute.xlu0 %966
    %970 = vset.pattern.permute.xlu0 0
    %971 = vperm.xlu0 %970, %v868
    %v972 = vpop.permute.xlu0 %971
    %975 = vset.pattern.permute.xlu0 0
    %976 = vperm.xlu0 %975, %v869
    %v977 = vpop.permute.xlu0 %976
    %980 = vset.pattern.permute.xlu0 0
    %981 = vperm.xlu0 %980, %v870
    %v982 = vpop.permute.xlu0 %981
    %985 = vset.pattern.permute.xlu0 0
    %986 = vperm.xlu0 %985, %v871
    %v987 = vpop.permute.xlu0 %986
    %990 = vset.pattern.permute.xlu0 0
    %991 = vperm.xlu0 %990, %v872
    %v992 = vpop.permute.xlu0 %991
    %995 = vset.pattern.permute.xlu0 0
    %996 = vperm.xlu0 %995, %v873
    %v997 = vpop.permute.xlu0 %996
    %1000 = vset.pattern.permute.xlu0 0
    %1001 = vperm.xlu0 %1000, %v874
    %v1002 = vpop.permute.xlu0 %1001
    %1005 = vset.pattern.permute.xlu0 0
    %1006 = vperm.xlu0 %1005, %v875
    %v1007 = vpop.permute.xlu0 %1006
    %1010 = vset.pattern.permute.xlu0 0
    %1011 = vperm.xlu0 %1010, %v876
    %v1012 = vpop.permute.xlu0 %1011
    %1015 = vset.pattern.permute.xlu0 0
    %1016 = vperm.xlu0 %1015, %v877
    %v1017 = vpop.permute.xlu0 %1016
    %1020 = vset.pattern.permute.xlu0 0
    %1021 = vperm.xlu0 %1020, %v878
    %v1022 = vpop.permute.xlu0 %1021
    %1025 = vset.pattern.permute.xlu0 0
    %1026 = vperm.xlu0 %1025, %v879
    %v1027 = vpop.permute.xlu0 %1026
    %1030 = vset.pattern.permute.xlu0 0
    %1031 = vperm.xlu0 %1030, %v880
    %v1032 = vpop.permute.xlu0 %1031
    %1035 = vset.pattern.permute.xlu0 0
    %1036 = vperm.xlu0 %1035, %v881
    %v1037 = vpop.permute.xlu0 %1036
    %1040 = vset.pattern.permute.xlu0 0
    %1041 = vperm.xlu0 %1040, %v882
    %v1042 = vpop.permute.xlu0 %1041
    %v1045 = vlaneseq
    %v1046 = vshrl.u32 %v1045, 7
    %v1047 = vsub.s32 0, %v1046
    %v1048 = vrot.slane %v883, %v1047
    %v1049 = vlaneseq
    %v1050 = vshrl.u32 %v1049, 7
    %v1051 = vsub.s32 1, %v1050
    %v1052 = vrot.slane %v883, %v1051
    %v1055 = vmul.f32 %v887, %v1048
    %v1056 = vmul.f32 %v887, %v1052
    %v1057 = vmul.f32 %v892, %v1048
    %v1058 = vmul.f32 %v892, %v1052
    %v1059 = vmul.f32 %v897, %v1048
    %v1060 = vmul.f32 %v897, %v1052
    %v1061 = vmul.f32 %v902, %v1048
    %v1062 = vmul.f32 %v902, %v1052
    %v1063 = vmul.f32 %v907, %v1048
    %v1064 = vmul.f32 %v907, %v1052
    %v1065 = vmul.f32 %v912, %v1048
    %v1066 = vmul.f32 %v912, %v1052
    %v1067 = vmul.f32 %v917, %v1048
    %v1068 = vmul.f32 %v917, %v1052
    %v1069 = vmul.f32 %v922, %v1048
    %v1070 = vmul.f32 %v922, %v1052
    %v1071 = vmul.f32 %v927, %v1048
    %v1072 = vmul.f32 %v927, %v1052
    %v1073 = vmul.f32 %v932, %v1048
    %v1074 = vmul.f32 %v932, %v1052
    %v1075 = vmul.f32 %v937, %v1048
    %v1076 = vmul.f32 %v937, %v1052
    %v1077 = vmul.f32 %v942, %v1048
    %v1078 = vmul.f32 %v942, %v1052
    %v1079 = vmul.f32 %v947, %v1048
    %v1080 = vmul.f32 %v947, %v1052
    %v1081 = vmul.f32 %v952, %v1048
    %v1082 = vmul.f32 %v952, %v1052
    %v1083 = vmul.f32 %v957, %v1048
    %v1084 = vmul.f32 %v957, %v1052
    %v1085 = vmul.f32 %v962, %v1048
    %v1086 = vmul.f32 %v962, %v1052
    %v1087 = vmul.f32 %v967, %v1048
    %v1088 = vmul.f32 %v967, %v1052
    %v1089 = vmul.f32 %v972, %v1048
    %v1090 = vmul.f32 %v972, %v1052
    %v1091 = vmul.f32 %v977, %v1048
    %v1092 = vmul.f32 %v977, %v1052
    %v1093 = vmul.f32 %v982, %v1048
    %v1094 = vmul.f32 %v982, %v1052
    %v1095 = vmul.f32 %v987, %v1048
    %v1096 = vmul.f32 %v987, %v1052
    %v1097 = vmul.f32 %v992, %v1048
    %v1098 = vmul.f32 %v992, %v1052
    %v1099 = vmul.f32 %v997, %v1048
    %v1100 = vmul.f32 %v997, %v1052
    %v1101 = vmul.f32 %v1002, %v1048
    %v1102 = vmul.f32 %v1002, %v1052
    %v1103 = vmul.f32 %v1007, %v1048
    %v1104 = vmul.f32 %v1007, %v1052
    %v1105 = vmul.f32 %v1012, %v1048
    %v1106 = vmul.f32 %v1012, %v1052
    %v1107 = vmul.f32 %v1017, %v1048
    %v1108 = vmul.f32 %v1017, %v1052
    %v1109 = vmul.f32 %v1022, %v1048
    %v1110 = vmul.f32 %v1022, %v1052
    %v1111 = vmul.f32 %v1027, %v1048
    %v1112 = vmul.f32 %v1027, %v1052
    %v1113 = vmul.f32 %v1032, %v1048
    %v1114 = vmul.f32 %v1032, %v1052
    %v1115 = vmul.f32 %v1037, %v1048
    %v1116 = vmul.f32 %v1037, %v1052
    %v1117 = vmul.f32 %v1042, %v1048
    %v1118 = vmul.f32 %v1042, %v1052
    %v1119 = vmul.f32 %v59, %v1055
    %v1120 = vmul.f32 %v60, %v1056
    %v1121 = vmul.f32 %v61, %v1057
    %v1122 = vmul.f32 %v62, %v1058
    %v1123 = vmul.f32 %v63, %v1059
    %v1124 = vmul.f32 %v64, %v1060
    %v1125 = vmul.f32 %v65, %v1061
    %v1126 = vmul.f32 %v66, %v1062
    %v1127 = vmul.f32 %v67, %v1063
    %v1128 = vmul.f32 %v68, %v1064
    %v1129 = vmul.f32 %v69, %v1065
    %v1130 = vmul.f32 %v70, %v1066
    %v1131 = vmul.f32 %v71, %v1067
    %v1132 = vmul.f32 %v72, %v1068
    %v1133 = vmul.f32 %v73, %v1069
    %v1134 = vmul.f32 %v74, %v1070
    %v1135 = vmul.f32 %v75, %v1071
    %v1136 = vmul.f32 %v76, %v1072
    %v1137 = vmul.f32 %v77, %v1073
    %v1138 = vmul.f32 %v78, %v1074
    %v1139 = vmul.f32 %v79, %v1075
    %v1140 = vmul.f32 %v80, %v1076
    %v1141 = vmul.f32 %v81, %v1077
    %v1142 = vmul.f32 %v82, %v1078
    %v1143 = vmul.f32 %v83, %v1079
    %v1144 = vmul.f32 %v84, %v1080
    %v1145 = vmul.f32 %v85, %v1081
    %v1146 = vmul.f32 %v86, %v1082
    %v1147 = vmul.f32 %v87, %v1083
    %v1148 = vmul.f32 %v88, %v1084
    %v1149 = vmul.f32 %v89, %v1085
    %v1150 = vmul.f32 %v90, %v1086
    %v1151 = vmul.f32 %v91, %v1087
    %v1152 = vmul.f32 %v92, %v1088
    %v1153 = vmul.f32 %v93, %v1089
    %v1154 = vmul.f32 %v94, %v1090
    %v1155 = vmul.f32 %v95, %v1091
    %v1156 = vmul.f32 %v96, %v1092
    %v1157 = vmul.f32 %v97, %v1093
    %v1158 = vmul.f32 %v98, %v1094
    %v1159 = vmul.f32 %v99, %v1095
    %v1160 = vmul.f32 %v100, %v1096
    %v1161 = vmul.f32 %v101, %v1097
    %v1162 = vmul.f32 %v102, %v1098
    %v1163 = vmul.f32 %v103, %v1099
    %v1164 = vmul.f32 %v104, %v1100
    %v1165 = vmul.f32 %v105, %v1101
    %v1166 = vmul.f32 %v106, %v1102
    %v1167 = vmul.f32 %v107, %v1103
    %v1168 = vmul.f32 %v108, %v1104
    %v1169 = vmul.f32 %v109, %v1105
    %v1170 = vmul.f32 %v110, %v1106
    %v1171 = vmul.f32 %v111, %v1107
    %v1172 = vmul.f32 %v112, %v1108
    %v1173 = vmul.f32 %v113, %v1109
    %v1174 = vmul.f32 %v114, %v1110
    %v1175 = vmul.f32 %v115, %v1111
    %v1176 = vmul.f32 %v116, %v1112
    %v1177 = vmul.f32 %v117, %v1113
    %v1178 = vmul.f32 %v118, %v1114
    %v1179 = vmul.f32 %v119, %v1115
    %v1180 = vmul.f32 %v120, %v1116
    %v1181 = vmul.f32 %v121, %v1117
    %v1182 = vmul.f32 %v122, %v1118
    %v1183 = vadd.f32 %v1119, %v787
    %v1184 = vadd.f32 %v1120, %v788
    %v1185 = vadd.f32 %v1121, %v789
    %v1186 = vadd.f32 %v1122, %v790
    %v1187 = vadd.f32 %v1123, %v791
    %v1188 = vadd.f32 %v1124, %v792
    %v1189 = vadd.f32 %v1125, %v793
    %v1190 = vadd.f32 %v1126, %v794
    %v1191 = vadd.f32 %v1127, %v795
    %v1192 = vadd.f32 %v1128, %v796
    %v1193 = vadd.f32 %v1129, %v797
    %v1194 = vadd.f32 %v1130, %v798
    %v1195 = vadd.f32 %v1131, %v799
    %v1196 = vadd.f32 %v1132, %v800
    %v1197 = vadd.f32 %v1133, %v801
    %v1198 = vadd.f32 %v1134, %v802
    %v1199 = vadd.f32 %v1135, %v803
    %v1200 = vadd.f32 %v1136, %v804
    %v1201 = vadd.f32 %v1137, %v805
    %v1202 = vadd.f32 %v1138, %v806
    %v1203 = vadd.f32 %v1139, %v807
    %v1204 = vadd.f32 %v1140, %v808
    %v1205 = vadd.f32 %v1141, %v809
    %v1206 = vadd.f32 %v1142, %v810
    %v1207 = vadd.f32 %v1143, %v811
    %v1208 = vadd.f32 %v1144, %v812
    %v1209 = vadd.f32 %v1145, %v813
    %v1210 = vadd.f32 %v1146, %v814
    %v1211 = vadd.f32 %v1147, %v815
    %v1212 = vadd.f32 %v1148, %v816
    %v1213 = vadd.f32 %v1149, %v817
    %v1214 = vadd.f32 %v1150, %v818
    %v1215 = vadd.f32 %v1151, %v819
    %v1216 = vadd.f32 %v1152, %v820
    %v1217 = vadd.f32 %v1153, %v821
    %v1218 = vadd.f32 %v1154, %v822
    %v1219 = vadd.f32 %v1155, %v823
    %v1220 = vadd.f32 %v1156, %v824
    %v1221 = vadd.f32 %v1157, %v825
    %v1222 = vadd.f32 %v1158, %v826
    %v1223 = vadd.f32 %v1159, %v827
    %v1224 = vadd.f32 %v1160, %v828
    %v1225 = vadd.f32 %v1161, %v829
    %v1226 = vadd.f32 %v1162, %v830
    %v1227 = vadd.f32 %v1163, %v831
    %v1228 = vadd.f32 %v1164, %v832
    %v1229 = vadd.f32 %v1165, %v833
    %v1230 = vadd.f32 %v1166, %v834
    %v1231 = vadd.f32 %v1167, %v835
    %v1232 = vadd.f32 %v1168, %v836
    %v1233 = vadd.f32 %v1169, %v837
    %v1234 = vadd.f32 %v1170, %v838
    %v1235 = vadd.f32 %v1171, %v839
    %v1236 = vadd.f32 %v1172, %v840
    %v1237 = vadd.f32 %v1173, %v841
    %v1238 = vadd.f32 %v1174, %v842
    %v1239 = vadd.f32 %v1175, %v843
    %v1240 = vadd.f32 %v1176, %v844
    %v1241 = vadd.f32 %v1177, %v845
    %v1242 = vadd.f32 %v1178, %v846
    %v1243 = vadd.f32 %v1179, %v847
    %v1244 = vadd.f32 %v1180, %v848
    %v1245 = vadd.f32 %v1181, %v849
    %v1246 = vadd.f32 %v1182, %v850
    %1247 = vst [vmem:[#allocation2] sm:$0xff] %v1183
    %1248 = vst [vmem:[#allocation2 + $0x8] sm:$0xff] %v1184
    %1249 = vst [vmem:[#allocation2 + $0x10] sm:$0xff] %v1185
    %1250 = vst [vmem:[#allocation2 + $0x18] sm:$0xff] %v1186
    %1251 = vst [vmem:[#allocation2 + $0x20] sm:$0xff] %v1187
    %1252 = vst [vmem:[#allocation2 + $0x28] sm:$0xff] %v1188
    %1253 = vst [vmem:[#allocation2 + $0x30] sm:$0xff] %v1189
    %1254 = vst [vmem:[#allocation2 + $0x38] sm:$0xff] %v1190
    %1255 = vst [vmem:[#allocation2 + $0x40] sm:$0xff] %v1191
    %1256 = vst [vmem:[#allocation2 + $0x48] sm:$0xff] %v1192
    %1257 = vst [vmem:[#allocation2 + $0x50] sm:$0xff] %v1193
    %1258 = vst [vmem:[#allocation2 + $0x58] sm:$0xff] %v1194
    %1259 = vst [vmem:[#allocation2 + $0x60] sm:$0xff] %v1195
    %1260 = vst [vmem:[#allocation2 + $0x68] sm:$0xff] %v1196
    %1261 = vst [vmem:[#allocation2 + $0x70] sm:$0xff] %v1197
    %1262 = vst [vmem:[#allocation2 + $0x78] sm:$0xff] %v1198
    %1263 = vst [vmem:[#allocation2 + $0x80] sm:$0xff] %v1199
    %1264 = vst [vmem:[#allocation2 + $0x88] sm:$0xff] %v1200
    %1265 = vst [vmem:[#allocation2 + $0x90] sm:$0xff] %v1201
    %1266 = vst [vmem:[#allocation2 + $0x98] sm:$0xff] %v1202
    %1267 = vst [vmem:[#allocation2 + $0xa0] sm:$0xff] %v1203
    %1268 = vst [vmem:[#allocation2 + $0xa8] sm:$0xff] %v1204
    %1269 = vst [vmem:[#allocation2 + $0xb0] sm:$0xff] %v1205
    %1270 = vst [vmem:[#allocation2 + $0xb8] sm:$0xff] %v1206
    %1271 = vst [vmem:[#allocation2 + $0xc0] sm:$0xff] %v1207
    %1272 = vst [vmem:[#allocation2 + $0xc8] sm:$0xff] %v1208
    %1273 = vst [vmem:[#allocation2 + $0xd0] sm:$0xff] %v1209
    %1274 = vst [vmem:[#allocation2 + $0xd8] sm:$0xff] %v1210
    %1275 = vst [vmem:[#allocation2 + $0xe0] sm:$0xff] %v1211
    %1276 = vst [vmem:[#allocation2 + $0xe8] sm:$0xff] %v1212
    %1277 = vst [vmem:[#allocation2 + $0xf0] sm:$0xff] %v1213
    %1278 = vst [vmem:[#allocation2 + $0xf8] sm:$0xff] %v1214
    %1279 = vst [vmem:[#allocation2 + $0x100] sm:$0xff] %v1215
    %1280 = vst [vmem:[#allocation2 + $0x108] sm:$0xff] %v1216
    %1281 = vst [vmem:[#allocation2 + $0x110] sm:$0xff] %v1217
    %1282 = vst [vmem:[#allocation2 + $0x118] sm:$0xff] %v1218
    %1283 = vst [vmem:[#allocation2 + $0x120] sm:$0xff] %v1219
    %1284 = vst [vmem:[#allocation2 + $0x128] sm:$0xff] %v1220
    %1285 = vst [vmem:[#allocation2 + $0x130] sm:$0xff] %v1221
    %1286 = vst [vmem:[#allocation2 + $0x138] sm:$0xff] %v1222
    %1287 = vst [vmem:[#allocation2 + $0x140] sm:$0xff] %v1223
    %1288 = vst [vmem:[#allocation2 + $0x148] sm:$0xff] %v1224
    %1289 = vst [vmem:[#allocation2 + $0x150] sm:$0xff] %v1225
    %1290 = vst [vmem:[#allocation2 + $0x158] sm:$0xff] %v1226
    %1291 = vst [vmem:[#allocation2 + $0x160] sm:$0xff] %v1227
    %1292 = vst [vmem:[#allocation2 + $0x168] sm:$0xff] %v1228
    %1293 = vst [vmem:[#allocation2 + $0x170] sm:$0xff] %v1229
    %1294 = vst [vmem:[#allocation2 + $0x178] sm:$0xff] %v1230
    %1295 = vst [vmem:[#allocation2 + $0x180] sm:$0xff] %v1231
    %1296 = vst [vmem:[#allocation2 + $0x188] sm:$0xff] %v1232
    %1297 = vst [vmem:[#allocation2 + $0x190] sm:$0xff] %v1233
    %1298 = vst [vmem:[#allocation2 + $0x198] sm:$0xff] %v1234
    %1299 = vst [vmem:[#allocation2 + $0x1a0] sm:$0xff] %v1235
    %1300 = vst [vmem:[#allocation2 + $0x1a8] sm:$0xff] %v1236
    %1301 = vst [vmem:[#allocation2 + $0x1b0] sm:$0xff] %v1237
    %1302 = vst [vmem:[#allocation2 + $0x1b8] sm:$0xff] %v1238
    %1303 = vst [vmem:[#allocation2 + $0x1c0] sm:$0xff] %v1239
    %1304 = vst [vmem:[#allocation2 + $0x1c8] sm:$0xff] %v1240
    %1305 = vst [vmem:[#allocation2 + $0x1d0] sm:$0xff] %v1241
    %1306 = vst [vmem:[#allocation2 + $0x1d8] sm:$0xff] %v1242
    %1307 = vst [vmem:[#allocation2 + $0x1e0] sm:$0xff] %v1243
    %1308 = vst [vmem:[#allocation2 + $0x1e8] sm:$0xff] %v1244
    %1309 = vst [vmem:[#allocation2 + $0x1f0] sm:$0xff] %v1245
    %1310 = vst [vmem:[#allocation2 + $0x1f8] sm:$0xff] %v1246
    // Predicated region
    $region30: #{gen_view_normalized.3} parent=1 // pred_check
      _
    $region31: #{gen_view_normalized.3} parent=1 // pred_check_branch
      %1312 = sbr.rel (0) target = $region33
    $region32: #{gen_view_normalized.3} parent=1 // pred_region
      %s1314 = ssub.s32 8192, 8192
      %1315 = vsyncadd [#allocation3], %s1314
      %s1316 = sshll.u32 [#allocation2], 4
      %s1317 = int_to_ptr.vmem [resolvable:$true] %s1316
      %1322 = dma.vmem_to_hbm [thread:$0]  %s1317, 8192, %s7, [#allocation3], 256, 256, 16
    $region33: #{gen_view_normalized.3} parent=1 // pred_fallthru
      _
    // Predicated region
    $region34: #{gen_view_normalized.3} parent=1 // pred_check
      _
    $region35: #{gen_view_normalized.3} parent=1 // pred_check_branch
      %1324 = sbr.rel (0) target = $region37
    $region36: #{gen_view_normalized.3} parent=1 // pred_region
      %1325 = dma.done [#allocation3], 8192
    $region37: #{gen_view_normalized.3} parent=1 // pred_fallthru
      _
    %1326 = vsyncpa [#allocation3], 1

// kernel: gen_view_normalized.2
$region0: #{gen_view_normalized.2}
  #allocation0 [shape = 'u32[]', space=smem, size = 0x4, offset = 0x4, fixed_abs, tag = 'smem constant byte address 0x4 - core index']
  #allocation1 [shape = 'u32[144,128]{1,0:T(1,128)}', space=vmem, size = 0x12000, scoped, tag = 'internal scratch']
  %s0 = inlined_call_operand.vmem [shape: bf16[256,256], index: 0, kind: input, shape index: {}]
  %s1 = inlined_call_operand.vmem [shape: f32[256,128], index: 1, kind: input, shape index: {}]
  %s2 = inlined_call_operand.vmem [shape: f32[1,128], index: 2, kind: input, shape index: {}]
  %s3 = inlined_call_operand.vmem [shape: f32[1,128], index: 3, kind: input, shape index: {}]
  %s4 = inlined_call_operand.vmem [shape: f32[256,1], index: 4, kind: output, shape index: {0}]
  %s5 = inlined_call_operand.vmem [shape: f32[256,1], index: 5, kind: output, shape index: {1}]
  %s6 = inlined_call_operand.vmem [shape: f32[256,1], index: 6, kind: output, shape index: {2}]
  %7 = xla_tuple %s4, %s5, %s6
  %s8 = sld [smem:[#allocation0]]
  $region42: #{gen_view_normalized.2} parent=0
    _
  %s10 = ssub.s32 1, %s8
  %s11 = scalar_select 0, %s10, %s8
  // Predicated region
  $region2: #{gen_view_normalized.2} parent=0 // pred_check
    _
  $region3: #{gen_view_normalized.2} parent=0 // pred_check_branch
    %13 = sbr.rel (0) target = $region5
  $region4: #{gen_view_normalized.2} parent=0 // pred_region
    _
  $region5: #{gen_view_normalized.2} parent=0 // pred_fallthru
    _
  // Predicated region
  $region6: #{gen_view_normalized.2} parent=0 // pred_check
    _
  $region7: #{gen_view_normalized.2} parent=0 // pred_check_branch
    %15 = sbr.rel (0) target = $region9
  $region8: #{gen_view_normalized.2} parent=0 // pred_region
    _
  $region9: #{gen_view_normalized.2} parent=0 // pred_fallthru
    _
  // Predicated region
  $region10: #{gen_view_normalized.2} parent=0 // pred_check
    _
  $region11: #{gen_view_normalized.2} parent=0 // pred_check_branch
    %17 = sbr.rel (0) target = $region13
  $region12: #{gen_view_normalized.2} parent=0 // pred_region
    _
  $region13: #{gen_view_normalized.2} parent=0 // pred_fallthru
    _
  // Predicated region
  $region14: #{gen_view_normalized.2} parent=0 // pred_check
    _
  $region15: #{gen_view_normalized.2} parent=0 // pred_check_branch
    %19 = sbr.rel (0) target = $region17
  $region16: #{gen_view_normalized.2} parent=0 // pred_region
    _
  $region17: #{gen_view_normalized.2} parent=0 // pred_fallthru
    _
  %v20 = vld [vmem:[%s0] sm:$0xff]
  %v21 = vld [vmem:[%s0 + $0x8] sm:$0xff]
  %v22 = vld [vmem:[%s0 + $0x10] sm:$0xff]
  %v23 = vld [vmem:[%s0 + $0x18] sm:$0xff]
  %v24 = vld [vmem:[%s0 + $0x20] sm:$0xff]
  %v25 = vld [vmem:[%s0 + $0x28] sm:$0xff]
  %v26 = vld [vmem:[%s0 + $0x30] sm:$0xff]
  %v27 = vld [vmem:[%s0 + $0x38] sm:$0xff]
  %v28 = vld [vmem:[%s0 + $0x40] sm:$0xff]
  %v29 = vld [vmem:[%s0 + $0x48] sm:$0xff]
  %v30 = vld [vmem:[%s0 + $0x50] sm:$0xff]
  %v31 = vld [vmem:[%s0 + $0x58] sm:$0xff]
  %v32 = vld [vmem:[%s0 + $0x60] sm:$0xff]
  %v33 = vld [vmem:[%s0 + $0x68] sm:$0xff]
  %v34 = vld [vmem:[%s0 + $0x70] sm:$0xff]
  %v35 = vld [vmem:[%s0 + $0x78] sm:$0xff]
  %v36 = vld [vmem:[%s0 + $0x80] sm:$0xff]
  %v37 = vld [vmem:[%s0 + $0x88] sm:$0xff]
  %v38 = vld [vmem:[%s0 + $0x90] sm:$0xff]
  %v39 = vld [vmem:[%s0 + $0x98] sm:$0xff]
  %v40 = vld [vmem:[%s0 + $0xa0] sm:$0xff]
  %v41 = vld [vmem:[%s0 + $0xa8] sm:$0xff]
  %v42 = vld [vmem:[%s0 + $0xb0] sm:$0xff]
  %v43 = vld [vmem:[%s0 + $0xb8] sm:$0xff]
  %v44 = vld [vmem:[%s0 + $0xc0] sm:$0xff]
  %v45 = vld [vmem:[%s0 + $0xc8] sm:$0xff]
  %v46 = vld [vmem:[%s0 + $0xd0] sm:$0xff]
  %v47 = vld [vmem:[%s0 + $0xd8] sm:$0xff]
  %v48 = vld [vmem:[%s0 + $0xe0] sm:$0xff]
  %v49 = vld [vmem:[%s0 + $0xe8] sm:$0xff]
  %v50 = vld [vmem:[%s0 + $0xf0] sm:$0xff]
  %v51 = vld [vmem:[%s0 + $0xf8] sm:$0xff]
  %v52 = vunpack.c.l.bf16 %v20
  %v53 = vunpack.c.h.bf16 %v20
  %v54 = vunpack.c.l.bf16 %v21
  %v55 = vunpack.c.h.bf16 %v21
  %v56 = vunpack.c.l.bf16 %v22
  %v57 = vunpack.c.h.bf16 %v22
  %v58 = vunpack.c.l.bf16 %v23
  %v59 = vunpack.c.h.bf16 %v23
  %v60 = vunpack.c.l.bf16 %v24
  %v61 = vunpack.c.h.bf16 %v24
  %v62 = vunpack.c.l.bf16 %v25
  %v63 = vunpack.c.h.bf16 %v25
  %v64 = vunpack.c.l.bf16 %v26
  %v65 = vunpack.c.h.bf16 %v26
  %v66 = vunpack.c.l.bf16 %v27
  %v67 = vunpack.c.h.bf16 %v27
  %v68 = vunpack.c.l.bf16 %v28
  %v69 = vunpack.c.h.bf16 %v28
  %v70 = vunpack.c.l.bf16 %v29
  %v71 = vunpack.c.h.bf16 %v29
  %v72 = vunpack.c.l.bf16 %v30
  %v73 = vunpack.c.h.bf16 %v30
  %v74 = vunpack.c.l.bf16 %v31
  %v75 = vunpack.c.h.bf16 %v31
  %v76 = vunpack.c.l.bf16 %v32
  %v77 = vunpack.c.h.bf16 %v32
  %v78 = vunpack.c.l.bf16 %v33
  %v79 = vunpack.c.h.bf16 %v33
  %v80 = vunpack.c.l.bf16 %v34
  %v81 = vunpack.c.h.bf16 %v34
  %v82 = vunpack.c.l.bf16 %v35
  %v83 = vunpack.c.h.bf16 %v35
  %v84 = vunpack.c.l.bf16 %v36
  %v85 = vunpack.c.h.bf16 %v36
  %v86 = vunpack.c.l.bf16 %v37
  %v87 = vunpack.c.h.bf16 %v37
  %v88 = vunpack.c.l.bf16 %v38
  %v89 = vunpack.c.h.bf16 %v38
  %v90 = vunpack.c.l.bf16 %v39
  %v91 = vunpack.c.h.bf16 %v39
  %v92 = vunpack.c.l.bf16 %v40
  %v93 = vunpack.c.h.bf16 %v40
  %v94 = vunpack.c.l.bf16 %v41
  %v95 = vunpack.c.h.bf16 %v41
  %v96 = vunpack.c.l.bf16 %v42
  %v97 = vunpack.c.h.bf16 %v42
  %v98 = vunpack.c.l.bf16 %v43
  %v99 = vunpack.c.h.bf16 %v43
  %v100 = vunpack.c.l.bf16 %v44
  %v101 = vunpack.c.h.bf16 %v44
  %v102 = vunpack.c.l.bf16 %v45
  %v103 = vunpack.c.h.bf16 %v45
  %v104 = vunpack.c.l.bf16 %v46
  %v105 = vunpack.c.h.bf16 %v46
  %v106 = vunpack.c.l.bf16 %v47
  %v107 = vunpack.c.h.bf16 %v47
  %v108 = vunpack.c.l.bf16 %v48
  %v109 = vunpack.c.h.bf16 %v48
  %v110 = vunpack.c.l.bf16 %v49
  %v111 = vunpack.c.h.bf16 %v49
  %v112 = vunpack.c.l.bf16 %v50
  %v113 = vunpack.c.h.bf16 %v50
  %v114 = vunpack.c.l.bf16 %v51
  %v115 = vunpack.c.h.bf16 %v51
  %v116 = vld [vmem:[%s1] sm:$0xff]
  %v117 = vld [vmem:[%s1 + $0x8] sm:$0xff]
  %v118 = vld [vmem:[%s1 + $0x10] sm:$0xff]
  %v119 = vld [vmem:[%s1 + $0x18] sm:$0xff]
  %v120 = vld [vmem:[%s1 + $0x20] sm:$0xff]
  %v121 = vld [vmem:[%s1 + $0x28] sm:$0xff]
  %v122 = vld [vmem:[%s1 + $0x30] sm:$0xff]
  %v123 = vld [vmem:[%s1 + $0x38] sm:$0xff]
  %v124 = vld [vmem:[%s1 + $0x40] sm:$0xff]
  %v125 = vld [vmem:[%s1 + $0x48] sm:$0xff]
  %v126 = vld [vmem:[%s1 + $0x50] sm:$0xff]
  %v127 = vld [vmem:[%s1 + $0x58] sm:$0xff]
  %v128 = vld [vmem:[%s1 + $0x60] sm:$0xff]
  %v129 = vld [vmem:[%s1 + $0x68] sm:$0xff]
  %v130 = vld [vmem:[%s1 + $0x70] sm:$0xff]
  %v131 = vld [vmem:[%s1 + $0x78] sm:$0xff]
  %v132 = vld [vmem:[%s1 + $0x80] sm:$0xff]
  %v133 = vld [vmem:[%s1 + $0x88] sm:$0xff]
  %v134 = vld [vmem:[%s1 + $0x90] sm:$0xff]
  %v135 = vld [vmem:[%s1 + $0x98] sm:$0xff]
  %v136 = vld [vmem:[%s1 + $0xa0] sm:$0xff]
  %v137 = vld [vmem:[%s1 + $0xa8] sm:$0xff]
  %v138 = vld [vmem:[%s1 + $0xb0] sm:$0xff]
  %v139 = vld [vmem:[%s1 + $0xb8] sm:$0xff]
  %v140 = vld [vmem:[%s1 + $0xc0] sm:$0xff]
  %v141 = vld [vmem:[%s1 + $0xc8] sm:$0xff]
  %v142 = vld [vmem:[%s1 + $0xd0] sm:$0xff]
  %v143 = vld [vmem:[%s1 + $0xd8] sm:$0xff]
  %v144 = vld [vmem:[%s1 + $0xe0] sm:$0xff]
  %v145 = vld [vmem:[%s1 + $0xe8] sm:$0xff]
  %v146 = vld [vmem:[%s1 + $0xf0] sm:$0xff]
  %v147 = vld [vmem:[%s1 + $0xf8] sm:$0xff]
  %v148 = vld [vmem:[%s2] sm:$0x1]
  %v150 = vlaneseq
  %v151 = vshrl.u32 %v150, 7
  %v152 = vsub.s32 0, %v151
  %v153 = vrot.slane %v148, %v152
  %155 = vmatprep.subr.mxu0 0.0
  %156 = vmatpush1.msra.mxu0 %v116
  %157 = vmatprep.subr.mxu0 0.0
  %158 = vmatpush1.msra.mxu0 %v117
  %159 = vmatprep.subr.mxu0 0.0
  %160 = vmatpush1.msra.mxu0 %v118
  %161 = vmatprep.subr.mxu0 0.0
  %162 = vmatpush1.msra.mxu0 %v119
  %163 = vmatprep.subr.mxu0 0.0
  %164 = vmatpush1.msra.mxu0 %v120
  %165 = vmatprep.subr.mxu0 0.0
  %166 = vmatpush1.msra.mxu0 %v121
  %167 = vmatprep.subr.mxu0 0.0
  %168 = vmatpush1.msra.mxu0 %v122
  %169 = vmatprep.subr.mxu0 0.0
  %170 = vmatpush1.msra.mxu0 %v123
  %171 = vmatprep.subr.mxu0 0.0
  %172 = vmatpush1.msra.mxu0 %v124
  %173 = vmatprep.subr.mxu0 0.0
  %174 = vmatpush1.msra.mxu0 %v125
  %175 = vmatprep.subr.mxu0 0.0
  %176 = vmatpush1.msra.mxu0 %v126
  %177 = vmatprep.subr.mxu0 0.0
  %178 = vmatpush1.msra.mxu0 %v127
  %179 = vmatprep.subr.mxu0 0.0
  %180 = vmatpush1.msra.mxu0 %v128
  %181 = vmatprep.subr.mxu0 0.0
  %182 = vmatpush1.msra.mxu0 %v129
  %183 = vmatprep.subr.mxu0 0.0
  %184 = vmatpush1.msra.mxu0 %v130
  %185 = vmatprep.subr.mxu0 0.0
  %186 = vmatpush1.msra.mxu0 %v131
  %187 = vmatprep.subr.mxu0 0.0
  %188 = vmatpush1.msra.mxu0 %v132
  %189 = vmatprep.subr.mxu0 0.0
  %190 = vmatpush1.msra.mxu0 %v133
  %191 = vmatprep.subr.mxu0 0.0
  %192 = vmatpush1.msra.mxu0 %v134
  %193 = vmatprep.subr.mxu0 0.0
  %194 = vmatpush1.msra.mxu0 %v135
  %195 = vmatprep.subr.mxu0 0.0
  %196 = vmatpush1.msra.mxu0 %v136
  %197 = vmatprep.subr.mxu0 0.0
  %198 = vmatpush1.msra.mxu0 %v137
  %199 = vmatprep.subr.mxu0 0.0
  %200 = vmatpush1.msra.mxu0 %v138
  %201 = vmatprep.subr.mxu0 0.0
  %202 = vmatpush1.msra.mxu0 %v139
  %203 = vmatprep.subr.mxu0 0.0
  %204 = vmatpush1.msra.mxu0 %v140
  %205 = vmatprep.subr.mxu0 0.0
  %206 = vmatpush1.msra.mxu0 %v141
  %207 = vmatprep.subr.mxu0 0.0
  %208 = vmatpush1.msra.mxu0 %v142
  %209 = vmatprep.subr.mxu0 0.0
  %210 = vmatpush1.msra.mxu0 %v143
  %211 = vmatprep.subr.mxu0 0.0
  %212 = vmatpush1.msra.mxu0 %v144
  %213 = vmatprep.subr.mxu0 0.0
  %214 = vmatpush1.msra.mxu0 %v145
  %215 = vmatprep.subr.mxu0 0.0
  %216 = vmatpush1.msra.mxu0 %v146
  %217 = vmatprep.subr.mxu0 0.0
  %218 = vmatpush1.msra.mxu0 %v147
  %219 = vmatprep.mubr.f32.mxu0 %v53
  %220 = vmatmul.mubr.f32.gmra.mrb[0].mxu0 %v52
  %v221 = vpop.f32.mrb[0].mxu0
  %v222 = vadd.f32 %v153, %v221
  %v223 = vpop.f32.mrb[0].mxu0
  %224 = vmatprep.mubr.f32.mxu0 %v55
  %225 = vmatmul.mubr.f32.gmra.mrb[0].mxu0 %v54
  %v226 = vpop.f32.mrb[0].mxu0
  %v227 = vadd.f32 %v153, %v226
  %v228 = vpop.f32.mrb[0].mxu0
  %229 = vmatprep.mubr.f32.mxu0 %v57
  %230 = vmatmul.mubr.f32.gmra.mrb[0].mxu0 %v56
  %v231 = vpop.f32.mrb[0].mxu0
  %v232 = vadd.f32 %v153, %v231
  %v233 = vpop.f32.mrb[0].mxu0
  %234 = vmatprep.mubr.f32.mxu0 %v59
  %235 = vmatmul.mubr.f32.gmra.mrb[0].mxu0 %v58
  %v236 = vpop.f32.mrb[0].mxu0
  %v237 = vadd.f32 %v153, %v236
  %v238 = vpop.f32.mrb[0].mxu0
  %239 = vmatprep.mubr.f32.mxu0 %v61
  %240 = vmatmul.mubr.f32.gmra.mrb[0].mxu0 %v60
  %v241 = vpop.f32.mrb[0].mxu0
  %v242 = vadd.f32 %v153, %v241
  %v243 = vpop.f32.mrb[0].mxu0
  %244 = vmatprep.mubr.f32.mxu0 %v63
  %245 = vmatmul.mubr.f32.gmra.mrb[0].mxu0 %v62
  %v246 = vpop.f32.mrb[0].mxu0
  %v247 = vadd.f32 %v153, %v246
  %v248 = vpop.f32.mrb[0].mxu0
  %249 = vmatprep.mubr.f32.mxu0 %v65
  %250 = vmatmul.mubr.f32.gmra.mrb[0].mxu0 %v64
  %v251 = vpop.f32.mrb[0].mxu0
  %v252 = vadd.f32 %v153, %v251
  %v253 = vpop.f32.mrb[0].mxu0
  %254 = vmatprep.mubr.f32.mxu0 %v67
  %255 = vmatmul.mubr.f32.gmra.mrb[0].mxu0 %v66
  %v256 = vpop.f32.mrb[0].mxu0
  %v257 = vadd.f32 %v153, %v256
  %v258 = vpop.f32.mrb[0].mxu0
  %259 = vmatprep.mubr.f32.mxu0 %v69
  %260 = vmatmul.mubr.f32.gmra.mrb[0].mxu0 %v68
  %v261 = vpop.f32.mrb[0].mxu0
  %v262 = vadd.f32 %v153, %v261
  %v263 = vpop.f32.mrb[0].mxu0
  %264 = vmatprep.mubr.f32.mxu0 %v71
  %265 = vmatmul.mubr.f32.gmra.mrb[0].mxu0 %v70
  %v266 = vpop.f32.mrb[0].mxu0
  %v267 = vadd.f32 %v153, %v266
  %v268 = vpop.f32.mrb[0].mxu0
  %269 = vmatprep.mubr.f32.mxu0 %v73
  %270 = vmatmul.mubr.f32.gmra.mrb[0].mxu0 %v72
  %v271 = vpop.f32.mrb[0].mxu0
  %v272 = vadd.f32 %v153, %v271
  %v273 = vpop.f32.mrb[0].mxu0
  %274 = vmatprep.mubr.f32.mxu0 %v75
  %275 = vmatmul.mubr.f32.gmra.mrb[0].mxu0 %v74
  %v276 = vpop.f32.mrb[0].mxu0
  %v277 = vadd.f32 %v153, %v276
  %v278 = vpop.f32.mrb[0].mxu0
  %279 = vmatprep.mubr.f32.mxu0 %v77
  %280 = vmatmul.mubr.f32.gmra.mrb[0].mxu0 %v76
  %v281 = vpop.f32.mrb[0].mxu0
  %v282 = vadd.f32 %v153, %v281
  %v283 = vpop.f32.mrb[0].mxu0
  %284 = vmatprep.mubr.f32.mxu0 %v79
  %285 = vmatmul.mubr.f32.gmra.mrb[0].mxu0 %v78
  %v286 = vpop.f32.mrb[0].mxu0
  %v287 = vadd.f32 %v153, %v286
  %v288 = vpop.f32.mrb[0].mxu0
  %289 = vmatprep.mubr.f32.mxu0 %v81
  %290 = vmatmul.mubr.f32.gmra.mrb[0].mxu0 %v80
  %v291 = vpop.f32.mrb[0].mxu0
  %v292 = vadd.f32 %v153, %v291
  %v293 = vpop.f32.mrb[0].mxu0
  %294 = vmatprep.mubr.f32.mxu0 %v83
  %295 = vmatmul.mubr.f32.gmra.mrb[0].mxu0 %v82
  %v296 = vpop.f32.mrb[0].mxu0
  %v297 = vadd.f32 %v153, %v296
  %v298 = vpop.f32.mrb[0].mxu0
  %299 = vmatprep.mubr.f32.mxu0 %v85
  %300 = vmatmul.mubr.f32.gmra.mrb[0].mxu0 %v84
  %v301 = vpop.f32.mrb[0].mxu0
  %v302 = vadd.f32 %v153, %v301
  %v303 = vpop.f32.mrb[0].mxu0
  %304 = vmatprep.mubr.f32.mxu0 %v87
  %305 = vmatmul.mubr.f32.gmra.mrb[0].mxu0 %v86
  %v306 = vpop.f32.mrb[0].mxu0
  %v307 = vadd.f32 %v153, %v306
  %v308 = vpop.f32.mrb[0].mxu0
  %309 = vmatprep.mubr.f32.mxu0 %v89
  %310 = vmatmul.mubr.f32.gmra.mrb[0].mxu0 %v88
  %v311 = vpop.f32.mrb[0].mxu0
  %v312 = vadd.f32 %v153, %v311
  %v313 = vpop.f32.mrb[0].mxu0
  %314 = vmatprep.mubr.f32.mxu0 %v91
  %315 = vmatmul.mubr.f32.gmra.mrb[0].mxu0 %v90
  %v316 = vpop.f32.mrb[0].mxu0
  %v317 = vadd.f32 %v153, %v316
  %v318 = vpop.f32.mrb[0].mxu0
  %319 = vmatprep.mubr.f32.mxu0 %v93
  %320 = vmatmul.mubr.f32.gmra.mrb[0].mxu0 %v92
  %v321 = vpop.f32.mrb[0].mxu0
  %v322 = vadd.f32 %v153, %v321
  %v323 = vpop.f32.mrb[0].mxu0
  %324 = vmatprep.mubr.f32.mxu0 %v95
  %325 = vmatmul.mubr.f32.gmra.mrb[0].mxu0 %v94
  %v326 = vpop.f32.mrb[0].mxu0
  %v327 = vadd.f32 %v153, %v326
  %v328 = vpop.f32.mrb[0].mxu0
  %329 = vmatprep.mubr.f32.mxu0 %v97
  %330 = vmatmul.mubr.f32.gmra.mrb[0].mxu0 %v96
  %v331 = vpop.f32.mrb[0].mxu0
  %v332 = vadd.f32 %v153, %v331
  %v333 = vpop.f32.mrb[0].mxu0
  %334 = vmatprep.mubr.f32.mxu0 %v99
  %335 = vmatmul.mubr.f32.gmra.mrb[0].mxu0 %v98
  %v336 = vpop.f32.mrb[0].mxu0
  %v337 = vadd.f32 %v153, %v336
  %v338 = vpop.f32.mrb[0].mxu0
  %339 = vmatprep.mubr.f32.mxu0 %v101
  %340 = vmatmul.mubr.f32.gmra.mrb[0].mxu0 %v100
  %v341 = vpop.f32.mrb[0].mxu0
  %v342 = vadd.f32 %v153, %v341
  %v343 = vpop.f32.mrb[0].mxu0
  %344 = vmatprep.mubr.f32.mxu0 %v103
  %345 = vmatmul.mubr.f32.gmra.mrb[0].mxu0 %v102
  %v346 = vpop.f32.mrb[0].mxu0
  %v347 = vadd.f32 %v153, %v346
  %v348 = vpop.f32.mrb[0].mxu0
  %349 = vmatprep.mubr.f32.mxu0 %v105
  %350 = vmatmul.mubr.f32.gmra.mrb[0].mxu0 %v104
  %v351 = vpop.f32.mrb[0].mxu0
  %v352 = vadd.f32 %v153, %v351
  %v353 = vpop.f32.mrb[0].mxu0
  %354 = vmatprep.mubr.f32.mxu0 %v107
  %355 = vmatmul.mubr.f32.gmra.mrb[0].mxu0 %v106
  %v356 = vpop.f32.mrb[0].mxu0
  %v357 = vadd.f32 %v153, %v356
  %v358 = vpop.f32.mrb[0].mxu0
  %359 = vmatprep.mubr.f32.mxu0 %v109
  %360 = vmatmul.mubr.f32.gmra.mrb[0].mxu0 %v108
  %v361 = vpop.f32.mrb[0].mxu0
  %v362 = vadd.f32 %v153, %v361
  %v363 = vpop.f32.mrb[0].mxu0
  %364 = vmatprep.mubr.f32.mxu0 %v111
  %365 = vmatmul.mubr.f32.gmra.mrb[0].mxu0 %v110
  %v366 = vpop.f32.mrb[0].mxu0
  %v367 = vadd.f32 %v153, %v366
  %v368 = vpop.f32.mrb[0].mxu0
  %369 = vmatprep.mubr.f32.mxu0 %v113
  %370 = vmatmul.mubr.f32.gmra.mrb[0].mxu0 %v112
  %v371 = vpop.f32.mrb[0].mxu0
  %v372 = vadd.f32 %v153, %v371
  %v373 = vpop.f32.mrb[0].mxu0
  %374 = vmatprep.mubr.f32.mxu0 %v115
  %375 = vmatmul.mubr.f32.gmra.mrb[0].mxu0 %v114
  %v376 = vpop.f32.mrb[0].mxu0
  %v377 = vadd.f32 %v153, %v376
  %v378 = vpop.f32.mrb[0].mxu0
  %379 = vdwg.mxu0
  %v380 = vmax.f32 %v222, 0.0
  %v381 = vmax.f32 %v227, 0.0
  %v382 = vmax.f32 %v232, 0.0
  %v383 = vmax.f32 %v237, 0.0
  %v384 = vmax.f32 %v242, 0.0
  %v385 = vmax.f32 %v247, 0.0
  %v386 = vmax.f32 %v252, 0.0
  %v387 = vmax.f32 %v257, 0.0
  %v388 = vmax.f32 %v262, 0.0
  %v389 = vmax.f32 %v267, 0.0
  %v390 = vmax.f32 %v272, 0.0
  %v391 = vmax.f32 %v277, 0.0
  %v392 = vmax.f32 %v282, 0.0
  %v393 = vmax.f32 %v287, 0.0
  %v394 = vmax.f32 %v292, 0.0
  %v395 = vmax.f32 %v297, 0.0
  %v396 = vmax.f32 %v302, 0.0
  %v397 = vmax.f32 %v307, 0.0
  %v398 = vmax.f32 %v312, 0.0
  %v399 = vmax.f32 %v317, 0.0
  %v400 = vmax.f32 %v322, 0.0
  %v401 = vmax.f32 %v327, 0.0
  %v402 = vmax.f32 %v332, 0.0
  %v403 = vmax.f32 %v337, 0.0
  %v404 = vmax.f32 %v342, 0.0
  %v405 = vmax.f32 %v347, 0.0
  %v406 = vmax.f32 %v352, 0.0
  %v407 = vmax.f32 %v357, 0.0
  %v408 = vmax.f32 %v362, 0.0
  %v409 = vmax.f32 %v367, 0.0
  %v410 = vmax.f32 %v372, 0.0
  %v411 = vmax.f32 %v377, 0.0
  %v412 = vld [vmem:[%s3] sm:$0x1]
  %v414 = vlaneseq
  %v415 = vshrl.u32 %v414, 7
  %v416 = vsub.s32 0, %v415
  %v417 = vrot.slane %v412, %v416
  %v419 = vmul.f32 %v380, %v417
  %v420 = vmul.f32 %v381, %v417
  %v421 = vmul.f32 %v382, %v417
  %v422 = vmul.f32 %v383, %v417
  %v423 = vmul.f32 %v384, %v417
  %v424 = vmul.f32 %v385, %v417
  %v425 = vmul.f32 %v386, %v417
  %v426 = vmul.f32 %v387, %v417
  %v427 = vmul.f32 %v388, %v417
  %v428 = vmul.f32 %v389, %v417
  %v429 = vmul.f32 %v390, %v417
  %v430 = vmul.f32 %v391, %v417
  %v431 = vmul.f32 %v392, %v417
  %v432 = vmul.f32 %v393, %v417
  %v433 = vmul.f32 %v394, %v417
  %v434 = vmul.f32 %v395, %v417
  %v435 = vmul.f32 %v396, %v417
  %v436 = vmul.f32 %v397, %v417
  %v437 = vmul.f32 %v398, %v417
  %v438 = vmul.f32 %v399, %v417
  %v439 = vmul.f32 %v400, %v417
  %v440 = vmul.f32 %v401, %v417
  %v441 = vmul.f32 %v402, %v417
  %v442 = vmul.f32 %v403, %v417
  %v443 = vmul.f32 %v404, %v417
  %v444 = vmul.f32 %v405, %v417
  %v445 = vmul.f32 %v406, %v417
  %v446 = vmul.f32 %v407, %v417
  %v447 = vmul.f32 %v408, %v417
  %v448 = vmul.f32 %v409, %v417
  %v449 = vmul.f32 %v410, %v417
  %v450 = vmul.f32 %v411, %v417
  %451 = vadd.xlane.f32.xlu0 %v419
  %v452 = vpop.xlane.xlu0 %451
  %453 = vadd.xlane.f32.xlu0 %v420
  %v454 = vpop.xlane.xlu0 %453
  %455 = vadd.xlane.f32.xlu0 %v421
  %v456 = vpop.xlane.xlu0 %455
  %457 = vadd.xlane.f32.xlu0 %v422
  %v458 = vpop.xlane.xlu0 %457
  %459 = vadd.xlane.f32.xlu0 %v423
  %v460 = vpop.xlane.xlu0 %459
  %461 = vadd.xlane.f32.xlu0 %v424
  %v462 = vpop.xlane.xlu0 %461
  %463 = vadd.xlane.f32.xlu0 %v425
  %v464 = vpop.xlane.xlu0 %463
  %465 = vadd.xlane.f32.xlu0 %v426
  %v466 = vpop.xlane.xlu0 %465
  %467 = vadd.xlane.f32.xlu0 %v427
  %v468 = vpop.xlane.xlu0 %467
  %469 = vadd.xlane.f32.xlu0 %v428
  %v470 = vpop.xlane.xlu0 %469
  %471 = vadd.xlane.f32.xlu0 %v429
  %v472 = vpop.xlane.xlu0 %471
  %473 = vadd.xlane.f32.xlu0 %v430
  %v474 = vpop.xlane.xlu0 %473
  %475 = vadd.xlane.f32.xlu0 %v431
  %v476 = vpop.xlane.xlu0 %475
  %477 = vadd.xlane.f32.xlu0 %v432
  %v478 = vpop.xlane.xlu0 %477
  %479 = vadd.xlane.f32.xlu0 %v433
  %v480 = vpop.xlane.xlu0 %479
  %481 = vadd.xlane.f32.xlu0 %v434
  %v482 = vpop.xlane.xlu0 %481
  %483 = vadd.xlane.f32.xlu0 %v435
  %v484 = vpop.xlane.xlu0 %483
  %485 = vadd.xlane.f32.xlu0 %v436
  %v486 = vpop.xlane.xlu0 %485
  %487 = vadd.xlane.f32.xlu0 %v437
  %v488 = vpop.xlane.xlu0 %487
  %489 = vadd.xlane.f32.xlu0 %v438
  %v490 = vpop.xlane.xlu0 %489
  %491 = vadd.xlane.f32.xlu0 %v439
  %v492 = vpop.xlane.xlu0 %491
  %493 = vadd.xlane.f32.xlu0 %v440
  %v494 = vpop.xlane.xlu0 %493
  %495 = vadd.xlane.f32.xlu0 %v441
  %v496 = vpop.xlane.xlu0 %495
  %497 = vadd.xlane.f32.xlu0 %v442
  %v498 = vpop.xlane.xlu0 %497
  %499 = vadd.xlane.f32.xlu0 %v443
  %v500 = vpop.xlane.xlu0 %499
  %501 = vadd.xlane.f32.xlu0 %v444
  %v502 = vpop.xlane.xlu0 %501
  %503 = vadd.xlane.f32.xlu0 %v445
  %v504 = vpop.xlane.xlu0 %503
  %505 = vadd.xlane.f32.xlu0 %v446
  %v506 = vpop.xlane.xlu0 %505
  %507 = vadd.xlane.f32.xlu0 %v447
  %v508 = vpop.xlane.xlu0 %507
  %509 = vadd.xlane.f32.xlu0 %v448
  %v510 = vpop.xlane.xlu0 %509
  %511 = vadd.xlane.f32.xlu0 %v449
  %v512 = vpop.xlane.xlu0 %511
  %513 = vadd.xlane.f32.xlu0 %v450
  %v514 = vpop.xlane.xlu0 %513
  %v515 = vadd.f32 %v52, %v53
  %516 = vadd.xlane.f32.xlu0 %v515
  %v517 = vpop.xlane.xlu0 %516
  %v518 = vadd.f32 %v54, %v55
  %519 = vadd.xlane.f32.xlu0 %v518
  %v520 = vpop.xlane.xlu0 %519
  %v521 = vadd.f32 %v56, %v57
  %522 = vadd.xlane.f32.xlu0 %v521
  %v523 = vpop.xlane.xlu0 %522
  %v524 = vadd.f32 %v58, %v59
  %525 = vadd.xlane.f32.xlu0 %v524
  %v526 = vpop.xlane.xlu0 %525
  %v527 = vadd.f32 %v60, %v61
  %528 = vadd.xlane.f32.xlu0 %v527
  %v529 = vpop.xlane.xlu0 %528
  %v530 = vadd.f32 %v62, %v63
  %531 = vadd.xlane.f32.xlu0 %v530
  %v532 = vpop.xlane.xlu0 %531
  %v533 = vadd.f32 %v64, %v65
  %534 = vadd.xlane.f32.xlu0 %v533
  %v535 = vpop.xlane.xlu0 %534
  %v536 = vadd.f32 %v66, %v67
  %537 = vadd.xlane.f32.xlu0 %v536
  %v538 = vpop.xlane.xlu0 %537
  %v539 = vadd.f32 %v68, %v69
  %540 = vadd.xlane.f32.xlu0 %v539
  %v541 = vpop.xlane.xlu0 %540
  %v542 = vadd.f32 %v70, %v71
  %543 = vadd.xlane.f32.xlu0 %v542
  %v544 = vpop.xlane.xlu0 %543
  %v545 = vadd.f32 %v72, %v73
  %546 = vadd.xlane.f32.xlu0 %v545
  %v547 = vpop.xlane.xlu0 %546
  %v548 = vadd.f32 %v74, %v75
  %549 = vadd.xlane.f32.xlu0 %v548
  %v550 = vpop.xlane.xlu0 %549
  %v551 = vadd.f32 %v76, %v77
  %552 = vadd.xlane.f32.xlu0 %v551
  %v553 = vpop.xlane.xlu0 %552
  %v554 = vadd.f32 %v78, %v79
  %555 = vadd.xlane.f32.xlu0 %v554
  %v556 = vpop.xlane.xlu0 %555
  %v557 = vadd.f32 %v80, %v81
  %558 = vadd.xlane.f32.xlu0 %v557
  %v559 = vpop.xlane.xlu0 %558
  %v560 = vadd.f32 %v82, %v83
  %561 = vadd.xlane.f32.xlu0 %v560
  %v562 = vpop.xlane.xlu0 %561
  %v563 = vadd.f32 %v84, %v85
  %564 = vadd.xlane.f32.xlu0 %v563
  %v565 = vpop.xlane.xlu0 %564
  %v566 = vadd.f32 %v86, %v87
  %567 = vadd.xlane.f32.xlu0 %v566
  %v568 = vpop.xlane.xlu0 %567
  %v569 = vadd.f32 %v88, %v89
  %570 = vadd.xlane.f32.xlu0 %v569
  %v571 = vpop.xlane.xlu0 %570
  %v572 = vadd.f32 %v90, %v91
  %573 = vadd.xlane.f32.xlu0 %v572
  %v574 = vpop.xlane.xlu0 %573
  %v575 = vadd.f32 %v92, %v93
  %576 = vadd.xlane.f32.xlu0 %v575
  %v577 = vpop.xlane.xlu0 %576
  %v578 = vadd.f32 %v94, %v95
  %579 = vadd.xlane.f32.xlu0 %v578
  %v580 = vpop.xlane.xlu0 %579
  %v581 = vadd.f32 %v96, %v97
  %582 = vadd.xlane.f32.xlu0 %v581
  %v583 = vpop.xlane.xlu0 %582
  %v584 = vadd.f32 %v98, %v99
  %585 = vadd.xlane.f32.xlu0 %v584
  %v586 = vpop.xlane.xlu0 %585
  %v587 = vadd.f32 %v100, %v101
  %588 = vadd.xlane.f32.xlu0 %v587
  %v589 = vpop.xlane.xlu0 %588
  %v590 = vadd.f32 %v102, %v103
  %591 = vadd.xlane.f32.xlu0 %v590
  %v592 = vpop.xlane.xlu0 %591
  %v593 = vadd.f32 %v104, %v105
  %594 = vadd.xlane.f32.xlu0 %v593
  %v595 = vpop.xlane.xlu0 %594
  %v596 = vadd.f32 %v106, %v107
  %597 = vadd.xlane.f32.xlu0 %v596
  %v598 = vpop.xlane.xlu0 %597
  %v599 = vadd.f32 %v108, %v109
  %600 = vadd.xlane.f32.xlu0 %v599
  %v601 = vpop.xlane.xlu0 %600
  %v602 = vadd.f32 %v110, %v111
  %603 = vadd.xlane.f32.xlu0 %v602
  %v604 = vpop.xlane.xlu0 %603
  %v605 = vadd.f32 %v112, %v113
  %606 = vadd.xlane.f32.xlu0 %v605
  %v607 = vpop.xlane.xlu0 %606
  %v608 = vadd.f32 %v114, %v115
  %609 = vadd.xlane.f32.xlu0 %v608
  %v610 = vpop.xlane.xlu0 %609
  %vm611 = vcmp.gt.f32.partialorder %v517, 0.0
  %vm612 = vcmp.gt.f32.partialorder %v520, 0.0
  %vm613 = vcmp.gt.f32.partialorder %v523, 0.0
  %vm614 = vcmp.gt.f32.partialorder %v526, 0.0
  %vm615 = vcmp.gt.f32.partialorder %v529, 0.0
  %vm616 = vcmp.gt.f32.partialorder %v532, 0.0
  %vm617 = vcmp.gt.f32.partialorder %v535, 0.0
  %vm618 = vcmp.gt.f32.partialorder %v538, 0.0
  %vm619 = vcmp.gt.f32.partialorder %v541, 0.0
  %vm620 = vcmp.gt.f32.partialorder %v544, 0.0
  %vm621 = vcmp.gt.f32.partialorder %v547, 0.0
  %vm622 = vcmp.gt.f32.partialorder %v550, 0.0
  %vm623 = vcmp.gt.f32.partialorder %v553, 0.0
  %vm624 = vcmp.gt.f32.partialorder %v556, 0.0
  %vm625 = vcmp.gt.f32.partialorder %v559, 0.0
  %vm626 = vcmp.gt.f32.partialorder %v562, 0.0
  %vm627 = vcmp.gt.f32.partialorder %v565, 0.0
  %vm628 = vcmp.gt.f32.partialorder %v568, 0.0
  %vm629 = vcmp.gt.f32.partialorder %v571, 0.0
  %vm630 = vcmp.gt.f32.partialorder %v574, 0.0
  %vm631 = vcmp.gt.f32.partialorder %v577, 0.0
  %vm632 = vcmp.gt.f32.partialorder %v580, 0.0
  %vm633 = vcmp.gt.f32.partialorder %v583, 0.0
  %vm634 = vcmp.gt.f32.partialorder %v586, 0.0
  %vm635 = vcmp.gt.f32.partialorder %v589, 0.0
  %vm636 = vcmp.gt.f32.partialorder %v592, 0.0
  %vm637 = vcmp.gt.f32.partialorder %v595, 0.0
  %vm638 = vcmp.gt.f32.partialorder %v598, 0.0
  %vm639 = vcmp.gt.f32.partialorder %v601, 0.0
  %vm640 = vcmp.gt.f32.partialorder %v604, 0.0
  %vm641 = vcmp.gt.f32.partialorder %v607, 0.0
  %vm642 = vcmp.gt.f32.partialorder %v610, 0.0
  %v643 = vsel %vm611, %v452, -inf
  %v644 = vsel %vm612, %v454, -inf
  %v645 = vsel %vm613, %v456, -inf
  %v646 = vsel %vm614, %v458, -inf
  %v647 = vsel %vm615, %v460, -inf
  %v648 = vsel %vm616, %v462, -inf
  %v649 = vsel %vm617, %v464, -inf
  %v650 = vsel %vm618, %v466, -inf
  %v651 = vsel %vm619, %v468, -inf
  %v652 = vsel %vm620, %v470, -inf
  %v653 = vsel %vm621, %v472, -inf
  %v654 = vsel %vm622, %v474, -inf
  %v655 = vsel %vm623, %v476, -inf
  %v656 = vsel %vm624, %v478, -inf
  %v657 = vsel %vm625, %v480, -inf
  %v658 = vsel %vm626, %v482, -inf
  %v659 = vsel %vm627, %v484, -inf
  %v660 = vsel %vm628, %v486, -inf
  %v661 = vsel %vm629, %v488, -inf
  %v662 = vsel %vm630, %v490, -inf
  %v663 = vsel %vm631, %v492, -inf
  %v664 = vsel %vm632, %v494, -inf
  %v665 = vsel %vm633, %v496, -inf
  %v666 = vsel %vm634, %v498, -inf
  %v667 = vsel %vm635, %v500, -inf
  %v668 = vsel %vm636, %v502, -inf
  %v669 = vsel %vm637, %v504, -inf
  %v670 = vsel %vm638, %v506, -inf
  %v671 = vsel %vm639, %v508, -inf
  %v672 = vsel %vm640, %v510, -inf
  %v673 = vsel %vm641, %v512, -inf
  %v674 = vsel %vm642, %v514, -inf
  %v675 = vmax.f32 %v643, %v647
  %v676 = vmax.f32 %v644, %v648
  %v677 = vmax.f32 %v645, %v649
  %v678 = vmax.f32 %v646, %v650
  %v679 = vmax.f32 %v675, %v651
  %v680 = vmax.f32 %v676, %v652
  %v681 = vmax.f32 %v677, %v653
  %v682 = vmax.f32 %v678, %v654
  %v683 = vmax.f32 %v679, %v655
  %v684 = vmax.f32 %v680, %v656
  %v685 = vmax.f32 %v681, %v657
  %v686 = vmax.f32 %v682, %v658
  %v687 = vmax.f32 %v683, %v659
  %v688 = vmax.f32 %v684, %v660
  %v689 = vmax.f32 %v685, %v661
  %v690 = vmax.f32 %v686, %v662
  %v691 = vmax.f32 %v687, %v663
  %v692 = vmax.f32 %v688, %v664
  %v693 = vmax.f32 %v689, %v665
  %v694 = vmax.f32 %v690, %v666
  %v695 = vmax.f32 %v691, %v667
  %v696 = vmax.f32 %v692, %v668
  %v697 = vmax.f32 %v693, %v669
  %v698 = vmax.f32 %v694, %v670
  %v699 = vmax.f32 %v695, %v671
  %v700 = vmax.f32 %v696, %v672
  %v701 = vmax.f32 %v697, %v673
  %v702 = vmax.f32 %v698, %v674
  %v703 = vmax.f32 %v699, %v700
  %v704 = vmax.f32 %v701, %v702
  %v705 = vmax.f32 %v703, %v704
  %v706 = vrot.slane %v705, 4
  %v707 = vmax.f32 %v705, %v706
  %v708 = vrot.slane %v707, 2
  %v709 = vmax.f32 %v707, %v708
  %v710 = vrot.slane %v709, 1
  %v711 = vmax.f32 %v709, %v710
  %s712 = vtos %v711
  %v713 = vstv %s712
  %v714 = vsub.f32 %v452, %v713
  %v715 = vsub.f32 %v454, %v713
  %v716 = vsub.f32 %v456, %v713
  %v717 = vsub.f32 %v458, %v713
  %v718 = vsub.f32 %v460, %v713
  %v719 = vsub.f32 %v462, %v713
  %v720 = vsub.f32 %v464, %v713
  %v721 = vsub.f32 %v466, %v713
  %v722 = vsub.f32 %v468, %v713
  %v723 = vsub.f32 %v470, %v713
  %v724 = vsub.f32 %v472, %v713
  %v725 = vsub.f32 %v474, %v713
  %v726 = vsub.f32 %v476, %v713
  %v727 = vsub.f32 %v478, %v713
  %v728 = vsub.f32 %v480, %v713
  %v729 = vsub.f32 %v482, %v713
  %v730 = vsub.f32 %v484, %v713
  %v731 = vsub.f32 %v486, %v713
  %v732 = vsub.f32 %v488, %v713
  %v733 = vsub.f32 %v490, %v713
  %v734 = vsub.f32 %v492, %v713
  %v735 = vsub.f32 %v494, %v713
  %v736 = vsub.f32 %v496, %v713
  %v737 = vsub.f32 %v498, %v713
  %v738 = vsub.f32 %v500, %v713
  %v739 = vsub.f32 %v502, %v713
  %v740 = vsub.f32 %v504, %v713
  %v741 = vsub.f32 %v506, %v713
  %v742 = vsub.f32 %v508, %v713
  %v743 = vsub.f32 %v510, %v713
  %v744 = vsub.f32 %v512, %v713
  %v745 = vsub.f32 %v514, %v713
  %v746 = vmin.f32 %v714, 0.0
  %v747 = vmin.f32 %v715, 0.0
  %v748 = vmin.f32 %v716, 0.0
  %v749 = vmin.f32 %v717, 0.0
  %v750 = vmin.f32 %v718, 0.0
  %v751 = vmin.f32 %v719, 0.0
  %v752 = vmin.f32 %v720, 0.0
  %v753 = vmin.f32 %v721, 0.0
  %v754 = vmin.f32 %v722, 0.0
  %v755 = vmin.f32 %v723, 0.0
  %v756 = vmin.f32 %v724, 0.0
  %v757 = vmin.f32 %v725, 0.0
  %v758 = vmin.f32 %v726, 0.0
  %v759 = vmin.f32 %v727, 0.0
  %v760 = vmin.f32 %v728, 0.0
  %v761 = vmin.f32 %v729, 0.0
  %v762 = vmin.f32 %v730, 0.0
  %v763 = vmin.f32 %v731, 0.0
  %v764 = vmin.f32 %v732, 0.0
  %v765 = vmin.f32 %v733, 0.0
  %v766 = vmin.f32 %v734, 0.0
  %v767 = vmin.f32 %v735, 0.0
  %v768 = vmin.f32 %v736, 0.0
  %v769 = vmin.f32 %v737, 0.0
  %v770 = vmin.f32 %v738, 0.0
  %v771 = vmin.f32 %v739, 0.0
  %v772 = vmin.f32 %v740, 0.0
  %v773 = vmin.f32 %v741, 0.0
  %v774 = vmin.f32 %v742, 0.0
  %v775 = vmin.f32 %v743, 0.0
  %v776 = vmin.f32 %v744, 0.0
  %v777 = vmin.f32 %v745, 0.0
  %v778 = vmul.f32 %v746, 1.442695
  %v779 = vpow.pop %v778
  %v780 = vmul.f32 %v747, 1.442695
  %v781 = vpow.pop %v780
  %v782 = vmul.f32 %v748, 1.442695
  %v783 = vpow.pop %v782
  %v784 = vmul.f32 %v749, 1.442695
  %v785 = vpow.pop %v784
  %v786 = vmul.f32 %v750, 1.442695
  %v787 = vpow.pop %v786
  %v788 = vmul.f32 %v751, 1.442695
  %v789 = vpow.pop %v788
  %v790 = vmul.f32 %v752, 1.442695
  %v791 = vpow.pop %v790
  %v792 = vmul.f32 %v753, 1.442695
  %v793 = vpow.pop %v792
  %v794 = vmul.f32 %v754, 1.442695
  %v795 = vpow.pop %v794
  %v796 = vmul.f32 %v755, 1.442695
  %v797 = vpow.pop %v796
  %v798 = vmul.f32 %v756, 1.442695
  %v799 = vpow.pop %v798
  %v800 = vmul.f32 %v757, 1.442695
  %v801 = vpow.pop %v800
  %v802 = vmul.f32 %v758, 1.442695
  %v803 = vpow.pop %v802
  %v804 = vmul.f32 %v759, 1.442695
  %v805 = vpow.pop %v804
  %v806 = vmul.f32 %v760, 1.442695
  %v807 = vpow.pop %v806
  %v808 = vmul.f32 %v761, 1.442695
  %v809 = vpow.pop %v808
  %v810 = vmul.f32 %v762, 1.442695
  %v811 = vpow.pop %v810
  %v812 = vmul.f32 %v763, 1.442695
  %v813 = vpow.pop %v812
  %v814 = vmul.f32 %v764, 1.442695
  %v815 = vpow.pop %v814
  %v816 = vmul.f32 %v765, 1.442695
  %v817 = vpow.pop %v816
  %v818 = vmul.f32 %v766, 1.442695
  %v819 = vpow.pop %v818
  %v820 = vmul.f32 %v767, 1.442695
  %v821 = vpow.pop %v820
  %v822 = vmul.f32 %v768, 1.442695
  %v823 = vpow.pop %v822
  %v824 = vmul.f32 %v769, 1.442695
  %v825 = vpow.pop %v824
  %v826 = vmul.f32 %v770, 1.442695
  %v827 = vpow.pop %v826
  %v828 = vmul.f32 %v771, 1.442695
  %v829 = vpow.pop %v828
  %v830 = vmul.f32 %v772, 1.442695
  %v831 = vpow.pop %v830
  %v832 = vmul.f32 %v773, 1.442695
  %v833 = vpow.pop %v832
  %v834 = vmul.f32 %v774, 1.442695
  %v835 = vpow.pop %v834
  %v836 = vmul.f32 %v775, 1.442695
  %v837 = vpow.pop %v836
  %v838 = vmul.f32 %v776, 1.442695
  %v839 = vpow.pop %v838
  %v840 = vmul.f32 %v777, 1.442695
  %v841 = vpow.pop %v840
  %vm842 = vcmp.ne.f32.partialorder %v52, 0.0
  %vm843 = vcmp.ne.f32.partialorder %v53, 0.0
  %vm844 = vcmp.ne.f32.partialorder %v54, 0.0
  %vm845 = vcmp.ne.f32.partialorder %v55, 0.0
  %vm846 = vcmp.ne.f32.partialorder %v56, 0.0
  %vm847 = vcmp.ne.f32.partialorder %v57, 0.0
  %vm848 = vcmp.ne.f32.partialorder %v58, 0.0
  %vm849 = vcmp.ne.f32.partialorder %v59, 0.0
  %vm850 = vcmp.ne.f32.partialorder %v60, 0.0
  %vm851 = vcmp.ne.f32.partialorder %v61, 0.0
  %vm852 = vcmp.ne.f32.partialorder %v62, 0.0
  %vm853 = vcmp.ne.f32.partialorder %v63, 0.0
  %vm854 = vcmp.ne.f32.partialorder %v64, 0.0
  %vm855 = vcmp.ne.f32.partialorder %v65, 0.0
  %vm856 = vcmp.ne.f32.partialorder %v66, 0.0
  %vm857 = vcmp.ne.f32.partialorder %v67, 0.0
  %vm858 = vcmp.ne.f32.partialorder %v68, 0.0
  %vm859 = vcmp.ne.f32.partialorder %v69, 0.0
  %vm860 = vcmp.ne.f32.partialorder %v70, 0.0
  %vm861 = vcmp.ne.f32.partialorder %v71, 0.0
  %vm862 = vcmp.ne.f32.partialorder %v72, 0.0
  %vm863 = vcmp.ne.f32.partialorder %v73, 0.0
  %vm864 = vcmp.ne.f32.partialorder %v74, 0.0
  %vm865 = vcmp.ne.f32.partialorder %v75, 0.0
  %vm866 = vcmp.ne.f32.partialorder %v76, 0.0
  %vm867 = vcmp.ne.f32.partialorder %v77, 0.0
  %vm868 = vcmp.ne.f32.partialorder %v78, 0.0
  %vm869 = vcmp.ne.f32.partialorder %v79, 0.0
  %vm870 = vcmp.ne.f32.partialorder %v80, 0.0
  %vm871 = vcmp.ne.f32.partialorder %v81, 0.0
  %vm872 = vcmp.ne.f32.partialorder %v82, 0.0
  %vm873 = vcmp.ne.f32.partialorder %v83, 0.0
  %vm874 = vcmp.ne.f32.partialorder %v84, 0.0
  %vm875 = vcmp.ne.f32.partialorder %v85, 0.0
  %vm876 = vcmp.ne.f32.partialorder %v86, 0.0
  %vm877 = vcmp.ne.f32.partialorder %v87, 0.0
  %vm878 = vcmp.ne.f32.partialorder %v88, 0.0
  %vm879 = vcmp.ne.f32.partialorder %v89, 0.0
  %vm880 = vcmp.ne.f32.partialorder %v90, 0.0
  %vm881 = vcmp.ne.f32.partialorder %v91, 0.0
  %vm882 = vcmp.ne.f32.partialorder %v92, 0.0
  %vm883 = vcmp.ne.f32.partialorder %v93, 0.0
  %vm884 = vcmp.ne.f32.partialorder %v94, 0.0
  %vm885 = vcmp.ne.f32.partialorder %v95, 0.0
  %vm886 = vcmp.ne.f32.partialorder %v96, 0.0
  %vm887 = vcmp.ne.f32.partialorder %v97, 0.0
  %vm888 = vcmp.ne.f32.partialorder %v98, 0.0
  %vm889 = vcmp.ne.f32.partialorder %v99, 0.0
  %vm890 = vcmp.ne.f32.partialorder %v100, 0.0
  %vm891 = vcmp.ne.f32.partialorder %v101, 0.0
  %vm892 = vcmp.ne.f32.partialorder %v102, 0.0
  %vm893 = vcmp.ne.f32.partialorder %v103, 0.0
  %vm894 = vcmp.ne.f32.partialorder %v104, 0.0
  %vm895 = vcmp.ne.f32.partialorder %v105, 0.0
  %vm896 = vcmp.ne.f32.partialorder %v106, 0.0
  %vm897 = vcmp.ne.f32.partialorder %v107, 0.0
  %vm898 = vcmp.ne.f32.partialorder %v108, 0.0
  %vm899 = vcmp.ne.f32.partialorder %v109, 0.0
  %vm900 = vcmp.ne.f32.partialorder %v110, 0.0
  %vm901 = vcmp.ne.f32.partialorder %v111, 0.0
  %vm902 = vcmp.ne.f32.partialorder %v112, 0.0
  %vm903 = vcmp.ne.f32.partialorder %v113, 0.0
  %vm904 = vcmp.ne.f32.partialorder %v114, 0.0
  %vm905 = vcmp.ne.f32.partialorder %v115, 0.0
  %v906 = vsel %vm842, 1, 0
  %v907 = vsel %vm843, 1, 0
  %v908 = vsel %vm844, 1, 0
  %v909 = vsel %vm845, 1, 0
  %v910 = vsel %vm846, 1, 0
  %v911 = vsel %vm847, 1, 0
  %v912 = vsel %vm848, 1, 0
  %v913 = vsel %vm849, 1, 0
  %v914 = vsel %vm850, 1, 0
  %v915 = vsel %vm851, 1, 0
  %v916 = vsel %vm852, 1, 0
  %v917 = vsel %vm853, 1, 0
  %v918 = vsel %vm854, 1, 0
  %v919 = vsel %vm855, 1, 0
  %v920 = vsel %vm856, 1, 0
  %v921 = vsel %vm857, 1, 0
  %v922 = vsel %vm858, 1, 0
  %v923 = vsel %vm859, 1, 0
  %v924 = vsel %vm860, 1, 0
  %v925 = vsel %vm861, 1, 0
  %v926 = vsel %vm862, 1, 0
  %v927 = vsel %vm863, 1, 0
  %v928 = vsel %vm864, 1, 0
  %v929 = vsel %vm865, 1, 0
  %v930 = vsel %vm866, 1, 0
  %v931 = vsel %vm867, 1, 0
  %v932 = vsel %vm868, 1, 0
  %v933 = vsel %vm869, 1, 0
  %v934 = vsel %vm870, 1, 0
  %v935 = vsel %vm871, 1, 0
  %v936 = vsel %vm872, 1, 0
  %v937 = vsel %vm873, 1, 0
  %v938 = vsel %vm874, 1, 0
  %v939 = vsel %vm875, 1, 0
  %v940 = vsel %vm876, 1, 0
  %v941 = vsel %vm877, 1, 0
  %v942 = vsel %vm878, 1, 0
  %v943 = vsel %vm879, 1, 0
  %v944 = vsel %vm880, 1, 0
  %v945 = vsel %vm881, 1, 0
  %v946 = vsel %vm882, 1, 0
  %v947 = vsel %vm883, 1, 0
  %v948 = vsel %vm884, 1, 0
  %v949 = vsel %vm885, 1, 0
  %v950 = vsel %vm886, 1, 0
  %v951 = vsel %vm887, 1, 0
  %v952 = vsel %vm888, 1, 0
  %v953 = vsel %vm889, 1, 0
  %v954 = vsel %vm890, 1, 0
  %v955 = vsel %vm891, 1, 0
  %v956 = vsel %vm892, 1, 0
  %v957 = vsel %vm893, 1, 0
  %v958 = vsel %vm894, 1, 0
  %v959 = vsel %vm895, 1, 0
  %v960 = vsel %vm896, 1, 0
  %v961 = vsel %vm897, 1, 0
  %v962 = vsel %vm898, 1, 0
  %v963 = vsel %vm899, 1, 0
  %v964 = vsel %vm900, 1, 0
  %v965 = vsel %vm901, 1, 0
  %v966 = vsel %vm902, 1, 0
  %v967 = vsel %vm903, 1, 0
  %v968 = vsel %vm904, 1, 0
  %v969 = vsel %vm905, 1, 0
  %v970 = vcvt.s32.f32 %v906
  %v971 = vcvt.s32.f32 %v907
  %v972 = vcvt.s32.f32 %v908
  %v973 = vcvt.s32.f32 %v909
  %v974 = vcvt.s32.f32 %v910
  %v975 = vcvt.s32.f32 %v911
  %v976 = vcvt.s32.f32 %v912
  %v977 = vcvt.s32.f32 %v913
  %v978 = vcvt.s32.f32 %v914
  %v979 = vcvt.s32.f32 %v915
  %v980 = vcvt.s32.f32 %v916
  %v981 = vcvt.s32.f32 %v917
  %v982 = vcvt.s32.f32 %v918
  %v983 = vcvt.s32.f32 %v919
  %v984 = vcvt.s32.f32 %v920
  %v985 = vcvt.s32.f32 %v921
  %v986 = vcvt.s32.f32 %v922
  %v987 = vcvt.s32.f32 %v923
  %v988 = vcvt.s32.f32 %v924
  %v989 = vcvt.s32.f32 %v925
  %v990 = vcvt.s32.f32 %v926
  %v991 = vcvt.s32.f32 %v927
  %v992 = vcvt.s32.f32 %v928
  %v993 = vcvt.s32.f32 %v929
  %v994 = vcvt.s32.f32 %v930
  %v995 = vcvt.s32.f32 %v931
  %v996 = vcvt.s32.f32 %v932
  %v997 = vcvt.s32.f32 %v933
  %v998 = vcvt.s32.f32 %v934
  %v999 = vcvt.s32.f32 %v935
  %v1000 = vcvt.s32.f32 %v936
  %v1001 = vcvt.s32.f32 %v937
  %v1002 = vcvt.s32.f32 %v938
  %v1003 = vcvt.s32.f32 %v939
  %v1004 = vcvt.s32.f32 %v940
  %v1005 = vcvt.s32.f32 %v941
  %v1006 = vcvt.s32.f32 %v942
  %v1007 = vcvt.s32.f32 %v943
  %v1008 = vcvt.s32.f32 %v944
  %v1009 = vcvt.s32.f32 %v945
  %v1010 = vcvt.s32.f32 %v946
  %v1011 = vcvt.s32.f32 %v947
  %v1012 = vcvt.s32.f32 %v948
  %v1013 = vcvt.s32.f32 %v949
  %v1014 = vcvt.s32.f32 %v950
  %v1015 = vcvt.s32.f32 %v951
  %v1016 = vcvt.s32.f32 %v952
  %v1017 = vcvt.s32.f32 %v953
  %v1018 = vcvt.s32.f32 %v954
  %v1019 = vcvt.s32.f32 %v955
  %v1020 = vcvt.s32.f32 %v956
  %v1021 = vcvt.s32.f32 %v957
  %v1022 = vcvt.s32.f32 %v958
  %v1023 = vcvt.s32.f32 %v959
  %v1024 = vcvt.s32.f32 %v960
  %v1025 = vcvt.s32.f32 %v961
  %v1026 = vcvt.s32.f32 %v962
  %v1027 = vcvt.s32.f32 %v963
  %v1028 = vcvt.s32.f32 %v964
  %v1029 = vcvt.s32.f32 %v965
  %v1030 = vcvt.s32.f32 %v966
  %v1031 = vcvt.s32.f32 %v967
  %v1032 = vcvt.s32.f32 %v968
  %v1033 = vcvt.s32.f32 %v969
  %1034 = vmatprep.subr.mxu0 0.0
  %1035 = vmatpush1.msra.mxu0 %v779
  %1036 = vmatprep.subr.mxu0 0.0
  %1037 = vmatpush1.msra.mxu0 %v781
  %1038 = vmatprep.subr.mxu0 0.0
  %1039 = vmatpush1.msra.mxu0 %v783
  %1040 = vmatprep.subr.mxu0 0.0
  %1041 = vmatpush1.msra.mxu0 %v785
  %1042 = vmatprep.subr.mxu0 0.0
  %1043 = vmatpush1.msra.mxu0 %v787
  %1044 = vmatprep.subr.mxu0 0.0
  %1045 = vmatpush1.msra.mxu0 %v789
  %1046 = vmatprep.subr.mxu0 0.0
  %1047 = vmatpush1.msra.mxu0 %v791
  %1048 = vmatprep.subr.mxu0 0.0
  %1049 = vmatpush1.msra.mxu0 %v793
  %1050 = vmatprep.subr.mxu0 0.0
  %1051 = vmatpush1.msra.mxu0 %v795
  %1052 = vmatprep.subr.mxu0 0.0
  %1053 = vmatpush1.msra.mxu0 %v797
  %1054 = vmatprep.subr.mxu0 0.0
  %1055 = vmatpush1.msra.mxu0 %v799
  %1056 = vmatprep.subr.mxu0 0.0
  %1057 = vmatpush1.msra.mxu0 %v801
  %1058 = vmatprep.subr.mxu0 0.0
  %1059 = vmatpush1.msra.mxu0 %v803
  %1060 = vmatprep.subr.mxu0 0.0
  %1061 = vmatpush1.msra.mxu0 %v805
  %1062 = vmatprep.subr.mxu0 0.0
  %1063 = vmatpush1.msra.mxu0 %v807
  %1064 = vmatprep.subr.mxu0 0.0
  %1065 = vmatpush1.msra.mxu0 %v809
  %1066 = vmatprep.subr.mxu0 0.0
  %1067 = vmatpush1.msra.mxu0 %v811
  %1068 = vmatprep.subr.mxu0 0.0
  %1069 = vmatpush1.msra.mxu0 %v813
  %1070 = vmatprep.subr.mxu0 0.0
  %1071 = vmatpush1.msra.mxu0 %v815
  %1072 = vmatprep.subr.mxu0 0.0
  %1073 = vmatpush1.msra.mxu0 %v817
  %1074 = vmatprep.subr.mxu0 0.0
  %1075 = vmatpush1.msra.mxu0 %v819
  %1076 = vmatprep.subr.mxu0 0.0
  %1077 = vmatpush1.msra.mxu0 %v821
  %1078 = vmatprep.subr.mxu0 0.0
  %1079 = vmatpush1.msra.mxu0 %v823
  %1080 = vmatprep.subr.mxu0 0.0
  %1081 = vmatpush1.msra.mxu0 %v825
  %1082 = vmatprep.subr.mxu0 0.0
  %1083 = vmatpush1.msra.mxu0 %v827
  %1084 = vmatprep.subr.mxu0 0.0
  %1085 = vmatpush1.msra.mxu0 %v829
  %1086 = vmatprep.subr.mxu0 0.0
  %1087 = vmatpush1.msra.mxu0 %v831
  %1088 = vmatprep.subr.mxu0 0.0
  %1089 = vmatpush1.msra.mxu0 %v833
  %1090 = vmatprep.subr.mxu0 0.0
  %1091 = vmatpush1.msra.mxu0 %v835
  %1092 = vmatprep.subr.mxu0 0.0
  %1093 = vmatpush1.msra.mxu0 %v837
  %1094 = vmatprep.subr.mxu0 0.0
  %1095 = vmatpush1.msra.mxu0 %v839
  %1096 = vmatprep.subr.mxu0 0.0
  %1097 = vmatpush1.msra.mxu0 %v841
  %1098 = vmatprep.mubr.f32.mxu0 %v971
  %1099 = vmatmul.mubr.f32.gmra.mrb[0].mxu0 %v970
  %v1100 = vpop.f32.mrb[0].mxu0
  %v1101 = vadd.f32 0.0, %v1100
  %v1102 = vpop.f32.mrb[0].mxu0
  %1103 = vmatprep.mubr.f32.mxu0 %v973
  %1104 = vmatmul.mubr.f32.gmra.mrb[0].mxu0 %v972
  %v1105 = vpop.f32.mrb[0].mxu0
  %v1106 = vadd.f32 0.0, %v1105
  %v1107 = vpop.f32.mrb[0].mxu0
  %1108 = vmatprep.mubr.f32.mxu0 %v975
  %1109 = vmatmul.mubr.f32.gmra.mrb[0].mxu0 %v974
  %v1110 = vpop.f32.mrb[0].mxu0
  %v1111 = vadd.f32 0.0, %v1110
  %v1112 = vpop.f32.mrb[0].mxu0
  %1113 = vmatprep.mubr.f32.mxu0 %v977
  %1114 = vmatmul.mubr.f32.gmra.mrb[0].mxu0 %v976
  %v1115 = vpop.f32.mrb[0].mxu0
  %v1116 = vadd.f32 0.0, %v1115
  %v1117 = vpop.f32.mrb[0].mxu0
  %1118 = vmatprep.mubr.f32.mxu0 %v979
  %1119 = vmatmul.mubr.f32.gmra.mrb[0].mxu0 %v978
  %v1120 = vpop.f32.mrb[0].mxu0
  %v1121 = vadd.f32 0.0, %v1120
  %v1122 = vpop.f32.mrb[0].mxu0
  %1123 = vmatprep.mubr.f32.mxu0 %v981
  %1124 = vmatmul.mubr.f32.gmra.mrb[0].mxu0 %v980
  %v1125 = vpop.f32.mrb[0].mxu0
  %v1126 = vadd.f32 0.0, %v1125
  %v1127 = vpop.f32.mrb[0].mxu0
  %1128 = vmatprep.mubr.f32.mxu0 %v983
  %1129 = vmatmul.mubr.f32.gmra.mrb[0].mxu0 %v982
  %v1130 = vpop.f32.mrb[0].mxu0
  %v1131 = vadd.f32 0.0, %v1130
  %v1132 = vpop.f32.mrb[0].mxu0
  %1133 = vmatprep.mubr.f32.mxu0 %v985
  %1134 = vmatmul.mubr.f32.gmra.mrb[0].mxu0 %v984
  %v1135 = vpop.f32.mrb[0].mxu0
  %v1136 = vadd.f32 0.0, %v1135
  %v1137 = vpop.f32.mrb[0].mxu0
  %1138 = vmatprep.mubr.f32.mxu0 %v987
  %1139 = vmatmul.mubr.f32.gmra.mrb[0].mxu0 %v986
  %v1140 = vpop.f32.mrb[0].mxu0
  %v1141 = vadd.f32 0.0, %v1140
  %v1142 = vpop.f32.mrb[0].mxu0
  %1143 = vmatprep.mubr.f32.mxu0 %v989
  %1144 = vmatmul.mubr.f32.gmra.mrb[0].mxu0 %v988
  %v1145 = vpop.f32.mrb[0].mxu0
  %v1146 = vadd.f32 0.0, %v1145
  %v1147 = vpop.f32.mrb[0].mxu0
  %1148 = vmatprep.mubr.f32.mxu0 %v991
  %1149 = vmatmul.mubr.f32.gmra.mrb[0].mxu0 %v990
  %v1150 = vpop.f32.mrb[0].mxu0
  %v1151 = vadd.f32 0.0, %v1150
  %v1152 = vpop.f32.mrb[0].mxu0
  %1153 = vmatprep.mubr.f32.mxu0 %v993
  %1154 = vmatmul.mubr.f32.gmra.mrb[0].mxu0 %v992
  %v1155 = vpop.f32.mrb[0].mxu0
  %v1156 = vadd.f32 0.0, %v1155
  %v1157 = vpop.f32.mrb[0].mxu0
  %1158 = vmatprep.mubr.f32.mxu0 %v995
  %1159 = vmatmul.mubr.f32.gmra.mrb[0].mxu0 %v994
  %v1160 = vpop.f32.mrb[0].mxu0
  %v1161 = vadd.f32 0.0, %v1160
  %v1162 = vpop.f32.mrb[0].mxu0
  %1163 = vmatprep.mubr.f32.mxu0 %v997
  %1164 = vmatmul.mubr.f32.gmra.mrb[0].mxu0 %v996
  %v1165 = vpop.f32.mrb[0].mxu0
  %v1166 = vadd.f32 0.0, %v1165
  %v1167 = vpop.f32.mrb[0].mxu0
  %1168 = vmatprep.mubr.f32.mxu0 %v999
  %1169 = vmatmul.mubr.f32.gmra.mrb[0].mxu0 %v998
  %v1170 = vpop.f32.mrb[0].mxu0
  %v1171 = vadd.f32 0.0, %v1170
  %v1172 = vpop.f32.mrb[0].mxu0
  %1173 = vmatprep.mubr.f32.mxu0 %v1001
  %1174 = vmatmul.mubr.f32.gmra.mrb[0].mxu0 %v1000
  %v1175 = vpop.f32.mrb[0].mxu0
  %v1176 = vadd.f32 0.0, %v1175
  %v1177 = vpop.f32.mrb[0].mxu0
  %1178 = vmatprep.mubr.f32.mxu0 %v1003
  %1179 = vmatmul.mubr.f32.gmra.mrb[0].mxu0 %v1002
  %v1180 = vpop.f32.mrb[0].mxu0
  %v1181 = vadd.f32 0.0, %v1180
  %v1182 = vpop.f32.mrb[0].mxu0
  %1183 = vmatprep.mubr.f32.mxu0 %v1005
  %1184 = vmatmul.mubr.f32.gmra.mrb[0].mxu0 %v1004
  %v1185 = vpop.f32.mrb[0].mxu0
  %v1186 = vadd.f32 0.0, %v1185
  %v1187 = vpop.f32.mrb[0].mxu0
  %1188 = vmatprep.mubr.f32.mxu0 %v1007
  %1189 = vmatmul.mubr.f32.gmra.mrb[0].mxu0 %v1006
  %v1190 = vpop.f32.mrb[0].mxu0
  %v1191 = vadd.f32 0.0, %v1190
  %v1192 = vpop.f32.mrb[0].mxu0
  %1193 = vmatprep.mubr.f32.mxu0 %v1009
  %1194 = vmatmul.mubr.f32.gmra.mrb[0].mxu0 %v1008
  %v1195 = vpop.f32.mrb[0].mxu0
  %v1196 = vadd.f32 0.0, %v1195
  %v1197 = vpop.f32.mrb[0].mxu0
  %1198 = vmatprep.mubr.f32.mxu0 %v1011
  %1199 = vmatmul.mubr.f32.gmra.mrb[0].mxu0 %v1010
  %v1200 = vpop.f32.mrb[0].mxu0
  %v1201 = vadd.f32 0.0, %v1200
  %v1202 = vpop.f32.mrb[0].mxu0
  %1203 = vmatprep.mubr.f32.mxu0 %v1013
  %1204 = vmatmul.mubr.f32.gmra.mrb[0].mxu0 %v1012
  %v1205 = vpop.f32.mrb[0].mxu0
  %v1206 = vadd.f32 0.0, %v1205
  %v1207 = vpop.f32.mrb[0].mxu0
  %1208 = vmatprep.mubr.f32.mxu0 %v1015
  %1209 = vmatmul.mubr.f32.gmra.mrb[0].mxu0 %v1014
  %v1210 = vpop.f32.mrb[0].mxu0
  %v1211 = vadd.f32 0.0, %v1210
  %v1212 = vpop.f32.mrb[0].mxu0
  %1213 = vmatprep.mubr.f32.mxu0 %v1017
  %1214 = vmatmul.mubr.f32.gmra.mrb[0].mxu0 %v1016
  %v1215 = vpop.f32.mrb[0].mxu0
  %v1216 = vadd.f32 0.0, %v1215
  %v1217 = vpop.f32.mrb[0].mxu0
  %1218 = vmatprep.mubr.f32.mxu0 %v1019
  %1219 = vmatmul.mubr.f32.gmra.mrb[0].mxu0 %v1018
  %v1220 = vpop.f32.mrb[0].mxu0
  %v1221 = vadd.f32 0.0, %v1220
  %v1222 = vpop.f32.mrb[0].mxu0
  %1223 = vmatprep.mubr.f32.mxu0 %v1021
  %1224 = vmatmul.mubr.f32.gmra.mrb[0].mxu0 %v1020
  %v1225 = vpop.f32.mrb[0].mxu0
  %v1226 = vadd.f32 0.0, %v1225
  %v1227 = vpop.f32.mrb[0].mxu0
  %1228 = vmatprep.mubr.f32.mxu0 %v1023
  %1229 = vmatmul.mubr.f32.gmra.mrb[0].mxu0 %v1022
  %v1230 = vpop.f32.mrb[0].mxu0
  %v1231 = vadd.f32 0.0, %v1230
  %v1232 = vpop.f32.mrb[0].mxu0
  %1233 = vmatprep.mubr.f32.mxu0 %v1025
  %1234 = vmatmul.mubr.f32.gmra.mrb[0].mxu0 %v1024
  %v1235 = vpop.f32.mrb[0].mxu0
  %v1236 = vadd.f32 0.0, %v1235
  %v1237 = vpop.f32.mrb[0].mxu0
  %1238 = vmatprep.mubr.f32.mxu0 %v1027
  %1239 = vmatmul.mubr.f32.gmra.mrb[0].mxu0 %v1026
  %v1240 = vpop.f32.mrb[0].mxu0
  %v1241 = vadd.f32 0.0, %v1240
  %v1242 = vpop.f32.mrb[0].mxu0
  %1243 = vmatprep.mubr.f32.mxu0 %v1029
  %1244 = vmatmul.mubr.f32.gmra.mrb[0].mxu0 %v1028
  %v1245 = vpop.f32.mrb[0].mxu0
  %v1246 = vadd.f32 0.0, %v1245
  %v1247 = vpop.f32.mrb[0].mxu0
  %1248 = vmatprep.mubr.f32.mxu0 %v1031
  %1249 = vmatmul.mubr.f32.gmra.mrb[0].mxu0 %v1030
  %v1250 = vpop.f32.mrb[0].mxu0
  %v1251 = vadd.f32 0.0, %v1250
  %v1252 = vpop.f32.mrb[0].mxu0
  %1253 = vmatprep.mubr.f32.mxu0 %v1033
  %1254 = vmatmul.mubr.f32.gmra.mrb[0].mxu0 %v1032
  %v1255 = vpop.f32.mrb[0].mxu0
  %v1256 = vadd.f32 0.0, %v1255
  %v1257 = vpop.f32.mrb[0].mxu0
  %1258 = vdwg.mxu0
  %vm1259 = vcmp.gt.f32.partialorder %v1101, 0.0
  %vm1260 = vcmp.gt.f32.partialorder %v1106, 0.0
  %vm1261 = vcmp.gt.f32.partialorder %v1111, 0.0
  %vm1262 = vcmp.gt.f32.partialorder %v1116, 0.0
  %vm1263 = vcmp.gt.f32.partialorder %v1121, 0.0
  %vm1264 = vcmp.gt.f32.partialorder %v1126, 0.0
  %vm1265 = vcmp.gt.f32.partialorder %v1131, 0.0
  %vm1266 = vcmp.gt.f32.partialorder %v1136, 0.0
  %vm1267 = vcmp.gt.f32.partialorder %v1141, 0.0
  %vm1268 = vcmp.gt.f32.partialorder %v1146, 0.0
  %vm1269 = vcmp.gt.f32.partialorder %v1151, 0.0
  %vm1270 = vcmp.gt.f32.partialorder %v1156, 0.0
  %vm1271 = vcmp.gt.f32.partialorder %v1161, 0.0
  %vm1272 = vcmp.gt.f32.partialorder %v1166, 0.0
  %vm1273 = vcmp.gt.f32.partialorder %v1171, 0.0
  %vm1274 = vcmp.gt.f32.partialorder %v1176, 0.0
  %vm1275 = vcmp.gt.f32.partialorder %v1181, 0.0
  %vm1276 = vcmp.gt.f32.partialorder %v1186, 0.0
  %vm1277 = vcmp.gt.f32.partialorder %v1191, 0.0
  %vm1278 = vcmp.gt.f32.partialorder %v1196, 0.0
  %vm1279 = vcmp.gt.f32.partialorder %v1201, 0.0
  %vm1280 = vcmp.gt.f32.partialorder %v1206, 0.0
  %vm1281 = vcmp.gt.f32.partialorder %v1211, 0.0
  %vm1282 = vcmp.gt.f32.partialorder %v1216, 0.0
  %vm1283 = vcmp.gt.f32.partialorder %v1221, 0.0
  %vm1284 = vcmp.gt.f32.partialorder %v1226, 0.0
  %vm1285 = vcmp.gt.f32.partialorder %v1231, 0.0
  %vm1286 = vcmp.gt.f32.partialorder %v1236, 0.0
  %vm1287 = vcmp.gt.f32.partialorder %v1241, 0.0
  %vm1288 = vcmp.gt.f32.partialorder %v1246, 0.0
  %vm1289 = vcmp.gt.f32.partialorder %v1251, 0.0
  %vm1290 = vcmp.gt.f32.partialorder %v1256, 0.0
  %v1291 = vsel %vm1259, 1.0, 0.0
  %v1292 = vsel %vm1260, 1.0, 0.0
  %v1293 = vsel %vm1261, 1.0, 0.0
  %v1294 = vsel %vm1262, 1.0, 0.0
  %v1295 = vsel %vm1263, 1.0, 0.0
  %v1296 = vsel %vm1264, 1.0, 0.0
  %v1297 = vsel %vm1265, 1.0, 0.0
  %v1298 = vsel %vm1266, 1.0, 0.0
  %v1299 = vsel %vm1267, 1.0, 0.0
  %v1300 = vsel %vm1268, 1.0, 0.0
  %v1301 = vsel %vm1269, 1.0, 0.0
  %v1302 = vsel %vm1270, 1.0, 0.0
  %v1303 = vsel %vm1271, 1.0, 0.0
  %v1304 = vsel %vm1272, 1.0, 0.0
  %v1305 = vsel %vm1273, 1.0, 0.0
  %v1306 = vsel %vm1274, 1.0, 0.0
  %v1307 = vsel %vm1275, 1.0, 0.0
  %v1308 = vsel %vm1276, 1.0, 0.0
  %v1309 = vsel %vm1277, 1.0, 0.0
  %v1310 = vsel %vm1278, 1.0, 0.0
  %v1311 = vsel %vm1279, 1.0, 0.0
  %v1312 = vsel %vm1280, 1.0, 0.0
  %v1313 = vsel %vm1281, 1.0, 0.0
  %v1314 = vsel %vm1282, 1.0, 0.0
  %v1315 = vsel %vm1283, 1.0, 0.0
  %v1316 = vsel %vm1284, 1.0, 0.0
  %v1317 = vsel %vm1285, 1.0, 0.0
  %v1318 = vsel %vm1286, 1.0, 0.0
  %v1319 = vsel %vm1287, 1.0, 0.0
  %v1320 = vsel %vm1288, 1.0, 0.0
  %v1321 = vsel %vm1289, 1.0, 0.0
  %v1322 = vsel %vm1290, 1.0, 0.0
  %v1323 = vsel %vm1259, %v1101, 1.0
  %v1324 = vsel %vm1260, %v1106, 1.0
  %v1325 = vsel %vm1261, %v1111, 1.0
  %v1326 = vsel %vm1262, %v1116, 1.0
  %v1327 = vsel %vm1263, %v1121, 1.0
  %v1328 = vsel %vm1264, %v1126, 1.0
  %v1329 = vsel %vm1265, %v1131, 1.0
  %v1330 = vsel %vm1266, %v1136, 1.0
  %v1331 = vsel %vm1267, %v1141, 1.0
  %v1332 = vsel %vm1268, %v1146, 1.0
  %v1333 = vsel %vm1269, %v1151, 1.0
  %v1334 = vsel %vm1270, %v1156, 1.0
  %v1335 = vsel %vm1271, %v1161, 1.0
  %v1336 = vsel %vm1272, %v1166, 1.0
  %v1337 = vsel %vm1273, %v1171, 1.0
  %v1338 = vsel %vm1274, %v1176, 1.0
  %v1339 = vsel %vm1275, %v1181, 1.0
  %v1340 = vsel %vm1276, %v1186, 1.0
  %v1341 = vsel %vm1277, %v1191, 1.0
  %v1342 = vsel %vm1278, %v1196, 1.0
  %v1343 = vsel %vm1279, %v1201, 1.0
  %v1344 = vsel %vm1280, %v1206, 1.0
  %v1345 = vsel %vm1281, %v1211, 1.0
  %v1346 = vsel %vm1282, %v1216, 1.0
  %v1347 = vsel %vm1283, %v1221, 1.0
  %v1348 = vsel %vm1284, %v1226, 1.0
  %v1349 = vsel %vm1285, %v1231, 1.0
  %v1350 = vsel %vm1286, %v1236, 1.0
  %v1351 = vsel %vm1287, %v1241, 1.0
  %v1352 = vsel %vm1288, %v1246, 1.0
  %v1353 = vsel %vm1289, %v1251, 1.0
  %v1354 = vsel %vm1290, %v1256, 1.0
  %v1355 = vrcp.pop %v1323
  %v1356 = vmul.f32 %v1291, %v1355
  %v1357 = vrcp.pop %v1324
  %v1358 = vmul.f32 %v1292, %v1357
  %v1359 = vrcp.pop %v1325
  %v1360 = vmul.f32 %v1293, %v1359
  %v1361 = vrcp.pop %v1326
  %v1362 = vmul.f32 %v1294, %v1361
  %v1363 = vrcp.pop %v1327
  %v1364 = vmul.f32 %v1295, %v1363
  %v1365 = vrcp.pop %v1328
  %v1366 = vmul.f32 %v1296, %v1365
  %v1367 = vrcp.pop %v1329
  %v1368 = vmul.f32 %v1297, %v1367
  %v1369 = vrcp.pop %v1330
  %v1370 = vmul.f32 %v1298, %v1369
  %v1371 = vrcp.pop %v1331
  %v1372 = vmul.f32 %v1299, %v1371
  %v1373 = vrcp.pop %v1332
  %v1374 = vmul.f32 %v1300, %v1373
  %v1375 = vrcp.pop %v1333
  %v1376 = vmul.f32 %v1301, %v1375
  %v1377 = vrcp.pop %v1334
  %v1378 = vmul.f32 %v1302, %v1377
  %v1379 = vrcp.pop %v1335
  %v1380 = vmul.f32 %v1303, %v1379
  %v1381 = vrcp.pop %v1336
  %v1382 = vmul.f32 %v1304, %v1381
  %v1383 = vrcp.pop %v1337
  %v1384 = vmul.f32 %v1305, %v1383
  %v1385 = vrcp.pop %v1338
  %v1386 = vmul.f32 %v1306, %v1385
  %v1387 = vrcp.pop %v1339
  %v1388 = vmul.f32 %v1307, %v1387
  %v1389 = vrcp.pop %v1340
  %v1390 = vmul.f32 %v1308, %v1389
  %v1391 = vrcp.pop %v1341
  %v1392 = vmul.f32 %v1309, %v1391
  %v1393 = vrcp.pop %v1342
  %v1394 = vmul.f32 %v1310, %v1393
  %v1395 = vrcp.pop %v1343
  %v1396 = vmul.f32 %v1311, %v1395
  %v1397 = vrcp.pop %v1344
  %v1398 = vmul.f32 %v1312, %v1397
  %v1399 = vrcp.pop %v1345
  %v1400 = vmul.f32 %v1313, %v1399
  %v1401 = vrcp.pop %v1346
  %v1402 = vmul.f32 %v1314, %v1401
  %v1403 = vrcp.pop %v1347
  %v1404 = vmul.f32 %v1315, %v1403
  %v1405 = vrcp.pop %v1348
  %v1406 = vmul.f32 %v1316, %v1405
  %v1407 = vrcp.pop %v1349
  %v1408 = vmul.f32 %v1317, %v1407
  %v1409 = vrcp.pop %v1350
  %v1410 = vmul.f32 %v1318, %v1409
  %v1411 = vrcp.pop %v1351
  %v1412 = vmul.f32 %v1319, %v1411
  %v1413 = vrcp.pop %v1352
  %v1414 = vmul.f32 %v1320, %v1413
  %v1415 = vrcp.pop %v1353
  %v1416 = vmul.f32 %v1321, %v1415
  %v1417 = vrcp.pop %v1354
  %v1418 = vmul.f32 %v1322, %v1417
  %1420 = vset.pattern.permute.xlu0 0
  %1421 = vperm.xlu0 %1420, %v1356
  %v1422 = vpop.permute.xlu0 %1421
  %1425 = vset.pattern.permute.xlu0 0
  %1426 = vperm.xlu0 %1425, %v1358
  %v1427 = vpop.permute.xlu0 %1426
  %1430 = vset.pattern.permute.xlu0 0
  %1431 = vperm.xlu0 %1430, %v1360
  %v1432 = vpop.permute.xlu0 %1431
  %1435 = vset.pattern.permute.xlu0 0
  %1436 = vperm.xlu0 %1435, %v1362
  %v1437 = vpop.permute.xlu0 %1436
  %1440 = vset.pattern.permute.xlu0 0
  %1441 = vperm.xlu0 %1440, %v1364
  %v1442 = vpop.permute.xlu0 %1441
  %1445 = vset.pattern.permute.xlu0 0
  %1446 = vperm.xlu0 %1445, %v1366
  %v1447 = vpop.permute.xlu0 %1446
  %1450 = vset.pattern.permute.xlu0 0
  %1451 = vperm.xlu0 %1450, %v1368
  %v1452 = vpop.permute.xlu0 %1451
  %1455 = vset.pattern.permute.xlu0 0
  %1456 = vperm.xlu0 %1455, %v1370
  %v1457 = vpop.permute.xlu0 %1456
  %1460 = vset.pattern.permute.xlu0 0
  %1461 = vperm.xlu0 %1460, %v1372
  %v1462 = vpop.permute.xlu0 %1461
  %1465 = vset.pattern.permute.xlu0 0
  %1466 = vperm.xlu0 %1465, %v1374
  %v1467 = vpop.permute.xlu0 %1466
  %1470 = vset.pattern.permute.xlu0 0
  %1471 = vperm.xlu0 %1470, %v1376
  %v1472 = vpop.permute.xlu0 %1471
  %1475 = vset.pattern.permute.xlu0 0
  %1476 = vperm.xlu0 %1475, %v1378
  %v1477 = vpop.permute.xlu0 %1476
  %1480 = vset.pattern.permute.xlu0 0
  %1481 = vperm.xlu0 %1480, %v1380
  %v1482 = vpop.permute.xlu0 %1481
  %1485 = vset.pattern.permute.xlu0 0
  %1486 = vperm.xlu0 %1485, %v1382
  %v1487 = vpop.permute.xlu0 %1486
  %1490 = vset.pattern.permute.xlu0 0
  %1491 = vperm.xlu0 %1490, %v1384
  %v1492 = vpop.permute.xlu0 %1491
  %1495 = vset.pattern.permute.xlu0 0
  %1496 = vperm.xlu0 %1495, %v1386
  %v1497 = vpop.permute.xlu0 %1496
  %1500 = vset.pattern.permute.xlu0 0
  %1501 = vperm.xlu0 %1500, %v1388
  %v1502 = vpop.permute.xlu0 %1501
  %1505 = vset.pattern.permute.xlu0 0
  %1506 = vperm.xlu0 %1505, %v1390
  %v1507 = vpop.permute.xlu0 %1506
  %1510 = vset.pattern.permute.xlu0 0
  %1511 = vperm.xlu0 %1510, %v1392
  %v1512 = vpop.permute.xlu0 %1511
  %1515 = vset.pattern.permute.xlu0 0
  %1516 = vperm.xlu0 %1515, %v1394
  %v1517 = vpop.permute.xlu0 %1516
  %1520 = vset.pattern.permute.xlu0 0
  %1521 = vperm.xlu0 %1520, %v1396
  %v1522 = vpop.permute.xlu0 %1521
  %1525 = vset.pattern.permute.xlu0 0
  %1526 = vperm.xlu0 %1525, %v1398
  %v1527 = vpop.permute.xlu0 %1526
  %1530 = vset.pattern.permute.xlu0 0
  %1531 = vperm.xlu0 %1530, %v1400
  %v1532 = vpop.permute.xlu0 %1531
  %1535 = vset.pattern.permute.xlu0 0
  %1536 = vperm.xlu0 %1535, %v1402
  %v1537 = vpop.permute.xlu0 %1536
  %1540 = vset.pattern.permute.xlu0 0
  %1541 = vperm.xlu0 %1540, %v1404
  %v1542 = vpop.permute.xlu0 %1541
  %1545 = vset.pattern.permute.xlu0 0
  %1546 = vperm.xlu0 %1545, %v1406
  %v1547 = vpop.permute.xlu0 %1546
  %1550 = vset.pattern.permute.xlu0 0
  %1551 = vperm.xlu0 %1550, %v1408
  %v1552 = vpop.permute.xlu0 %1551
  %1555 = vset.pattern.permute.xlu0 0
  %1556 = vperm.xlu0 %1555, %v1410
  %v1557 = vpop.permute.xlu0 %1556
  %1560 = vset.pattern.permute.xlu0 0
  %1561 = vperm.xlu0 %1560, %v1412
  %v1562 = vpop.permute.xlu0 %1561
  %1565 = vset.pattern.permute.xlu0 0
  %1566 = vperm.xlu0 %1565, %v1414
  %v1567 = vpop.permute.xlu0 %1566
  %1570 = vset.pattern.permute.xlu0 0
  %1571 = vperm.xlu0 %1570, %v1416
  %v1572 = vpop.permute.xlu0 %1571
  %1575 = vset.pattern.permute.xlu0 0
  %1576 = vperm.xlu0 %1575, %v1418
  %v1577 = vpop.permute.xlu0 %1576
  %1579 = vmatprep.subr.mxu0 0.0
  %1580 = vmatpush1.msra.mxu0 %v1422
  %1581 = vmatprep.subr.mxu0 0.0
  %1582 = vmatpush1.msra.mxu0 %v1427
  %1583 = vmatprep.subr.mxu0 0.0
  %1584 = vmatpush1.msra.mxu0 %v1432
  %1585 = vmatprep.subr.mxu0 0.0
  %1586 = vmatpush1.msra.mxu0 %v1437
  %1587 = vmatprep.subr.mxu0 0.0
  %1588 = vmatpush1.msra.mxu0 %v1442
  %1589 = vmatprep.subr.mxu0 0.0
  %1590 = vmatpush1.msra.mxu0 %v1447
  %1591 = vmatprep.subr.mxu0 0.0
  %1592 = vmatpush1.msra.mxu0 %v1452
  %1593 = vmatprep.subr.mxu0 0.0
  %1594 = vmatpush1.msra.mxu0 %v1457
  %1595 = vmatprep.subr.mxu0 0.0
  %1596 = vmatpush1.msra.mxu0 %v1462
  %1597 = vmatprep.subr.mxu0 0.0
  %1598 = vmatpush1.msra.mxu0 %v1467
  %1599 = vmatprep.subr.mxu0 0.0
  %1600 = vmatpush1.msra.mxu0 %v1472
  %1601 = vmatprep.subr.mxu0 0.0
  %1602 = vmatpush1.msra.mxu0 %v1477
  %1603 = vmatprep.subr.mxu0 0.0
  %1604 = vmatpush1.msra.mxu0 %v1482
  %1605 = vmatprep.subr.mxu0 0.0
  %1606 = vmatpush1.msra.mxu0 %v1487
  %1607 = vmatprep.subr.mxu0 0.0
  %1608 = vmatpush1.msra.mxu0 %v1492
  %1609 = vmatprep.subr.mxu0 0.0
  %1610 = vmatpush1.msra.mxu0 %v1497
  %1611 = vmatprep.subr.mxu0 0.0
  %1612 = vmatpush1.msra.mxu0 %v1502
  %1613 = vmatprep.subr.mxu0 0.0
  %1614 = vmatpush1.msra.mxu0 %v1507
  %1615 = vmatprep.subr.mxu0 0.0
  %1616 = vmatpush1.msra.mxu0 %v1512
  %1617 = vmatprep.subr.mxu0 0.0
  %1618 = vmatpush1.msra.mxu0 %v1517
  %1619 = vmatprep.subr.mxu0 0.0
  %1620 = vmatpush1.msra.mxu0 %v1522
  %1621 = vmatprep.subr.mxu0 0.0
  %1622 = vmatpush1.msra.mxu0 %v1527
  %1623 = vmatprep.subr.mxu0 0.0
  %1624 = vmatpush1.msra.mxu0 %v1532
  %1625 = vmatprep.subr.mxu0 0.0
  %1626 = vmatpush1.msra.mxu0 %v1537
  %1627 = vmatprep.subr.mxu0 0.0
  %1628 = vmatpush1.msra.mxu0 %v1542
  %1629 = vmatprep.subr.mxu0 0.0
  %1630 = vmatpush1.msra.mxu0 %v1547
  %1631 = vmatprep.subr.mxu0 0.0
  %1632 = vmatpush1.msra.mxu0 %v1552
  %1633 = vmatprep.subr.mxu0 0.0
  %1634 = vmatpush1.msra.mxu0 %v1557
  %1635 = vmatprep.subr.mxu0 0.0
  %1636 = vmatpush1.msra.mxu0 %v1562
  %1637 = vmatprep.subr.mxu0 0.0
  %1638 = vmatpush1.msra.mxu0 %v1567
  %1639 = vmatprep.subr.mxu0 0.0
  %1640 = vmatpush1.msra.mxu0 %v1572
  %1641 = vmatprep.subr.mxu0 0.0
  %1642 = vmatpush1.msra.mxu0 %v1577
  %1643 = vmatprep.mubr.f32.mxu0 %v971
  %1644 = vmatmul.mubr.f32.gmra.mrb[0].mxu0 %v970
  %v1645 = vpop.f32.mrb[0].mxu0
  %v1646 = vadd.f32 0.0, %v1645
  %v1647 = vpop.f32.mrb[0].mxu0
  %1648 = vmatprep.mubr.f32.mxu0 %v973
  %1649 = vmatmul.mubr.f32.gmra.mrb[0].mxu0 %v972
  %v1650 = vpop.f32.mrb[0].mxu0
  %v1651 = vadd.f32 0.0, %v1650
  %v1652 = vpop.f32.mrb[0].mxu0
  %1653 = vmatprep.mubr.f32.mxu0 %v975
  %1654 = vmatmul.mubr.f32.gmra.mrb[0].mxu0 %v974
  %v1655 = vpop.f32.mrb[0].mxu0
  %v1656 = vadd.f32 0.0, %v1655
  %v1657 = vpop.f32.mrb[0].mxu0
  %1658 = vmatprep.mubr.f32.mxu0 %v977
  %1659 = vmatmul.mubr.f32.gmra.mrb[0].mxu0 %v976
  %v1660 = vpop.f32.mrb[0].mxu0
  %v1661 = vadd.f32 0.0, %v1660
  %v1662 = vpop.f32.mrb[0].mxu0
  %1663 = vmatprep.mubr.f32.mxu0 %v979
  %1664 = vmatmul.mubr.f32.gmra.mrb[0].mxu0 %v978
  %v1665 = vpop.f32.mrb[0].mxu0
  %v1666 = vadd.f32 0.0, %v1665
  %v1667 = vpop.f32.mrb[0].mxu0
  %1668 = vmatprep.mubr.f32.mxu0 %v981
  %1669 = vmatmul.mubr.f32.gmra.mrb[0].mxu0 %v980
  %v1670 = vpop.f32.mrb[0].mxu0
  %v1671 = vadd.f32 0.0, %v1670
  %v1672 = vpop.f32.mrb[0].mxu0
  %1673 = vmatprep.mubr.f32.mxu0 %v983
  %1674 = vmatmul.mubr.f32.gmra.mrb[0].mxu0 %v982
  %v1675 = vpop.f32.mrb[0].mxu0
  %v1676 = vadd.f32 0.0, %v1675
  %v1677 = vpop.f32.mrb[0].mxu0
  %1678 = vmatprep.mubr.f32.mxu0 %v985
  %1679 = vmatmul.mubr.f32.gmra.mrb[0].mxu0 %v984
  %v1680 = vpop.f32.mrb[0].mxu0
  %v1681 = vadd.f32 0.0, %v1680
  %v1682 = vpop.f32.mrb[0].mxu0
  %1683 = vmatprep.mubr.f32.mxu0 %v987
  %1684 = vmatmul.mubr.f32.gmra.mrb[0].mxu0 %v986
  %v1685 = vpop.f32.mrb[0].mxu0
  %v1686 = vadd.f32 0.0, %v1685
  %v1687 = vpop.f32.mrb[0].mxu0
  %1688 = vmatprep.mubr.f32.mxu0 %v989
  %1689 = vmatmul.mubr.f32.gmra.mrb[0].mxu0 %v988
  %v1690 = vpop.f32.mrb[0].mxu0
  %v1691 = vadd.f32 0.0, %v1690
  %v1692 = vpop.f32.mrb[0].mxu0
  %1693 = vmatprep.mubr.f32.mxu0 %v991
  %1694 = vmatmul.mubr.f32.gmra.mrb[0].mxu0 %v990
  %v1695 = vpop.f32.mrb[0].mxu0
  %v1696 = vadd.f32 0.0, %v1695
  %v1697 = vpop.f32.mrb[0].mxu0
  %1698 = vmatprep.mubr.f32.mxu0 %v993
  %1699 = vmatmul.mubr.f32.gmra.mrb[0].mxu0 %v992
  %v1700 = vpop.f32.mrb[0].mxu0
  %v1701 = vadd.f32 0.0, %v1700
  %v1702 = vpop.f32.mrb[0].mxu0
  %1703 = vmatprep.mubr.f32.mxu0 %v995
  %1704 = vmatmul.mubr.f32.gmra.mrb[0].mxu0 %v994
  %v1705 = vpop.f32.mrb[0].mxu0
  %v1706 = vadd.f32 0.0, %v1705
  %v1707 = vpop.f32.mrb[0].mxu0
  %1708 = vmatprep.mubr.f32.mxu0 %v997
  %1709 = vmatmul.mubr.f32.gmra.mrb[0].mxu0 %v996
  %v1710 = vpop.f32.mrb[0].mxu0
  %v1711 = vadd.f32 0.0, %v1710
  %v1712 = vpop.f32.mrb[0].mxu0
  %1713 = vmatprep.mubr.f32.mxu0 %v999
  %1714 = vmatmul.mubr.f32.gmra.mrb[0].mxu0 %v998
  %v1715 = vpop.f32.mrb[0].mxu0
  %v1716 = vadd.f32 0.0, %v1715
  %v1717 = vpop.f32.mrb[0].mxu0
  %1718 = vmatprep.mubr.f32.mxu0 %v1001
  %1719 = vmatmul.mubr.f32.gmra.mrb[0].mxu0 %v1000
  %v1720 = vpop.f32.mrb[0].mxu0
  %v1721 = vadd.f32 0.0, %v1720
  %v1722 = vpop.f32.mrb[0].mxu0
  %1723 = vmatprep.mubr.f32.mxu0 %v1003
  %1724 = vmatmul.mubr.f32.gmra.mrb[0].mxu0 %v1002
  %v1725 = vpop.f32.mrb[0].mxu0
  %v1726 = vadd.f32 0.0, %v1725
  %v1727 = vpop.f32.mrb[0].mxu0
  %1728 = vmatprep.mubr.f32.mxu0 %v1005
  %1729 = vmatmul.mubr.f32.gmra.mrb[0].mxu0 %v1004
  %v1730 = vpop.f32.mrb[0].mxu0
  %v1731 = vadd.f32 0.0, %v1730
  %v1732 = vpop.f32.mrb[0].mxu0
  %1733 = vmatprep.mubr.f32.mxu0 %v1007
  %1734 = vmatmul.mubr.f32.gmra.mrb[0].mxu0 %v1006
  %v1735 = vpop.f32.mrb[0].mxu0
  %v1736 = vadd.f32 0.0, %v1735
  %v1737 = vpop.f32.mrb[0].mxu0
  %1738 = vmatprep.mubr.f32.mxu0 %v1009
  %1739 = vmatmul.mubr.f32.gmra.mrb[0].mxu0 %v1008
  %v1740 = vpop.f32.mrb[0].mxu0
  %v1741 = vadd.f32 0.0, %v1740
  %v1742 = vpop.f32.mrb[0].mxu0
  %1743 = vmatprep.mubr.f32.mxu0 %v1011
  %1744 = vmatmul.mubr.f32.gmra.mrb[0].mxu0 %v1010
  %v1745 = vpop.f32.mrb[0].mxu0
  %v1746 = vadd.f32 0.0, %v1745
  %v1747 = vpop.f32.mrb[0].mxu0
  %1748 = vmatprep.mubr.f32.mxu0 %v1013
  %1749 = vmatmul.mubr.f32.gmra.mrb[0].mxu0 %v1012
  %v1750 = vpop.f32.mrb[0].mxu0
  %v1751 = vadd.f32 0.0, %v1750
  %v1752 = vpop.f32.mrb[0].mxu0
  %1753 = vmatprep.mubr.f32.mxu0 %v1015
  %1754 = vmatmul.mubr.f32.gmra.mrb[0].mxu0 %v1014
  %v1755 = vpop.f32.mrb[0].mxu0
  %v1756 = vadd.f32 0.0, %v1755
  %v1757 = vpop.f32.mrb[0].mxu0
  %1758 = vmatprep.mubr.f32.mxu0 %v1017
  %1759 = vmatmul.mubr.f32.gmra.mrb[0].mxu0 %v1016
  %v1760 = vpop.f32.mrb[0].mxu0
  %v1761 = vadd.f32 0.0, %v1760
  %v1762 = vpop.f32.mrb[0].mxu0
  %1763 = vmatprep.mubr.f32.mxu0 %v1019
  %1764 = vmatmul.mubr.f32.gmra.mrb[0].mxu0 %v1018
  %v1765 = vpop.f32.mrb[0].mxu0
  %v1766 = vadd.f32 0.0, %v1765
  %v1767 = vpop.f32.mrb[0].mxu0
  %1768 = vmatprep.mubr.f32.mxu0 %v1021
  %1769 = vmatmul.mubr.f32.gmra.mrb[0].mxu0 %v1020
  %v1770 = vpop.f32.mrb[0].mxu0
  %v1771 = vadd.f32 0.0, %v1770
  %v1772 = vpop.f32.mrb[0].mxu0
  %1773 = vmatprep.mubr.f32.mxu0 %v1023
  %1774 = vmatmul.mubr.f32.gmra.mrb[0].mxu0 %v1022
  %v1775 = vpop.f32.mrb[0].mxu0
  %v1776 = vadd.f32 0.0, %v1775
  %v1777 = vpop.f32.mrb[0].mxu0
  %1778 = vmatprep.mubr.f32.mxu0 %v1025
  %1779 = vmatmul.mubr.f32.gmra.mrb[0].mxu0 %v1024
  %v1780 = vpop.f32.mrb[0].mxu0
  %v1781 = vadd.f32 0.0, %v1780
  %v1782 = vpop.f32.mrb[0].mxu0
  %1783 = vmatprep.mubr.f32.mxu0 %v1027
  %1784 = vmatmul.mubr.f32.gmra.mrb[0].mxu0 %v1026
  %v1785 = vpop.f32.mrb[0].mxu0
  %v1786 = vadd.f32 0.0, %v1785
  %v1787 = vpop.f32.mrb[0].mxu0
  %1788 = vmatprep.mubr.f32.mxu0 %v1029
  %1789 = vmatmul.mubr.f32.gmra.mrb[0].mxu0 %v1028
  %v1790 = vpop.f32.mrb[0].mxu0
  %v1791 = vadd.f32 0.0, %v1790
  %v1792 = vpop.f32.mrb[0].mxu0
  %1793 = vmatprep.mubr.f32.mxu0 %v1031
  %1794 = vmatmul.mubr.f32.gmra.mrb[0].mxu0 %v1030
  %v1795 = vpop.f32.mrb[0].mxu0
  %v1796 = vadd.f32 0.0, %v1795
  %v1797 = vpop.f32.mrb[0].mxu0
  %1798 = vmatprep.mubr.f32.mxu0 %v1033
  %1799 = vmatmul.mubr.f32.gmra.mrb[0].mxu0 %v1032
  %v1800 = vpop.f32.mrb[0].mxu0
  %v1801 = vadd.f32 0.0, %v1800
  %v1802 = vpop.f32.mrb[0].mxu0
  %1803 = vdwg.mxu0
  %v1804 = vmul.f32 %v517, 2.0
  %v1805 = vmul.f32 %v520, 2.0
  %v1806 = vmul.f32 %v523, 2.0
  %v1807 = vmul.f32 %v526, 2.0
  %v1808 = vmul.f32 %v529, 2.0
  %v1809 = vmul.f32 %v532, 2.0
  %v1810 = vmul.f32 %v535, 2.0
  %v1811 = vmul.f32 %v538, 2.0
  %v1812 = vmul.f32 %v541, 2.0
  %v1813 = vmul.f32 %v544, 2.0
  %v1814 = vmul.f32 %v547, 2.0
  %v1815 = vmul.f32 %v550, 2.0
  %v1816 = vmul.f32 %v553, 2.0
  %v1817 = vmul.f32 %v556, 2.0
  %v1818 = vmul.f32 %v559, 2.0
  %v1819 = vmul.f32 %v562, 2.0
  %v1820 = vmul.f32 %v565, 2.0
  %v1821 = vmul.f32 %v568, 2.0
  %v1822 = vmul.f32 %v571, 2.0
  %v1823 = vmul.f32 %v574, 2.0
  %v1824 = vmul.f32 %v577, 2.0
  %v1825 = vmul.f32 %v580, 2.0
  %v1826 = vmul.f32 %v583, 2.0
  %v1827 = vmul.f32 %v586, 2.0
  %v1828 = vmul.f32 %v589, 2.0
  %v1829 = vmul.f32 %v592, 2.0
  %v1830 = vmul.f32 %v595, 2.0
  %v1831 = vmul.f32 %v598, 2.0
  %v1832 = vmul.f32 %v601, 2.0
  %v1833 = vmul.f32 %v604, 2.0
  %v1834 = vmul.f32 %v607, 2.0
  %v1835 = vmul.f32 %v610, 2.0
  %v1836 = vsel %vm1259, 1, 0
  %v1837 = vsel %vm1260, 1, 0
  %v1838 = vsel %vm1261, 1, 0
  %v1839 = vsel %vm1262, 1, 0
  %v1840 = vsel %vm1263, 1, 0
  %v1841 = vsel %vm1264, 1, 0
  %v1842 = vsel %vm1265, 1, 0
  %v1843 = vsel %vm1266, 1, 0
  %v1844 = vsel %vm1267, 1, 0
  %v1845 = vsel %vm1268, 1, 0
  %v1846 = vsel %vm1269, 1, 0
  %v1847 = vsel %vm1270, 1, 0
  %v1848 = vsel %vm1271, 1, 0
  %v1849 = vsel %vm1272, 1, 0
  %v1850 = vsel %vm1273, 1, 0
  %v1851 = vsel %vm1274, 1, 0
  %v1852 = vsel %vm1275, 1, 0
  %v1853 = vsel %vm1276, 1, 0
  %v1854 = vsel %vm1277, 1, 0
  %v1855 = vsel %vm1278, 1, 0
  %v1856 = vsel %vm1279, 1, 0
  %v1857 = vsel %vm1280, 1, 0
  %v1858 = vsel %vm1281, 1, 0
  %v1859 = vsel %vm1282, 1, 0
  %v1860 = vsel %vm1283, 1, 0
  %v1861 = vsel %vm1284, 1, 0
  %v1862 = vsel %vm1285, 1, 0
  %v1863 = vsel %vm1286, 1, 0
  %v1864 = vsel %vm1287, 1, 0
  %v1865 = vsel %vm1288, 1, 0
  %v1866 = vsel %vm1289, 1, 0
  %v1867 = vsel %vm1290, 1, 0
  %v1868 = vcvt.s32.f32 %v1836
  %v1869 = vcvt.s32.f32 %v1837
  %v1870 = vcvt.s32.f32 %v1838
  %v1871 = vcvt.s32.f32 %v1839
  %v1872 = vcvt.s32.f32 %v1840
  %v1873 = vcvt.s32.f32 %v1841
  %v1874 = vcvt.s32.f32 %v1842
  %v1875 = vcvt.s32.f32 %v1843
  %v1876 = vcvt.s32.f32 %v1844
  %v1877 = vcvt.s32.f32 %v1845
  %v1878 = vcvt.s32.f32 %v1846
  %v1879 = vcvt.s32.f32 %v1847
  %v1880 = vcvt.s32.f32 %v1848
  %v1881 = vcvt.s32.f32 %v1849
  %v1882 = vcvt.s32.f32 %v1850
  %v1883 = vcvt.s32.f32 %v1851
  %v1884 = vcvt.s32.f32 %v1852
  %v1885 = vcvt.s32.f32 %v1853
  %v1886 = vcvt.s32.f32 %v1854
  %v1887 = vcvt.s32.f32 %v1855
  %v1888 = vcvt.s32.f32 %v1856
  %v1889 = vcvt.s32.f32 %v1857
  %v1890 = vcvt.s32.f32 %v1858
  %v1891 = vcvt.s32.f32 %v1859
  %v1892 = vcvt.s32.f32 %v1860
  %v1893 = vcvt.s32.f32 %v1861
  %v1894 = vcvt.s32.f32 %v1862
  %v1895 = vcvt.s32.f32 %v1863
  %v1896 = vcvt.s32.f32 %v1864
  %v1897 = vcvt.s32.f32 %v1865
  %v1898 = vcvt.s32.f32 %v1866
  %v1899 = vcvt.s32.f32 %v1867
  %v1900 = vmul.f32 %v779, %v1646
  %v1901 = vmul.f32 %v781, %v1651
  %v1902 = vmul.f32 %v783, %v1656
  %v1903 = vmul.f32 %v785, %v1661
  %v1904 = vmul.f32 %v787, %v1666
  %v1905 = vmul.f32 %v789, %v1671
  %v1906 = vmul.f32 %v791, %v1676
  %v1907 = vmul.f32 %v793, %v1681
  %v1908 = vmul.f32 %v795, %v1686
  %v1909 = vmul.f32 %v797, %v1691
  %v1910 = vmul.f32 %v799, %v1696
  %v1911 = vmul.f32 %v801, %v1701
  %v1912 = vmul.f32 %v803, %v1706
  %v1913 = vmul.f32 %v805, %v1711
  %v1914 = vmul.f32 %v807, %v1716
  %v1915 = vmul.f32 %v809, %v1721
  %v1916 = vmul.f32 %v811, %v1726
  %v1917 = vmul.f32 %v813, %v1731
  %v1918 = vmul.f32 %v815, %v1736
  %v1919 = vmul.f32 %v817, %v1741
  %v1920 = vmul.f32 %v819, %v1746
  %v1921 = vmul.f32 %v821, %v1751
  %v1922 = vmul.f32 %v823, %v1756
  %v1923 = vmul.f32 %v825, %v1761
  %v1924 = vmul.f32 %v827, %v1766
  %v1925 = vmul.f32 %v829, %v1771
  %v1926 = vmul.f32 %v831, %v1776
  %v1927 = vmul.f32 %v833, %v1781
  %v1928 = vmul.f32 %v835, %v1786
  %v1929 = vmul.f32 %v837, %v1791
  %v1930 = vmul.f32 %v839, %v1796
  %v1931 = vmul.f32 %v841, %v1801
  %v1932 = vadd.f32 %v1868, %v1900
  %v1933 = vadd.f32 %v1869, %v1901
  %v1934 = vadd.f32 %v1870, %v1902
  %v1935 = vadd.f32 %v1871, %v1903
  %v1936 = vadd.f32 %v1872, %v1904
  %v1937 = vadd.f32 %v1873, %v1905
  %v1938 = vadd.f32 %v1874, %v1906
  %v1939 = vadd.f32 %v1875, %v1907
  %v1940 = vadd.f32 %v1876, %v1908
  %v1941 = vadd.f32 %v1877, %v1909
  %v1942 = vadd.f32 %v1878, %v1910
  %v1943 = vadd.f32 %v1879, %v1911
  %v1944 = vadd.f32 %v1880, %v1912
  %v1945 = vadd.f32 %v1881, %v1913
  %v1946 = vadd.f32 %v1882, %v1914
  %v1947 = vadd.f32 %v1883, %v1915
  %v1948 = vadd.f32 %v1884, %v1916
  %v1949 = vadd.f32 %v1885, %v1917
  %v1950 = vadd.f32 %v1886, %v1918
  %v1951 = vadd.f32 %v1887, %v1919
  %v1952 = vadd.f32 %v1888, %v1920
  %v1953 = vadd.f32 %v1889, %v1921
  %v1954 = vadd.f32 %v1890, %v1922
  %v1955 = vadd.f32 %v1891, %v1923
  %v1956 = vadd.f32 %v1892, %v1924
  %v1957 = vadd.f32 %v1893, %v1925
  %v1958 = vadd.f32 %v1894, %v1926
  %v1959 = vadd.f32 %v1895, %v1927
  %v1960 = vadd.f32 %v1896, %v1928
  %v1961 = vadd.f32 %v1897, %v1929
  %v1962 = vadd.f32 %v1898, %v1930
  %v1963 = vadd.f32 %v1899, %v1931
  %v1964 = vadd.f32 %v1804, %v1932
  %v1965 = vadd.f32 %v1805, %v1933
  %v1966 = vadd.f32 %v1806, %v1934
  %v1967 = vadd.f32 %v1807, %v1935
  %v1968 = vadd.f32 %v1808, %v1936
  %v1969 = vadd.f32 %v1809, %v1937
  %v1970 = vadd.f32 %v1810, %v1938
  %v1971 = vadd.f32 %v1811, %v1939
  %v1972 = vadd.f32 %v1812, %v1940
  %v1973 = vadd.f32 %v1813, %v1941
  %v1974 = vadd.f32 %v1814, %v1942
  %v1975 = vadd.f32 %v1815, %v1943
  %v1976 = vadd.f32 %v1816, %v1944
  %v1977 = vadd.f32 %v1817, %v1945
  %v1978 = vadd.f32 %v1818, %v1946
  %v1979 = vadd.f32 %v1819, %v1947
  %v1980 = vadd.f32 %v1820, %v1948
  %v1981 = vadd.f32 %v1821, %v1949
  %v1982 = vadd.f32 %v1822, %v1950
  %v1983 = vadd.f32 %v1823, %v1951
  %v1984 = vadd.f32 %v1824, %v1952
  %v1985 = vadd.f32 %v1825, %v1953
  %v1986 = vadd.f32 %v1826, %v1954
  %v1987 = vadd.f32 %v1827, %v1955
  %v1988 = vadd.f32 %v1828, %v1956
  %v1989 = vadd.f32 %v1829, %v1957
  %v1990 = vadd.f32 %v1830, %v1958
  %v1991 = vadd.f32 %v1831, %v1959
  %v1992 = vadd.f32 %v1832, %v1960
  %v1993 = vadd.f32 %v1833, %v1961
  %v1994 = vadd.f32 %v1834, %v1962
  %v1995 = vadd.f32 %v1835, %v1963
  %vm1996 = vcmp.gt.f32.partialorder %v1964, 0.0
  %vm1997 = vcmp.gt.f32.partialorder %v1965, 0.0
  %vm1998 = vcmp.gt.f32.partialorder %v1966, 0.0
  %vm1999 = vcmp.gt.f32.partialorder %v1967, 0.0
  %vm2000 = vcmp.gt.f32.partialorder %v1968, 0.0
  %vm2001 = vcmp.gt.f32.partialorder %v1969, 0.0
  %vm2002 = vcmp.gt.f32.partialorder %v1970, 0.0
  %vm2003 = vcmp.gt.f32.partialorder %v1971, 0.0
  %vm2004 = vcmp.gt.f32.partialorder %v1972, 0.0
  %vm2005 = vcmp.gt.f32.partialorder %v1973, 0.0
  %vm2006 = vcmp.gt.f32.partialorder %v1974, 0.0
  %vm2007 = vcmp.gt.f32.partialorder %v1975, 0.0
  %vm2008 = vcmp.gt.f32.partialorder %v1976, 0.0
  %vm2009 = vcmp.gt.f32.partialorder %v1977, 0.0
  %vm2010 = vcmp.gt.f32.partialorder %v1978, 0.0
  %vm2011 = vcmp.gt.f32.partialorder %v1979, 0.0
  %vm2012 = vcmp.gt.f32.partialorder %v1980, 0.0
  %vm2013 = vcmp.gt.f32.partialorder %v1981, 0.0
  %vm2014 = vcmp.gt.f32.partialorder %v1982, 0.0
  %vm2015 = vcmp.gt.f32.partialorder %v1983, 0.0
  %vm2016 = vcmp.gt.f32.partialorder %v1984, 0.0
  %vm2017 = vcmp.gt.f32.partialorder %v1985, 0.0
  %vm2018 = vcmp.gt.f32.partialorder %v1986, 0.0
  %vm2019 = vcmp.gt.f32.partialorder %v1987, 0.0
  %vm2020 = vcmp.gt.f32.partialorder %v1988, 0.0
  %vm2021 = vcmp.gt.f32.partialorder %v1989, 0.0
  %vm2022 = vcmp.gt.f32.partialorder %v1990, 0.0
  %vm2023 = vcmp.gt.f32.partialorder %v1991, 0.0
  %vm2024 = vcmp.gt.f32.partialorder %v1992, 0.0
  %vm2025 = vcmp.gt.f32.partialorder %v1993, 0.0
  %vm2026 = vcmp.gt.f32.partialorder %v1994, 0.0
  %vm2027 = vcmp.gt.f32.partialorder %v1995, 0.0
  %v2028 = vrsqrt.pop %v1964
  %v2029 = vrsqrt.pop %v1965
  %v2030 = vrsqrt.pop %v1966
  %v2031 = vrsqrt.pop %v1967
  %v2032 = vrsqrt.pop %v1968
  %v2033 = vrsqrt.pop %v1969
  %v2034 = vrsqrt.pop %v1970
  %v2035 = vrsqrt.pop %v1971
  %v2036 = vrsqrt.pop %v1972
  %v2037 = vrsqrt.pop %v1973
  %v2038 = vrsqrt.pop %v1974
  %v2039 = vrsqrt.pop %v1975
  %v2040 = vrsqrt.pop %v1976
  %v2041 = vrsqrt.pop %v1977
  %v2042 = vrsqrt.pop %v1978
  %v2043 = vrsqrt.pop %v1979
  %v2044 = vrsqrt.pop %v1980
  %v2045 = vrsqrt.pop %v1981
  %v2046 = vrsqrt.pop %v1982
  %v2047 = vrsqrt.pop %v1983
  %v2048 = vrsqrt.pop %v1984
  %v2049 = vrsqrt.pop %v1985
  %v2050 = vrsqrt.pop %v1986
  %v2051 = vrsqrt.pop %v1987
  %v2052 = vrsqrt.pop %v1988
  %v2053 = vrsqrt.pop %v1989
  %v2054 = vrsqrt.pop %v1990
  %v2055 = vrsqrt.pop %v1991
  %v2056 = vrsqrt.pop %v1992
  %v2057 = vrsqrt.pop %v1993
  %v2058 = vrsqrt.pop %v1994
  %v2059 = vrsqrt.pop %v1995
  %v2060 = vsel %vm1996, %v2028, 0.0
  %v2061 = vsel %vm1997, %v2029, 0.0
  %v2062 = vsel %vm1998, %v2030, 0.0
  %v2063 = vsel %vm1999, %v2031, 0.0
  %v2064 = vsel %vm2000, %v2032, 0.0
  %v2065 = vsel %vm2001, %v2033, 0.0
  %v2066 = vsel %vm2002, %v2034, 0.0
  %v2067 = vsel %vm2003, %v2035, 0.0
  %v2068 = vsel %vm2004, %v2036, 0.0
  %v2069 = vsel %vm2005, %v2037, 0.0
  %v2070 = vsel %vm2006, %v2038, 0.0
  %v2071 = vsel %vm2007, %v2039, 0.0
  %v2072 = vsel %vm2008, %v2040, 0.0
  %v2073 = vsel %vm2009, %v2041, 0.0
  %v2074 = vsel %vm2010, %v2042, 0.0
  %v2075 = vsel %vm2011, %v2043, 0.0
  %v2076 = vsel %vm2012, %v2044, 0.0
  %v2077 = vsel %vm2013, %v2045, 0.0
  %v2078 = vsel %vm2014, %v2046, 0.0
  %v2079 = vsel %vm2015, %v2047, 0.0
  %v2080 = vsel %vm2016, %v2048, 0.0
  %v2081 = vsel %vm2017, %v2049, 0.0
  %v2082 = vsel %vm2018, %v2050, 0.0
  %v2083 = vsel %vm2019, %v2051, 0.0
  %v2084 = vsel %vm2020, %v2052, 0.0
  %v2085 = vsel %vm2021, %v2053, 0.0
  %v2086 = vsel %vm2022, %v2054, 0.0
  %v2087 = vsel %vm2023, %v2055, 0.0
  %v2088 = vsel %vm2024, %v2056, 0.0
  %v2089 = vsel %vm2025, %v2057, 0.0
  %v2090 = vsel %vm2026, %v2058, 0.0
  %v2091 = vsel %vm2027, %v2059, 0.0
  %v2092 = vmul.f32 %v1356, %v2060
  %v2093 = vmul.f32 %v1358, %v2061
  %v2094 = vmul.f32 %v1360, %v2062
  %v2095 = vmul.f32 %v1362, %v2063
  %v2096 = vmul.f32 %v1364, %v2064
  %v2097 = vmul.f32 %v1366, %v2065
  %v2098 = vmul.f32 %v1368, %v2066
  %v2099 = vmul.f32 %v1370, %v2067
  %v2100 = vmul.f32 %v1372, %v2068
  %v2101 = vmul.f32 %v1374, %v2069
  %v2102 = vmul.f32 %v1376, %v2070
  %v2103 = vmul.f32 %v1378, %v2071
  %v2104 = vmul.f32 %v1380, %v2072
  %v2105 = vmul.f32 %v1382, %v2073
  %v2106 = vmul.f32 %v1384, %v2074
  %v2107 = vmul.f32 %v1386, %v2075
  %v2108 = vmul.f32 %v1388, %v2076
  %v2109 = vmul.f32 %v1390, %v2077
  %v2110 = vmul.f32 %v1392, %v2078
  %v2111 = vmul.f32 %v1394, %v2079
  %v2112 = vmul.f32 %v1396, %v2080
  %v2113 = vmul.f32 %v1398, %v2081
  %v2114 = vmul.f32 %v1400, %v2082
  %v2115 = vmul.f32 %v1402, %v2083
  %v2116 = vmul.f32 %v1404, %v2084
  %v2117 = vmul.f32 %v1406, %v2085
  %v2118 = vmul.f32 %v1408, %v2086
  %v2119 = vmul.f32 %v1410, %v2087
  %v2120 = vmul.f32 %v1412, %v2088
  %v2121 = vmul.f32 %v1414, %v2089
  %v2122 = vmul.f32 %v1416, %v2090
  %v2123 = vmul.f32 %v1418, %v2091
  %vm2124 = vcmask 7168
  %2125 = vst.msk [vmem:[%s4] sm:$0xff] %vm2124, %v2092
  %2126 = vst.msk [vmem:[%s4 + $0x8] sm:$0xff] %vm2124, %v2093
  %2127 = vst.msk [vmem:[%s4 + $0x10] sm:$0xff] %vm2124, %v2094
  %2128 = vst.msk [vmem:[%s4 + $0x18] sm:$0xff] %vm2124, %v2095
  %2129 = vst.msk [vmem:[%s4 + $0x20] sm:$0xff] %vm2124, %v2096
  %2130 = vst.msk [vmem:[%s4 + $0x28] sm:$0xff] %vm2124, %v2097
  %2131 = vst.msk [vmem:[%s4 + $0x30] sm:$0xff] %vm2124, %v2098
  %2132 = vst.msk [vmem:[%s4 + $0x38] sm:$0xff] %vm2124, %v2099
  %2133 = vst.msk [vmem:[%s4 + $0x40] sm:$0xff] %vm2124, %v2100
  %2134 = vst.msk [vmem:[%s4 + $0x48] sm:$0xff] %vm2124, %v2101
  %2135 = vst.msk [vmem:[%s4 + $0x50] sm:$0xff] %vm2124, %v2102
  %2136 = vst.msk [vmem:[%s4 + $0x58] sm:$0xff] %vm2124, %v2103
  %2137 = vst.msk [vmem:[%s4 + $0x60] sm:$0xff] %vm2124, %v2104
  %2138 = vst.msk [vmem:[%s4 + $0x68] sm:$0xff] %vm2124, %v2105
  %2139 = vst.msk [vmem:[%s4 + $0x70] sm:$0xff] %vm2124, %v2106
  %2140 = vst.msk [vmem:[%s4 + $0x78] sm:$0xff] %vm2124, %v2107
  %2141 = vst.msk [vmem:[%s4 + $0x80] sm:$0xff] %vm2124, %v2108
  %2142 = vst.msk [vmem:[%s4 + $0x88] sm:$0xff] %vm2124, %v2109
  %2143 = vst.msk [vmem:[%s4 + $0x90] sm:$0xff] %vm2124, %v2110
  %2144 = vst.msk [vmem:[%s4 + $0x98] sm:$0xff] %vm2124, %v2111
  %2145 = vst.msk [vmem:[%s4 + $0xa0] sm:$0xff] %vm2124, %v2112
  %2146 = vst.msk [vmem:[%s4 + $0xa8] sm:$0xff] %vm2124, %v2113
  %2147 = vst.msk [vmem:[%s4 + $0xb0] sm:$0xff] %vm2124, %v2114
  %2148 = vst.msk [vmem:[%s4 + $0xb8] sm:$0xff] %vm2124, %v2115
  %2149 = vst.msk [vmem:[%s4 + $0xc0] sm:$0xff] %vm2124, %v2116
  %2150 = vst.msk [vmem:[%s4 + $0xc8] sm:$0xff] %vm2124, %v2117
  %2151 = vst.msk [vmem:[%s4 + $0xd0] sm:$0xff] %vm2124, %v2118
  %2152 = vst.msk [vmem:[%s4 + $0xd8] sm:$0xff] %vm2124, %v2119
  %2153 = vst.msk [vmem:[%s4 + $0xe0] sm:$0xff] %vm2124, %v2120
  %2154 = vst.msk [vmem:[%s4 + $0xe8] sm:$0xff] %vm2124, %v2121
  %2155 = vst.msk [vmem:[%s4 + $0xf0] sm:$0xff] %vm2124, %v2122
  %2156 = vst.msk [vmem:[%s4 + $0xf8] sm:$0xff] %vm2124, %v2123
  %v2157 = vmul.f32 %v779, %v2060
  %v2158 = vmul.f32 %v781, %v2061
  %v2159 = vmul.f32 %v783, %v2062
  %v2160 = vmul.f32 %v785, %v2063
  %v2161 = vmul.f32 %v787, %v2064
  %v2162 = vmul.f32 %v789, %v2065
  %v2163 = vmul.f32 %v791, %v2066
  %v2164 = vmul.f32 %v793, %v2067
  %v2165 = vmul.f32 %v795, %v2068
  %v2166 = vmul.f32 %v797, %v2069
  %v2167 = vmul.f32 %v799, %v2070
  %v2168 = vmul.f32 %v801, %v2071
  %v2169 = vmul.f32 %v803, %v2072
  %v2170 = vmul.f32 %v805, %v2073
  %v2171 = vmul.f32 %v807, %v2074
  %v2172 = vmul.f32 %v809, %v2075
  %v2173 = vmul.f32 %v811, %v2076
  %v2174 = vmul.f32 %v813, %v2077
  %v2175 = vmul.f32 %v815, %v2078
  %v2176 = vmul.f32 %v817, %v2079
  %v2177 = vmul.f32 %v819, %v2080
  %v2178 = vmul.f32 %v821, %v2081
  %v2179 = vmul.f32 %v823, %v2082
  %v2180 = vmul.f32 %v825, %v2083
  %v2181 = vmul.f32 %v827, %v2084
  %v2182 = vmul.f32 %v829, %v2085
  %v2183 = vmul.f32 %v831, %v2086
  %v2184 = vmul.f32 %v833, %v2087
  %v2185 = vmul.f32 %v835, %v2088
  %v2186 = vmul.f32 %v837, %v2089
  %v2187 = vmul.f32 %v839, %v2090
  %v2188 = vmul.f32 %v841, %v2091
  %2189 = vst.msk [vmem:[%s5] sm:$0xff] %vm2124, %v2157
  %2190 = vst.msk [vmem:[%s5 + $0x8] sm:$0xff] %vm2124, %v2158
  %2191 = vst.msk [vmem:[%s5 + $0x10] sm:$0xff] %vm2124, %v2159
  %2192 = vst.msk [vmem:[%s5 + $0x18] sm:$0xff] %vm2124, %v2160
  %2193 = vst.msk [vmem:[%s5 + $0x20] sm:$0xff] %vm2124, %v2161
  %2194 = vst.msk [vmem:[%s5 + $0x28] sm:$0xff] %vm2124, %v2162
  %2195 = vst.msk [vmem:[%s5 + $0x30] sm:$0xff] %vm2124, %v2163
  %2196 = vst.msk [vmem:[%s5 + $0x38] sm:$0xff] %vm2124, %v2164
  %2197 = vst.msk [vmem:[%s5 + $0x40] sm:$0xff] %vm2124, %v2165
  %2198 = vst.msk [vmem:[%s5 + $0x48] sm:$0xff] %vm2124, %v2166
  %2199 = vst.msk [vmem:[%s5 + $0x50] sm:$0xff] %vm2124, %v2167
  %2200 = vst.msk [vmem:[%s5 + $0x58] sm:$0xff] %vm2124, %v2168
  %2201 = vst.msk [vmem:[%s5 + $0x60] sm:$0xff] %vm2124, %v2169
  %2202 = vst.msk [vmem:[%s5 + $0x68] sm:$0xff] %vm2124, %v2170
  %2203 = vst.msk [vmem:[%s5 + $0x70] sm:$0xff] %vm2124, %v2171
  %2204 = vst.msk [vmem:[%s5 + $0x78] sm:$0xff] %vm2124, %v2172
  %2205 = vst.msk [vmem:[%s5 + $0x80] sm:$0xff] %vm2124, %v2173
  %2206 = vst.msk [vmem:[%s5 + $0x88] sm:$0xff] %vm2124, %v2174
  %2207 = vst.msk [vmem:[%s5 + $0x90] sm:$0xff] %vm2124, %v2175
  %2208 = vst.msk [vmem:[%s5 + $0x98] sm:$0xff] %vm2124, %v2176
  %2209 = vst.msk [vmem:[%s5 + $0xa0] sm:$0xff] %vm2124, %v2177
  %2210 = vst.msk [vmem:[%s5 + $0xa8] sm:$0xff] %vm2124, %v2178
  %2211 = vst.msk [vmem:[%s5 + $0xb0] sm:$0xff] %vm2124, %v2179
  %2212 = vst.msk [vmem:[%s5 + $0xb8] sm:$0xff] %vm2124, %v2180
  %2213 = vst.msk [vmem:[%s5 + $0xc0] sm:$0xff] %vm2124, %v2181
  %2214 = vst.msk [vmem:[%s5 + $0xc8] sm:$0xff] %vm2124, %v2182
  %2215 = vst.msk [vmem:[%s5 + $0xd0] sm:$0xff] %vm2124, %v2183
  %2216 = vst.msk [vmem:[%s5 + $0xd8] sm:$0xff] %vm2124, %v2184
  %2217 = vst.msk [vmem:[%s5 + $0xe0] sm:$0xff] %vm2124, %v2185
  %2218 = vst.msk [vmem:[%s5 + $0xe8] sm:$0xff] %vm2124, %v2186
  %2219 = vst.msk [vmem:[%s5 + $0xf0] sm:$0xff] %vm2124, %v2187
  %2220 = vst.msk [vmem:[%s5 + $0xf8] sm:$0xff] %vm2124, %v2188
  %2221 = vst.msk [vmem:[%s6] sm:$0xff] %vm2124, %v2060
  %2222 = vst.msk [vmem:[%s6 + $0x8] sm:$0xff] %vm2124, %v2061
  %2223 = vst.msk [vmem:[%s6 + $0x10] sm:$0xff] %vm2124, %v2062
  %2224 = vst.msk [vmem:[%s6 + $0x18] sm:$0xff] %vm2124, %v2063
  %2225 = vst.msk [vmem:[%s6 + $0x20] sm:$0xff] %vm2124, %v2064
  %2226 = vst.msk [vmem:[%s6 + $0x28] sm:$0xff] %vm2124, %v2065
  %2227 = vst.msk [vmem:[%s6 + $0x30] sm:$0xff] %vm2124, %v2066
  %2228 = vst.msk [vmem:[%s6 + $0x38] sm:$0xff] %vm2124, %v2067
  %2229 = vst.msk [vmem:[%s6 + $0x40] sm:$0xff] %vm2124, %v2068
  %2230 = vst.msk [vmem:[%s6 + $0x48] sm:$0xff] %vm2124, %v2069
  %2231 = vst.msk [vmem:[%s6 + $0x50] sm:$0xff] %vm2124, %v2070
  %2232 = vst.msk [vmem:[%s6 + $0x58] sm:$0xff] %vm2124, %v2071
  %2233 = vst.msk [vmem:[%s6 + $0x60] sm:$0xff] %vm2124, %v2072
  %2234 = vst.msk [vmem:[%s6 + $0x68] sm:$0xff] %vm2124, %v2073
  %2235 = vst.msk [vmem:[%s6 + $0x70] sm:$0xff] %vm2124, %v2074
  %2236 = vst.msk [vmem:[%s6 + $0x78] sm:$0xff] %vm2124, %v2075
  %2237 = vst.msk [vmem:[%s6 + $0x80] sm:$0xff] %vm2124, %v2076
  %2238 = vst.msk [vmem:[%s6 + $0x88] sm:$0xff] %vm2124, %v2077
  %2239 = vst.msk [vmem:[%s6 + $0x90] sm:$0xff] %vm2124, %v2078
  %2240 = vst.msk [vmem:[%s6 + $0x98] sm:$0xff] %vm2124, %v2079
  %2241 = vst.msk [vmem:[%s6 + $0xa0] sm:$0xff] %vm2124, %v2080
  %2242 = vst.msk [vmem:[%s6 + $0xa8] sm:$0xff] %vm2124, %v2081
  %2243 = vst.msk [vmem:[%s6 + $0xb0] sm:$0xff] %vm2124, %v2082
  %2244 = vst.msk [vmem:[%s6 + $0xb8] sm:$0xff] %vm2124, %v2083
  %2245 = vst.msk [vmem:[%s6 + $0xc0] sm:$0xff] %vm2124, %v2084
  %2246 = vst.msk [vmem:[%s6 + $0xc8] sm:$0xff] %vm2124, %v2085
  %2247 = vst.msk [vmem:[%s6 + $0xd0] sm:$0xff] %vm2124, %v2086
  %2248 = vst.msk [vmem:[%s6 + $0xd8] sm:$0xff] %vm2124, %v2087
  %2249 = vst.msk [vmem:[%s6 + $0xe0] sm:$0xff] %vm2124, %v2088
  %2250 = vst.msk [vmem:[%s6 + $0xe8] sm:$0xff] %vm2124, %v2089
  %2251 = vst.msk [vmem:[%s6 + $0xf0] sm:$0xff] %vm2124, %v2090
  %2252 = vst.msk [vmem:[%s6 + $0xf8] sm:$0xff] %vm2124, %v2091
  // Predicated region
  $region18: #{gen_view_normalized.2} parent=0 // pred_check
    _
  $region19: #{gen_view_normalized.2} parent=0 // pred_check_branch
    %2254 = sbr.rel (0) target = $region21
  $region20: #{gen_view_normalized.2} parent=0 // pred_region
    _
  $region21: #{gen_view_normalized.2} parent=0 // pred_fallthru
    _
  // Predicated region
  $region22: #{gen_view_normalized.2} parent=0 // pred_check
    _
  $region23: #{gen_view_normalized.2} parent=0 // pred_check_branch
    %2256 = sbr.rel (0) target = $region25
  $region24: #{gen_view_normalized.2} parent=0 // pred_region
    _
  $region25: #{gen_view_normalized.2} parent=0 // pred_fallthru
    _
  // Predicated region
  $region26: #{gen_view_normalized.2} parent=0 // pred_check
    _
  $region27: #{gen_view_normalized.2} parent=0 // pred_check_branch
    %2258 = sbr.rel (0) target = $region29
  $region28: #{gen_view_normalized.2} parent=0 // pred_region
    _
  $region29: #{gen_view_normalized.2} parent=0 // pred_fallthru
    _
  // Predicated region
  $region30: #{gen_view_normalized.2} parent=0 // pred_check
    _
  $region31: #{gen_view_normalized.2} parent=0 // pred_check_branch
    %2260 = sbr.rel (0) target = $region33
  $region32: #{gen_view_normalized.2} parent=0 // pred_region
    _
  $region33: #{gen_view_normalized.2} parent=0 // pred_fallthru
    _
  // Predicated region
  $region34: #{gen_view_normalized.2} parent=0 // pred_check
    _
  $region35: #{gen_view_normalized.2} parent=0 // pred_check_branch
    %2262 = sbr.rel (0) target = $region37
  $region36: #{gen_view_normalized.2} parent=0 // pred_region
    _
  $region37: #{gen_view_normalized.2} parent=0 // pred_fallthru
    _
  // Predicated region
  $region38: #{gen_view_normalized.2} parent=0 // pred_check
    _
  $region39: #{gen_view_normalized.2} parent=0 // pred_check_branch
    %2264 = sbr.rel (0) target = $region41
  $region40: #{gen_view_normalized.2} parent=0 // pred_region
    _
  $region41: #{gen_view_normalized.2} parent=0 // pred_fallthru
    _

</llo_original>
